<compile_context>
chip_gen: v7x
topology: tpu7x:2x2x1
jax: 0.10.0
libtpu: 0.0.40
codegen_flags: <defaults>
</compile_context>

<pallas_src>
import numpy as np
import jax
import jax.numpy as jnp
from jax.experimental import pallas as pl
from jax.experimental.pallas import tpu as pltpu

_EPS = 1e-5
_LANE = 128


def _round_up(x, m):
    return (x + m - 1) // m * m


# ----------------------------- fused kernel ---------------------------------
def _make_basic_block_kernel(oh, ow, stride, has_proj, cin_p, cout_p):
    """Fused BasicBlock kernel for one image (NHWC, channel-padded).

    stride == 1 inputs : xp (oh+2, ow+2, cin_p)
    stride == 2 inputs : xe, xo (oh+1, ow+1, 2*cin_p) -- even / odd padded rows
                         with column pairs folded into lanes (padded col 2p in
                         lanes [0:cin_p], col 2p+1 in lanes [cin_p:2cin_p]).
    followed by        : w1 (3, 3*cin_p, cout_p), bn1 scale/bias (1, cout_p),
                         w2 (3, 3*cout_p, cout_p), bn2 scale/bias (1, cout_p),
                         [wsc (cin_p, cout_p), bn_sc scale/bias] if projection.
    scratch            : acc (oh, ow, cout_p) f32 (reused by conv1 and conv2),
                         mid (oh+2, ow+2, cout_p) compute dtype (conv1 output,
                         zero halo provides conv2's spatial padding).
    """

    def conv3x3(windows, w_ref, acc_ref):
        # windows: 3 operands (one per kh), each (oh, ow, 3*cin) with lane
        # order [kw=0 | kw=1 | kw=2]; w_ref: (3, 3*cin, cout).
        cout = acc_ref.shape[-1]
        for kh, win in enumerate(windows):
            rows, cols, depth = win.shape
            contrib = jnp.dot(win.reshape(rows * cols, depth), w_ref[kh],
                              preferred_element_type=jnp.float32)
            contrib = contrib.reshape(rows, cols, cout)
            if kh == 0:
                acc_ref[...] = contrib          # init, no memset
            else:
                acc_ref[...] += contrib

    def kernel(*refs):
        if stride == 1:
            if has_proj:
                (xp_ref, w1_ref, s1_ref, b1_ref, w2_ref, s2_ref, b2_ref,
                 wsc_ref, ssc_ref, bsc_ref, out_ref, acc_ref, mid_ref) = refs
            else:
                (xp_ref, w1_ref, s1_ref, b1_ref, w2_ref, s2_ref, b2_ref,
                 out_ref, acc_ref, mid_ref) = refs
        else:
            if has_proj:
                (xe_ref, xo_ref, w1_ref, s1_ref, b1_ref, w2_ref, s2_ref,
                 b2_ref, wsc_ref, ssc_ref, bsc_ref,
                 out_ref, acc_ref, mid_ref) = refs
            else:  # never reached (stride 2 always has projection)
                (xe_ref, xo_ref, w1_ref, s1_ref, b1_ref, w2_ref, s2_ref,
                 b2_ref, out_ref, acc_ref, mid_ref) = refs

        # ---- conv1 (3x3, stride) + bn1 + relu -------------------------------
        if stride == 1:
            def win1(kh):
                rows = xp_ref[pl.ds(kh, oh), :, :]           # (oh, ow+2, cin_p)
                return jnp.concatenate(
                    [rows[:, kw:kw + ow, :] for kw in range(3)], axis=-1)
        else:
            # padded row 2r+kh: kh=0 -> even[r], kh=1 -> odd[r], kh=2 -> even[r+1]
            srcs = [(xe_ref, 0), (xo_ref, 0), (xe_ref, 1)]

            def win1(kh):
                ref, off = srcs[kh]
                rows = ref[pl.ds(off, oh), :, :]             # (oh, ow+1, 2cin_p)
                pair = rows[:, 0:ow, :]                      # cols 2c, 2c+1
                col2 = rows[:, 1:ow + 1, 0:cin_p]            # col  2c+2
                return jnp.concatenate([pair, col2], axis=-1)

        conv3x3([win1(kh) for kh in range(3)], w1_ref, acc_ref)
        y1 = jnp.maximum(acc_ref[...] * s1_ref[...] + b1_ref[...], 0.0)

        # conv1 activation -> zero-padded VMEM scratch (never leaves the chip).
        mid_ref[...] = jnp.zeros_like(mid_ref)               # zero the halo
        mid_ref[1:oh + 1, 1:ow + 1, :] = y1.astype(mid_ref.dtype)

        # ---- conv2 (3x3, stride 1) + bn2 ------------------------------------
        def win2(kh):
            rows = mid_ref[pl.ds(kh, oh), :, :]              # (oh, ow+2, cout_p)
            return jnp.concatenate(
                [rows[:, kw:kw + ow, :] for kw in range(3)], axis=-1)

        conv3x3([win2(kh) for kh in range(3)], w2_ref, acc_ref)
        y2 = acc_ref[...] * s2_ref[...] + b2_ref[...]

        # ---- shortcut --------------------------------------------------------
        if has_proj:
            if stride == 1:
                xs = xp_ref[1:oh + 1, 1:ow + 1, :]           # x[r, c]
            else:
                # x[2r, 2c] unpadded == padded [2r+1, 2c+1] == odd row r,
                # column-pair c, upper lane half.
                xs = xo_ref[0:oh, 0:ow, cin_p:2 * cin_p]
            sc = jnp.dot(xs.reshape(oh * ow, cin_p), wsc_ref[...],
                         preferred_element_type=jnp.float32)
            sc = sc.reshape(oh, ow, cout_p) * ssc_ref[...] + bsc_ref[...]
        else:
            sc = xp_ref[1:oh + 1, 1:ow + 1, :].astype(jnp.float32)

        # ---- residual add + relu: single lane-dense store -------------------
        out_ref[...] = jnp.maximum(y2 + sc, 0.0).astype(out_ref.dtype)

    return kernel


# ------------------------------ wrapper --------------------------------------
def basic_block_forward(x_nchw, kp, stride, *, compute_dtype=jnp.bfloat16):
    """BasicBlock forward (input/output NCHW, eval-mode BN)."""
    n, cin, h, w = x_nchw.shape
    planes = kp['planes']
    cin_p, cout_p = kp['cin_p'], kp['cout_p']
    has_proj = kp['wsc'] is not None
    assert cin == kp['in_planes']
    assert stride in (1, 2)
    assert has_proj or (stride == 1 and cin == planes)
    if stride == 2:
        assert h % 2 == 0 and w % 2 == 0
    oh, ow = h // stride, w // stride
    hp, wp = h + 2, w + 2

    # NCHW -> NHWC, compute dtype, spatial pad 1, channel pad to 128 lanes.
    x = jnp.transpose(x_nchw, (0, 2, 3, 1)).astype(compute_dtype)
    xp = jnp.pad(x, ((0, 0), (1, 1), (1, 1), (0, cin_p - cin)))

    kernel = _make_basic_block_kernel(oh, ow, stride, has_proj, cin_p, cout_p)

    if stride == 1:
        data_args = [xp]
        data_specs = [pl.BlockSpec((None, hp, wp, cin_p),
                                   lambda i: (i, 0, 0, 0))]
    else:
        # Fold adjacent padded columns into lanes, split even/odd padded rows.
        # All of this is wrapper-side XLA layout plumbing (free reshapes/slices)
        # so the kernel only needs static, unit-stride, lane-aligned slices.
        xw = xp.reshape(n, hp, wp // 2, 2 * cin_p)
        xe = xw[:, 0::2]                                  # (n, oh+1, ow+1, 2cin_p)
        xo = xw[:, 1::2]                                  # (n, oh+1, ow+1, 2cin_p)
        data_args = [xe, xo]
        spec = pl.BlockSpec((None, oh + 1, ow + 1, 2 * cin_p),
                            lambda i: (i, 0, 0, 0))
        data_specs = [spec, spec]

    wt_specs = [
        pl.BlockSpec((3, 3 * cin_p, cout_p), lambda i: (0, 0, 0)),    # w1 (resident)
        pl.BlockSpec((1, cout_p), lambda i: (0, 0)),                  # bn1 scale
        pl.BlockSpec((1, cout_p), lambda i: (0, 0)),                  # bn1 bias
        pl.BlockSpec((3, 3 * cout_p, cout_p), lambda i: (0, 0, 0)),   # w2 (resident)
        pl.BlockSpec((1, cout_p), lambda i: (0, 0)),                  # bn2 scale
        pl.BlockSpec((1, cout_p), lambda i: (0, 0)),                  # bn2 bias
    ]
    wt_args = [kp['w1'], kp['s1'], kp['b1'], kp['w2'], kp['s2'], kp['b2']]
    if has_proj:
        wt_specs += [
            pl.BlockSpec((cin_p, cout_p), lambda i: (0, 0)),          # shortcut 1x1 w
            pl.BlockSpec((1, cout_p), lambda i: (0, 0)),              # bn_sc scale
            pl.BlockSpec((1, cout_p), lambda i: (0, 0)),              # bn_sc bias
        ]
        wt_args += [kp['wsc'], kp['ssc'], kp['bsc']]

    out_dtype = x_nchw.dtype
    out_padded = pl.pallas_call(
        kernel,
        grid=(n,),
        in_specs=data_specs + wt_specs,
        out_specs=pl.BlockSpec((None, oh, ow, cout_p), lambda i: (i, 0, 0, 0)),
        out_shape=jax.ShapeDtypeStruct((n, oh, ow, cout_p), out_dtype),
        scratch_shapes=[
            pltpu.VMEM((oh, ow, cout_p), jnp.float32),               # shared conv acc
            pltpu.VMEM((oh + 2, ow + 2, cout_p), compute_dtype),     # padded conv1 act
        ],
        compiler_params=pltpu.CompilerParams(
            dimension_semantics=("parallel",)),
    )(*data_args, *wt_args)

    out = out_padded[:, :, :, :planes]            # drop channel padding
    return jnp.transpose(out, (0, 3, 1, 2))       # NHWC -> NCHW


# ---------------------- parameters & folding --------------------------------
def init_params(key, in_planes, planes, stride):
    keys = jax.random.split(key, 6)

    def bn_init(k, c):
        k1, k2, k3, k4 = jax.random.split(k, 4)
        gamma = jax.random.uniform(k1, (c,), jnp.float32, 0.5, 1.5)
        beta = jax.random.normal(k2, (c,), jnp.float32) * 0.1
        mean = jax.random.normal(k3, (c,), jnp.float32) * 0.1
        var = jax.random.uniform(k4, (c,), jnp.float32, 0.5, 1.5)
        return (gamma, beta, mean, var)

    p = {
        'conv1_w': jax.random.normal(keys[0], (planes, in_planes, 3, 3), jnp.float32) * 0.2,
        'bn1': bn_init(keys[1], planes),
        'conv2_w': jax.random.normal(keys[2], (planes, planes, 3, 3), jnp.float32) * 0.2,
        'bn2': bn_init(keys[3], planes),
        'conv_sc_w': None,
        'bn_sc': None,
    }
    if stride != 1 or in_planes != planes:
        p['conv_sc_w'] = jax.random.normal(keys[4], (planes, in_planes, 1, 1), jnp.float32) * 0.2
        p['bn_sc'] = bn_init(keys[5], planes)
    return p


def fold_params(p, *, compute_dtype=jnp.bfloat16):
    """Fold eval-mode BN into scale/bias, pad channels to 128 lanes, and pack
    3x3 weights as (3, 3*Cin_p, Cout_p) so each kh is one deep matmul."""
    planes, in_planes = p['conv1_w'].shape[0], p['conv1_w'].shape[1]
    cin_p = _round_up(in_planes, _LANE)
    cout_p = _round_up(planes, _LANE)

    def fold_bn(bnp):
        gamma, beta, mean, var = bnp
        s = gamma / jnp.sqrt(var + _EPS)
        b = beta - mean * s
        pad = (0, cout_p - s.shape[0])
        return (jnp.pad(s, pad).reshape(1, cout_p).astype(jnp.float32),
                jnp.pad(b, pad).reshape(1, cout_p).astype(jnp.float32))

    def taps3(w_oihw, ci_p):
        o, i, kh, kw = w_oihw.shape
        wt = jnp.transpose(w_oihw, (2, 3, 1, 0))                       # (kh, kw, I, O)
        wt = jnp.pad(wt, ((0, 0), (0, 0), (0, ci_p - i), (0, cout_p - o)))
        return wt.reshape(kh, kw * ci_p, cout_p).astype(compute_dtype)  # rows = [kw, ci]

    kp = dict(in_planes=in_planes, planes=planes, cin_p=cin_p, cout_p=cout_p)
    kp['w1'] = taps3(p['conv1_w'], cin_p)
    kp['w2'] = taps3(p['conv2_w'], cout_p)
    kp['s1'], kp['b1'] = fold_bn(p['bn1'])
    kp['s2'], kp['b2'] = fold_bn(p['bn2'])
    if p['conv_sc_w'] is not None:
        wsc = jnp.transpose(p['conv_sc_w'][:, :, 0, 0])                # (I, O)
        wsc = jnp.pad(wsc, ((0, cin_p - in_planes), (0, cout_p - planes)))
        kp['wsc'] = wsc.astype(compute_dtype)
        kp['ssc'], kp['bsc'] = fold_bn(p['bn_sc'])
    else:
        kp['wsc'] = None
    return kp


# --------------------------- pure-XLA reference ------------------------------
def reference_forward(x, p, stride, *, compute_dtype=jnp.bfloat16):
    """Reference matching the PyTorch module in eval mode; operands rounded to
    compute_dtype (same rounding the kernel applies) but convolved in f32."""
    rnd = lambda a: a.astype(compute_dtype).astype(jnp.float32)

    def conv(xx, ww, s, pad):
        return jax.lax.conv_general_dilated(
            xx, rnd(ww), (s, s), [(pad, pad), (pad, pad)],
            dimension_numbers=('NCHW', 'OIHW', 'NCHW'))

    def bn(xx, bnp):
        gamma, beta, mean, var = bnp
        s = gamma / jnp.sqrt(var + _EPS)
        return xx * s[None, :, None, None] + (beta - mean * s)[None, :, None, None]

    x = rnd(x)
    out = jax.nn.relu(bn(conv(x, p['conv1_w'], stride, 1), p['bn1']))
    out = bn(conv(out, p['conv2_w'], 1, 1), p['bn2'])
    if p['conv_sc_w'] is not None:
        sc = bn(conv(x, p['conv_sc_w'], stride, 0), p['bn_sc'])
    else:
        sc = x
    return jax.nn.relu(out + sc)


# --------------------------------- main --------------------------------------
if __name__ == "__main__":
    key = jax.random.PRNGKey(0)
    cases = [
        # (in_planes, planes, stride, compute_dtype, tol)
        (4, 8, 2, jnp.float32, 3e-2),    # projection shortcut, stride 2, f32 path
        (4, 8, 2, jnp.bfloat16, 5e-2),   # projection shortcut, stride 2, bf16 MXU
        (4, 8, 1, jnp.bfloat16, 5e-2),   # projection shortcut, stride 1
        (8, 8, 1, jnp.bfloat16, 5e-2),   # identity shortcut
    ]
    for idx, (in_planes, planes, stride, cdt, tol) in enumerate(cases):
        kx, kparam = jax.random.split(jax.random.fold_in(key, idx))
        x = jax.random.normal(kx, (2, in_planes, 16, 16), jnp.float32)  # NCHW
        raw = init_params(kparam, in_planes, planes, stride)
        kp = fold_params(raw, compute_dtype=cdt)

        out = jax.block_until_ready(
            basic_block_forward(x, kp, stride, compute_dtype=cdt))
        assert out.shape == (2, planes, 16 // stride, 16 // stride)

        ref = reference_forward(x, raw, stride, compute_dtype=cdt)
        np.testing.assert_allclose(np.asarray(out), np.asarray(ref),
                                   atol=tol, rtol=tol)
    print("KERNEL_OK")
</pallas_src>

<mosaic_0001>
module attributes {stable_mosaic.version = 11 : i64} {
  func.func @kernel(%arg0: i32, %arg1: memref<1x9x9x256xf32, #tpu.memory_space<vmem>>, %arg2: memref<1x9x9x256xf32, #tpu.memory_space<vmem>>, %arg3: memref<3x384x128xf32, #tpu.memory_space<vmem>>, %arg4: memref<1x128xf32, #tpu.memory_space<vmem>>, %arg5: memref<1x128xf32, #tpu.memory_space<vmem>>, %arg6: memref<3x384x128xf32, #tpu.memory_space<vmem>>, %arg7: memref<1x128xf32, #tpu.memory_space<vmem>>, %arg8: memref<1x128xf32, #tpu.memory_space<vmem>>, %arg9: memref<128x128xf32, #tpu.memory_space<vmem>>, %arg10: memref<1x128xf32, #tpu.memory_space<vmem>>, %arg11: memref<1x128xf32, #tpu.memory_space<vmem>>, %arg12: memref<1x8x8x128xf32, #tpu.memory_space<vmem>>, %arg13: memref<8x8x128xf32, #tpu.memory_space<vmem>>, %arg14: memref<10x10x128xf32, #tpu.memory_space<vmem>>) attributes {dimension_semantics = [#tpu.dimension_semantics<parallel>], iteration_bounds = array<i64: 2>, scalar_prefetch = 0 : i64, scratch_operands = 2 : i64, tpu.core_type = #tpu.core_type<tc>, window_params = [{transform_indices = @transform_0, window_bounds = array<i64: 1, 9, 9, 256>}, {transform_indices = @transform_1, window_bounds = array<i64: 1, 9, 9, 256>}, {pipeline_mode = #tpu.pipeline_mode<synchronous>, transform_indices = @transform_2, window_bounds = array<i64: 3, 384, 128>}, {pipeline_mode = #tpu.pipeline_mode<synchronous>, transform_indices = @transform_3, window_bounds = array<i64: 1, 128>}, {pipeline_mode = #tpu.pipeline_mode<synchronous>, transform_indices = @transform_4, window_bounds = array<i64: 1, 128>}, {pipeline_mode = #tpu.pipeline_mode<synchronous>, transform_indices = @transform_5, window_bounds = array<i64: 3, 384, 128>}, {pipeline_mode = #tpu.pipeline_mode<synchronous>, transform_indices = @transform_6, window_bounds = array<i64: 1, 128>}, {pipeline_mode = #tpu.pipeline_mode<synchronous>, transform_indices = @transform_7, window_bounds = array<i64: 1, 128>}, {pipeline_mode = #tpu.pipeline_mode<synchronous>, transform_indices = @transform_8, window_bounds = array<i64: 128, 128>}, {pipeline_mode = #tpu.pipeline_mode<synchronous>, transform_indices = @transform_9, window_bounds = array<i64: 1, 128>}, {pipeline_mode = #tpu.pipeline_mode<synchronous>, transform_indices = @transform_10, window_bounds = array<i64: 1, 128>}, {transform_indices = @transform_11, window_bounds = array<i64: 1, 8, 8, 128>}]} {
    %c0 = arith.constant 0 : index
    %c0_0 = arith.constant 0 : index
    %c0_1 = arith.constant 0 : index
    %c0_2 = arith.constant 0 : index
    %0 = vector.load %arg1[%c0, %c0_0, %c0_1, %c0_2] : memref<1x9x9x256xf32, #tpu.memory_space<vmem>>, vector<1x8x9x256xf32>
    %1 = vector.shape_cast %0 : vector<1x8x9x256xf32> to vector<8x9x256xf32>
    %2 = vector.extract_strided_slice %1 {offsets = [0, 0, 0], sizes = [8, 8, 256], strides = [1, 1, 1]} : vector<8x9x256xf32> to vector<8x8x256xf32>
    %3 = vector.extract_strided_slice %1 {offsets = [0, 1, 0], sizes = [8, 8, 128], strides = [1, 1, 1]} : vector<8x9x256xf32> to vector<8x8x128xf32>
    %4 = tpu.concatenate %2, %3 in 2 : vector<8x8x256xf32>, vector<8x8x128xf32> -> vector<8x8x384xf32>
    %c0_3 = arith.constant 0 : index
    %c0_4 = arith.constant 0 : index
    %c0_5 = arith.constant 0 : index
    %c0_6 = arith.constant 0 : index
    %5 = vector.load %arg2[%c0_3, %c0_4, %c0_5, %c0_6] : memref<1x9x9x256xf32, #tpu.memory_space<vmem>>, vector<1x8x9x256xf32>
    %6 = vector.shape_cast %5 : vector<1x8x9x256xf32> to vector<8x9x256xf32>
    %7 = vector.extract_strided_slice %6 {offsets = [0, 0, 0], sizes = [8, 8, 256], strides = [1, 1, 1]} : vector<8x9x256xf32> to vector<8x8x256xf32>
    %8 = vector.extract_strided_slice %6 {offsets = [0, 1, 0], sizes = [8, 8, 128], strides = [1, 1, 1]} : vector<8x9x256xf32> to vector<8x8x128xf32>
    %9 = tpu.concatenate %7, %8 in 2 : vector<8x8x256xf32>, vector<8x8x128xf32> -> vector<8x8x384xf32>
    %c0_7 = arith.constant 0 : index
    %c1 = arith.constant 1 : index
    %c0_8 = arith.constant 0 : index
    %c0_9 = arith.constant 0 : index
    %10 = vector.load %arg1[%c0_7, %c1, %c0_8, %c0_9] : memref<1x9x9x256xf32, #tpu.memory_space<vmem>>, vector<1x8x9x256xf32>
    %11 = vector.shape_cast %10 : vector<1x8x9x256xf32> to vector<8x9x256xf32>
    %12 = vector.extract_strided_slice %11 {offsets = [0, 0, 0], sizes = [8, 8, 256], strides = [1, 1, 1]} : vector<8x9x256xf32> to vector<8x8x256xf32>
    %13 = vector.extract_strided_slice %11 {offsets = [0, 1, 0], sizes = [8, 8, 128], strides = [1, 1, 1]} : vector<8x9x256xf32> to vector<8x8x128xf32>
    %14 = tpu.concatenate %12, %13 in 2 : vector<8x8x256xf32>, vector<8x8x128xf32> -> vector<8x8x384xf32>
    %15 = vector.shape_cast %4 : vector<8x8x384xf32> to vector<64x384xf32>
    %c0_10 = arith.constant 0 : index
    %c0_11 = arith.constant 0 : index
    %c0_12 = arith.constant 0 : index
    %16 = vector.load %arg3[%c0_10, %c0_11, %c0_12] : memref<3x384x128xf32, #tpu.memory_space<vmem>>, vector<1x384x128xf32>
    %17 = vector.shape_cast %16 : vector<1x384x128xf32> to vector<384x128xf32>
    %cst = arith.constant dense<0.000000e+00> : vector<64x128xf32>
    %18 = tpu.matmul %15, %17, %cst {dimension_numbers = #tpu.dot_dimension_numbers<[1], [0], [0], [1], [0, 0, 1, 1], [], []>} : vector<64x384xf32>, vector<384x128xf32>, vector<64x128xf32> -> vector<64x128xf32>
    %19 = vector.shape_cast %18 : vector<64x128xf32> to vector<8x8x128xf32>
    %c0_13 = arith.constant 0 : index
    %c0_14 = arith.constant 0 : index
    %c0_15 = arith.constant 0 : index
    %20 = vector.load %arg13[%c0_13, %c0_14, %c0_15] : memref<8x8x128xf32, #tpu.memory_space<vmem>>, vector<8x8x128xf32>
    tpu.vector_store %arg13[%c0_13, %c0_14, %c0_15], %19 {strides = array<i32>} : memref<8x8x128xf32, #tpu.memory_space<vmem>>, vector<8x8x128xf32>,
    %21 = vector.shape_cast %9 : vector<8x8x384xf32> to vector<64x384xf32>
    %c1_16 = arith.constant 1 : index
    %c0_17 = arith.constant 0 : index
    %c0_18 = arith.constant 0 : index
    %22 = vector.load %arg3[%c1_16, %c0_17, %c0_18] : memref<3x384x128xf32, #tpu.memory_space<vmem>>, vector<1x384x128xf32>
    %23 = vector.shape_cast %22 : vector<1x384x128xf32> to vector<384x128xf32>
    %cst_19 = arith.constant dense<0.000000e+00> : vector<64x128xf32>
    %24 = tpu.matmul %21, %23, %cst_19 {dimension_numbers = #tpu.dot_dimension_numbers<[1], [0], [0], [1], [0, 0, 1, 1], [], []>} : vector<64x384xf32>, vector<384x128xf32>, vector<64x128xf32> -> vector<64x128xf32>
    %25 = vector.shape_cast %24 : vector<64x128xf32> to vector<8x8x128xf32>
    %c0_20 = arith.constant 0 : index
    %c0_21 = arith.constant 0 : index
    %c0_22 = arith.constant 0 : index
    %26 = vector.load %arg13[%c0_20, %c0_21, %c0_22] : memref<8x8x128xf32, #tpu.memory_space<vmem>>, vector<8x8x128xf32>
    %27 = arith.addf %26, %25 : vector<8x8x128xf32>
    %c0_23 = arith.constant 0 : index
    %c0_24 = arith.constant 0 : index
    %c0_25 = arith.constant 0 : index
    %28 = vector.load %arg13[%c0_23, %c0_24, %c0_25] : memref<8x8x128xf32, #tpu.memory_space<vmem>>, vector<8x8x128xf32>
    tpu.vector_store %arg13[%c0_23, %c0_24, %c0_25], %27 {strides = array<i32>} : memref<8x8x128xf32, #tpu.memory_space<vmem>>, vector<8x8x128xf32>,
    %29 = vector.shape_cast %14 : vector<8x8x384xf32> to vector<64x384xf32>
    %c2 = arith.constant 2 : index
    %c0_26 = arith.constant 0 : index
    %c0_27 = arith.constant 0 : index
    %30 = vector.load %arg3[%c2, %c0_26, %c0_27] : memref<3x384x128xf32, #tpu.memory_space<vmem>>, vector<1x384x128xf32>
    %31 = vector.shape_cast %30 : vector<1x384x128xf32> to vector<384x128xf32>
    %cst_28 = arith.constant dense<0.000000e+00> : vector<64x128xf32>
    %32 = tpu.matmul %29, %31, %cst_28 {dimension_numbers = #tpu.dot_dimension_numbers<[1], [0], [0], [1], [0, 0, 1, 1], [], []>} : vector<64x384xf32>, vector<384x128xf32>, vector<64x128xf32> -> vector<64x128xf32>
    %33 = vector.shape_cast %32 : vector<64x128xf32> to vector<8x8x128xf32>
    %c0_29 = arith.constant 0 : index
    %c0_30 = arith.constant 0 : index
    %c0_31 = arith.constant 0 : index
    %34 = vector.load %arg13[%c0_29, %c0_30, %c0_31] : memref<8x8x128xf32, #tpu.memory_space<vmem>>, vector<8x8x128xf32>
    %35 = arith.addf %34, %33 : vector<8x8x128xf32>
    %c0_32 = arith.constant 0 : index
    %c0_33 = arith.constant 0 : index
    %c0_34 = arith.constant 0 : index
    %36 = vector.load %arg13[%c0_32, %c0_33, %c0_34] : memref<8x8x128xf32, #tpu.memory_space<vmem>>, vector<8x8x128xf32>
    tpu.vector_store %arg13[%c0_32, %c0_33, %c0_34], %35 {strides = array<i32>} : memref<8x8x128xf32, #tpu.memory_space<vmem>>, vector<8x8x128xf32>,
    %c0_35 = arith.constant 0 : index
    %c0_36 = arith.constant 0 : index
    %c0_37 = arith.constant 0 : index
    %37 = vector.load %arg13[%c0_35, %c0_36, %c0_37] : memref<8x8x128xf32, #tpu.memory_space<vmem>>, vector<8x8x128xf32>
    %c0_38 = arith.constant 0 : index
    %c0_39 = arith.constant 0 : index
    %38 = vector.load %arg4[%c0_38, %c0_39] : memref<1x128xf32, #tpu.memory_space<vmem>>, vector<1x128xf32>
    %39 = vector.shape_cast %38 : vector<1x128xf32> to vector<1x1x128xf32>
    %40 = vector.broadcast %39 : vector<1x1x128xf32> to vector<8x8x128xf32>
    %41 = arith.mulf %37, %40 : vector<8x8x128xf32>
    %c0_40 = arith.constant 0 : index
    %c0_41 = arith.constant 0 : index
    %42 = vector.load %arg5[%c0_40, %c0_41] : memref<1x128xf32, #tpu.memory_space<vmem>>, vector<1x128xf32>
    %43 = vector.shape_cast %42 : vector<1x128xf32> to vector<1x1x128xf32>
    %44 = vector.broadcast %43 : vector<1x1x128xf32> to vector<8x8x128xf32>
    %45 = arith.addf %41, %44 : vector<8x8x128xf32>
    %cst_42 = arith.constant 0.000000e+00 : f32
    %46 = vector.broadcast %cst_42 : f32 to vector<8x8x128xf32>
    %47 = arith.maximumf %45, %46 : vector<8x8x128xf32>
    %cst_43 = arith.constant 0.000000e+00 : f32
    %48 = vector.broadcast %cst_43 : f32 to vector<10x10x128xf32>
    %c0_44 = arith.constant 0 : index
    %c0_45 = arith.constant 0 : index
    %c0_46 = arith.constant 0 : index
    %49 = vector.load %arg14[%c0_44, %c0_45, %c0_46] : memref<10x10x128xf32, #tpu.memory_space<vmem>>, vector<10x10x128xf32>
    tpu.vector_store %arg14[%c0_44, %c0_45, %c0_46], %48 {strides = array<i32>} : memref<10x10x128xf32, #tpu.memory_space<vmem>>, vector<10x10x128xf32>,
    %c1_47 = arith.constant 1 : index
    %c1_48 = arith.constant 1 : index
    %c0_49 = arith.constant 0 : index
    %50 = vector.load %arg14[%c1_47, %c1_48, %c0_49] : memref<10x10x128xf32, #tpu.memory_space<vmem>>, vector<8x8x128xf32>
    tpu.vector_store %arg14[%c1_47, %c1_48, %c0_49], %47 {strides = array<i32>} : memref<10x10x128xf32, #tpu.memory_space<vmem>>, vector<8x8x128xf32>,
    %c0_50 = arith.constant 0 : index
    %c0_51 = arith.constant 0 : index
    %c0_52 = arith.constant 0 : index
    %51 = vector.load %arg14[%c0_50, %c0_51, %c0_52] : memref<10x10x128xf32, #tpu.memory_space<vmem>>, vector<8x10x128xf32>
    %52 = vector.extract_strided_slice %51 {offsets = [0, 0, 0], sizes = [8, 8, 128], strides = [1, 1, 1]} : vector<8x10x128xf32> to vector<8x8x128xf32>
    %53 = vector.extract_strided_slice %51 {offsets = [0, 1, 0], sizes = [8, 8, 128], strides = [1, 1, 1]} : vector<8x10x128xf32> to vector<8x8x128xf32>
    %54 = vector.extract_strided_slice %51 {offsets = [0, 2, 0], sizes = [8, 8, 128], strides = [1, 1, 1]} : vector<8x10x128xf32> to vector<8x8x128xf32>
    %55 = tpu.concatenate %52, %53, %54 in 2 : vector<8x8x128xf32>, vector<8x8x128xf32>, vector<8x8x128xf32> -> vector<8x8x384xf32>
    %c1_53 = arith.constant 1 : index
    %c0_54 = arith.constant 0 : index
    %c0_55 = arith.constant 0 : index
    %56 = vector.load %arg14[%c1_53, %c0_54, %c0_55] : memref<10x10x128xf32, #tpu.memory_space<vmem>>, vector<8x10x128xf32>
    %57 = vector.extract_strided_slice %56 {offsets = [0, 0, 0], sizes = [8, 8, 128], strides = [1, 1, 1]} : vector<8x10x128xf32> to vector<8x8x128xf32>
    %58 = vector.extract_strided_slice %56 {offsets = [0, 1, 0], sizes = [8, 8, 128], strides = [1, 1, 1]} : vector<8x10x128xf32> to vector<8x8x128xf32>
    %59 = vector.extract_strided_slice %56 {offsets = [0, 2, 0], sizes = [8, 8, 128], strides = [1, 1, 1]} : vector<8x10x128xf32> to vector<8x8x128xf32>
    %60 = tpu.concatenate %57, %58, %59 in 2 : vector<8x8x128xf32>, vector<8x8x128xf32>, vector<8x8x128xf32> -> vector<8x8x384xf32>
    %c2_56 = arith.constant 2 : index
    %c0_57 = arith.constant 0 : index
    %c0_58 = arith.constant 0 : index
    %61 = vector.load %arg14[%c2_56, %c0_57, %c0_58] : memref<10x10x128xf32, #tpu.memory_space<vmem>>, vector<8x10x128xf32>
    %62 = vector.extract_strided_slice %61 {offsets = [0, 0, 0], sizes = [8, 8, 128], strides = [1, 1, 1]} : vector<8x10x128xf32> to vector<8x8x128xf32>
    %63 = vector.extract_strided_slice %61 {offsets = [0, 1, 0], sizes = [8, 8, 128], strides = [1, 1, 1]} : vector<8x10x128xf32> to vector<8x8x128xf32>
    %64 = vector.extract_strided_slice %61 {offsets = [0, 2, 0], sizes = [8, 8, 128], strides = [1, 1, 1]} : vector<8x10x128xf32> to vector<8x8x128xf32>
    %65 = tpu.concatenate %62, %63, %64 in 2 : vector<8x8x128xf32>, vector<8x8x128xf32>, vector<8x8x128xf32> -> vector<8x8x384xf32>
    %66 = vector.shape_cast %55 : vector<8x8x384xf32> to vector<64x384xf32>
    %c0_59 = arith.constant 0 : index
    %c0_60 = arith.constant 0 : index
    %c0_61 = arith.constant 0 : index
    %67 = vector.load %arg6[%c0_59, %c0_60, %c0_61] : memref<3x384x128xf32, #tpu.memory_space<vmem>>, vector<1x384x128xf32>
    %68 = vector.shape_cast %67 : vector<1x384x128xf32> to vector<384x128xf32>
    %cst_62 = arith.constant dense<0.000000e+00> : vector<64x128xf32>
    %69 = tpu.matmul %66, %68, %cst_62 {dimension_numbers = #tpu.dot_dimension_numbers<[1], [0], [0], [1], [0, 0, 1, 1], [], []>} : vector<64x384xf32>, vector<384x128xf32>, vector<64x128xf32> -> vector<64x128xf32>
    %70 = vector.shape_cast %69 : vector<64x128xf32> to vector<8x8x128xf32>
    %c0_63 = arith.constant 0 : index
    %c0_64 = arith.constant 0 : index
    %c0_65 = arith.constant 0 : index
    %71 = vector.load %arg13[%c0_63, %c0_64, %c0_65] : memref<8x8x128xf32, #tpu.memory_space<vmem>>, vector<8x8x128xf32>
    tpu.vector_store %arg13[%c0_63, %c0_64, %c0_65], %70 {strides = array<i32>} : memref<8x8x128xf32, #tpu.memory_space<vmem>>, vector<8x8x128xf32>,
    %72 = vector.shape_cast %60 : vector<8x8x384xf32> to vector<64x384xf32>
    %c1_66 = arith.constant 1 : index
    %c0_67 = arith.constant 0 : index
    %c0_68 = arith.constant 0 : index
    %73 = vector.load %arg6[%c1_66, %c0_67, %c0_68] : memref<3x384x128xf32, #tpu.memory_space<vmem>>, vector<1x384x128xf32>
    %74 = vector.shape_cast %73 : vector<1x384x128xf32> to vector<384x128xf32>
    %cst_69 = arith.constant dense<0.000000e+00> : vector<64x128xf32>
    %75 = tpu.matmul %72, %74, %cst_69 {dimension_numbers = #tpu.dot_dimension_numbers<[1], [0], [0], [1], [0, 0, 1, 1], [], []>} : vector<64x384xf32>, vector<384x128xf32>, vector<64x128xf32> -> vector<64x128xf32>
    %76 = vector.shape_cast %75 : vector<64x128xf32> to vector<8x8x128xf32>
    %c0_70 = arith.constant 0 : index
    %c0_71 = arith.constant 0 : index
    %c0_72 = arith.constant 0 : index
    %77 = vector.load %arg13[%c0_70, %c0_71, %c0_72] : memref<8x8x128xf32, #tpu.memory_space<vmem>>, vector<8x8x128xf32>
    %78 = arith.addf %77, %76 : vector<8x8x128xf32>
    %c0_73 = arith.constant 0 : index
    %c0_74 = arith.constant 0 : index
    %c0_75 = arith.constant 0 : index
    %79 = vector.load %arg13[%c0_73, %c0_74, %c0_75] : memref<8x8x128xf32, #tpu.memory_space<vmem>>, vector<8x8x128xf32>
    tpu.vector_store %arg13[%c0_73, %c0_74, %c0_75], %78 {strides = array<i32>} : memref<8x8x128xf32, #tpu.memory_space<vmem>>, vector<8x8x128xf32>,
    %80 = vector.shape_cast %65 : vector<8x8x384xf32> to vector<64x384xf32>
    %c2_76 = arith.constant 2 : index
    %c0_77 = arith.constant 0 : index
    %c0_78 = arith.constant 0 : index
    %81 = vector.load %arg6[%c2_76, %c0_77, %c0_78] : memref<3x384x128xf32, #tpu.memory_space<vmem>>, vector<1x384x128xf32>
    %82 = vector.shape_cast %81 : vector<1x384x128xf32> to vector<384x128xf32>
    %cst_79 = arith.constant dense<0.000000e+00> : vector<64x128xf32>
    %83 = tpu.matmul %80, %82, %cst_79 {dimension_numbers = #tpu.dot_dimension_numbers<[1], [0], [0], [1], [0, 0, 1, 1], [], []>} : vector<64x384xf32>, vector<384x128xf32>, vector<64x128xf32> -> vector<64x128xf32>
    %84 = vector.shape_cast %83 : vector<64x128xf32> to vector<8x8x128xf32>
    %c0_80 = arith.constant 0 : index
    %c0_81 = arith.constant 0 : index
    %c0_82 = arith.constant 0 : index
    %85 = vector.load %arg13[%c0_80, %c0_81, %c0_82] : memref<8x8x128xf32, #tpu.memory_space<vmem>>, vector<8x8x128xf32>
    %86 = arith.addf %85, %84 : vector<8x8x128xf32>
    %c0_83 = arith.constant 0 : index
    %c0_84 = arith.constant 0 : index
    %c0_85 = arith.constant 0 : index
    %87 = vector.load %arg13[%c0_83, %c0_84, %c0_85] : memref<8x8x128xf32, #tpu.memory_space<vmem>>, vector<8x8x128xf32>
    tpu.vector_store %arg13[%c0_83, %c0_84, %c0_85], %86 {strides = array<i32>} : memref<8x8x128xf32, #tpu.memory_space<vmem>>, vector<8x8x128xf32>,
    %c0_86 = arith.constant 0 : index
    %c0_87 = arith.constant 0 : index
    %c0_88 = arith.constant 0 : index
    %88 = vector.load %arg13[%c0_86, %c0_87, %c0_88] : memref<8x8x128xf32, #tpu.memory_space<vmem>>, vector<8x8x128xf32>
    %c0_89 = arith.constant 0 : index
    %c0_90 = arith.constant 0 : index
    %89 = vector.load %arg7[%c0_89, %c0_90] : memref<1x128xf32, #tpu.memory_space<vmem>>, vector<1x128xf32>
    %90 = vector.shape_cast %89 : vector<1x128xf32> to vector<1x1x128xf32>
    %91 = vector.broadcast %90 : vector<1x1x128xf32> to vector<8x8x128xf32>
    %92 = arith.mulf %88, %91 : vector<8x8x128xf32>
    %c0_91 = arith.constant 0 : index
    %c0_92 = arith.constant 0 : index
    %93 = vector.load %arg8[%c0_91, %c0_92] : memref<1x128xf32, #tpu.memory_space<vmem>>, vector<1x128xf32>
    %94 = vector.shape_cast %93 : vector<1x128xf32> to vector<1x1x128xf32>
    %95 = vector.broadcast %94 : vector<1x1x128xf32> to vector<8x8x128xf32>
    %96 = arith.addf %92, %95 : vector<8x8x128xf32>
    %c0_93 = arith.constant 0 : index
    %c0_94 = arith.constant 0 : index
    %c0_95 = arith.constant 0 : index
    %c128 = arith.constant 128 : index
    %97 = vector.load %arg2[%c0_93, %c0_94, %c0_95, %c128] : memref<1x9x9x256xf32, #tpu.memory_space<vmem>>, vector<1x8x8x128xf32>
    %98 = vector.shape_cast %97 : vector<1x8x8x128xf32> to vector<8x8x128xf32>
    %99 = vector.shape_cast %98 : vector<8x8x128xf32> to vector<64x128xf32>
    %c0_96 = arith.constant 0 : index
    %c0_97 = arith.constant 0 : index
    %100 = vector.load %arg9[%c0_96, %c0_97] : memref<128x128xf32, #tpu.memory_space<vmem>>, vector<128x128xf32>
    %cst_98 = arith.constant dense<0.000000e+00> : vector<64x128xf32>
    %101 = tpu.matmul %99, %100, %cst_98 {dimension_numbers = #tpu.dot_dimension_numbers<[1], [0], [0], [1], [0, 0, 1, 1], [], []>} : vector<64x128xf32>, vector<128x128xf32>, vector<64x128xf32> -> vector<64x128xf32>
    %102 = vector.shape_cast %101 : vector<64x128xf32> to vector<8x8x128xf32>
    %c0_99 = arith.constant 0 : index
    %c0_100 = arith.constant 0 : index
    %103 = vector.load %arg10[%c0_99, %c0_100] : memref<1x128xf32, #tpu.memory_space<vmem>>, vector<1x128xf32>
    %104 = vector.shape_cast %103 : vector<1x128xf32> to vector<1x1x128xf32>
    %105 = vector.broadcast %104 : vector<1x1x128xf32> to vector<8x8x128xf32>
    %106 = arith.mulf %102, %105 : vector<8x8x128xf32>
    %c0_101 = arith.constant 0 : index
    %c0_102 = arith.constant 0 : index
    %107 = vector.load %arg11[%c0_101, %c0_102] : memref<1x128xf32, #tpu.memory_space<vmem>>, vector<1x128xf32>
    %108 = vector.shape_cast %107 : vector<1x128xf32> to vector<1x1x128xf32>
    %109 = vector.broadcast %108 : vector<1x1x128xf32> to vector<8x8x128xf32>
    %110 = arith.addf %106, %109 : vector<8x8x128xf32>
    %111 = arith.addf %96, %110 : vector<8x8x128xf32>
    %cst_103 = arith.constant 0.000000e+00 : f32
    %112 = vector.broadcast %cst_103 : f32 to vector<8x8x128xf32>
    %113 = arith.maximumf %111, %112 : vector<8x8x128xf32>
    %c0_104 = arith.constant 0 : index
    %c0_105 = arith.constant 0 : index
    %c0_106 = arith.constant 0 : index
    %c0_107 = arith.constant 0 : index
    %114 = vector.load %arg12[%c0_104, %c0_105, %c0_106, %c0_107] : memref<1x8x8x128xf32, #tpu.memory_space<vmem>>, vector<1x8x8x128xf32>
    %115 = vector.shape_cast %114 : vector<1x8x8x128xf32> to vector<8x8x128xf32>
    %116 = vector.shape_cast %113 : vector<8x8x128xf32> to vector<1x8x8x128xf32>
    tpu.vector_store %arg12[%c0_104, %c0_105, %c0_106, %c0_107], %116 {strides = array<i32>} : memref<1x8x8x128xf32, #tpu.memory_space<vmem>>, vector<1x8x8x128xf32>,
    return
  }
  func.func @transform_0(%arg0: i32) -> (i32, i32, i32, i32) {
    %c0_i32 = arith.constant 0 : i32
    %c0_i32_0 = arith.constant 0 : i32
    %c0_i32_1 = arith.constant 0 : i32
    %c0_i32_2 = arith.constant 0 : i32
    return %arg0, %c0_i32, %c0_i32_0, %c0_i32_1 : i32, i32, i32, i32
  }
  func.func @transform_1(%arg0: i32) -> (i32, i32, i32, i32) {
    %c0_i32 = arith.constant 0 : i32
    %c0_i32_0 = arith.constant 0 : i32
    %c0_i32_1 = arith.constant 0 : i32
    %c0_i32_2 = arith.constant 0 : i32
    return %arg0, %c0_i32, %c0_i32_0, %c0_i32_1 : i32, i32, i32, i32
  }
  func.func @transform_2(%arg0: i32) -> (i32, i32, i32) {
    %c0_i32 = arith.constant 0 : i32
    %c0_i32_0 = arith.constant 0 : i32
    %c0_i32_1 = arith.constant 0 : i32
    %c0_i32_2 = arith.constant 0 : i32
    return %c0_i32, %c0_i32_0, %c0_i32_1 : i32, i32, i32
  }
  func.func @transform_3(%arg0: i32) -> (i32, i32) {
    %c0_i32 = arith.constant 0 : i32
    %c0_i32_0 = arith.constant 0 : i32
    %c0_i32_1 = arith.constant 0 : i32
    return %c0_i32, %c0_i32_0 : i32, i32
  }
  func.func @transform_4(%arg0: i32) -> (i32, i32) {
    %c0_i32 = arith.constant 0 : i32
    %c0_i32_0 = arith.constant 0 : i32
    %c0_i32_1 = arith.constant 0 : i32
    return %c0_i32, %c0_i32_0 : i32, i32
  }
  func.func @transform_5(%arg0: i32) -> (i32, i32, i32) {
    %c0_i32 = arith.constant 0 : i32
    %c0_i32_0 = arith.constant 0 : i32
    %c0_i32_1 = arith.constant 0 : i32
    %c0_i32_2 = arith.constant 0 : i32
    return %c0_i32, %c0_i32_0, %c0_i32_1 : i32, i32, i32
  }
  func.func @transform_6(%arg0: i32) -> (i32, i32) {
    %c0_i32 = arith.constant 0 : i32
    %c0_i32_0 = arith.constant 0 : i32
    %c0_i32_1 = arith.constant 0 : i32
    return %c0_i32, %c0_i32_0 : i32, i32
  }
  func.func @transform_7(%arg0: i32) -> (i32, i32) {
    %c0_i32 = arith.constant 0 : i32
    %c0_i32_0 = arith.constant 0 : i32
    %c0_i32_1 = arith.constant 0 : i32
    return %c0_i32, %c0_i32_0 : i32, i32
  }
  func.func @transform_8(%arg0: i32) -> (i32, i32) {
    %c0_i32 = arith.constant 0 : i32
    %c0_i32_0 = arith.constant 0 : i32
    %c0_i32_1 = arith.constant 0 : i32
    return %c0_i32, %c0_i32_0 : i32, i32
  }
  func.func @transform_9(%arg0: i32) -> (i32, i32) {
    %c0_i32 = arith.constant 0 : i32
    %c0_i32_0 = arith.constant 0 : i32
    %c0_i32_1 = arith.constant 0 : i32
    return %c0_i32, %c0_i32_0 : i32, i32
  }
  func.func @transform_10(%arg0: i32) -> (i32, i32) {
    %c0_i32 = arith.constant 0 : i32
    %c0_i32_0 = arith.constant 0 : i32
    %c0_i32_1 = arith.constant 0 : i32
    return %c0_i32, %c0_i32_0 : i32, i32
  }
  func.func @transform_11(%arg0: i32) -> (i32, i32, i32, i32) {
    %c0_i32 = arith.constant 0 : i32
    %c0_i32_0 = arith.constant 0 : i32
    %c0_i32_1 = arith.constant 0 : i32
    %c0_i32_2 = arith.constant 0 : i32
    return %arg0, %c0_i32, %c0_i32_0, %c0_i32_1 : i32, i32, i32, i32
  }
}

</mosaic_0001>

<llo_original>
// kernel: tpu_custom_call.1
$region0: #{tpu_custom_call.1}
  #allocation0 [shape = 'u32[]', space=smem, size = 0x4, offset = 0x4, fixed_abs, tag = 'smem constant byte address 0x4 - core index']
  #allocation1 [shape = 'u32[144,128]{1,0:T(1,128)}', space=vmem, size = 0x12000, scoped, tag = 'internal scratch']
  #allocation2 [shape = 'f32[8,8,128]{2,1,0:T(8,128)}', space=vmem, size = 0x8000, scoped, tag = 'scratch operand']
  #allocation3 [shape = 'f32[10,10,128]{2,1,0:T(8,128)}', space=vmem, size = 0x14000, scoped, tag = 'scratch operand']
  %s0 = inlined_call_operand.vmem [shape: f32[2,9,9,256], index: 0, kind: input, shape index: {}]
  %s1 = inlined_call_operand.vmem [shape: f32[2,9,9,256], index: 1, kind: input, shape index: {}]
  %s2 = inlined_call_operand.vmem [shape: f32[3,384,128], index: 2, kind: input, shape index: {}]
  %s3 = inlined_call_operand.vmem [shape: f32[1,128], index: 3, kind: input, shape index: {}]
  %s4 = inlined_call_operand.vmem [shape: f32[1,128], index: 4, kind: input, shape index: {}]
  %s5 = inlined_call_operand.hbm [shape: f32[3,384,128], index: 5, kind: input, shape index: {}]
  %s6 = inlined_call_operand.vmem [shape: f32[1,128], index: 6, kind: input, shape index: {}]
  %s7 = inlined_call_operand.vmem [shape: f32[1,128], index: 7, kind: input, shape index: {}]
  %s8 = inlined_call_operand.vmem [shape: f32[128,128], index: 8, kind: input, shape index: {}]
  %s9 = inlined_call_operand.vmem [shape: f32[1,128], index: 9, kind: input, shape index: {}]
  %s10 = inlined_call_operand.vmem [shape: f32[1,128], index: 10, kind: input, shape index: {}]
  %s11 = inlined_call_operand.hbm [shape: f32[2,8,8,128], index: 11, kind: output, shape index: {}]
  %s12 = sld [smem:[#allocation0]]
  $region81: #{tpu_custom_call.1} parent=0
    _
  %s14 = ssub.s32 1, %s12
  %s15 = scalar_select 0, %s14, %s12
  $region1: #{tpu_custom_call.1} parent=0
    #allocation4 [shape = 'u8[589824]{0}', space=vmem, size = 0x90000, scoped, tag = 'input window, operand 5, single buffered']
    #allocation5 [shape = 's32[2]{0}', space=sflag, size = 0x8, scoped, tag = 'scoped memory for tpu_custom_call.1']
    #allocation6 [shape = 's32[2]{0}', space=sflag, size = 0x8, scoped, tag = 'scoped memory for tpu_custom_call.1']
    #allocation7 [shape = 'u8[65536]{0}', space=vmem, size = 0x10000, scoped, tag = 'output window, operand 0']
    %16 = vsyncpa [#allocation5], 0
    %17 = vsyncpa [#allocation6], 0
    %s18 = scalar_lea.sflag [#allocation6], 1
    %19 = vsyncpa %s18, 0
    loop: start=0, step=1, limit=4
    $region2: #{tpu_custom_call.1} parent=1 // loop_pre_header
      _
    $region3: #{tpu_custom_call.1} parent=1 // loop_header
      %s21 = sphi 0, %s25
      %p22 = scmp.ge.s32.totalorder %s21, 4
      %s31 = sphi 0, %s33
      %s34 = sphi 0, %s31
      %s35 = sphi 0, %s34
      %s51 = sphi 0, %s35
      %s57 = sphi 0, %s59
      %s60 = sphi 0, %s57
      %s61 = sphi 0, %s60
      %s77 = sphi 0, %s61
      %s81 = sphi 0, %s81
      %s83 = sphi 0, %s81
      %s84 = sphi 0, %s83
      %s98 = sphi 0, %s84
      %s102 = sphi 0, %s102
      %s104 = sphi 0, %s102
      %s105 = sphi 0, %s104
      %s119 = sphi 0, %s105
      %s123 = sphi 0, %s123
      %s125 = sphi 0, %s123
      %s126 = sphi 0, %s125
      %s140 = sphi 0, %s126
      %s144 = sphi 0, %s144
      %s146 = sphi 0, %s144
      %s147 = sphi 0, %s146
      %s161 = sphi 0, %s147
      %s165 = sphi 0, %s165
      %s167 = sphi 0, %s165
      %s168 = sphi 0, %s167
      %s182 = sphi 0, %s168
      %s186 = sphi 0, %s186
      %s188 = sphi 0, %s186
      %s189 = sphi 0, %s188
      %s203 = sphi 0, %s189
      %s207 = sphi 0, %s207
      %s209 = sphi 0, %s207
      %s210 = sphi 0, %s209
      %s224 = sphi 0, %s210
      %s228 = sphi 0, %s228
      %s230 = sphi 0, %s228
      %s231 = sphi 0, %s230
      %s245 = sphi 0, %s231
      %s249 = sphi 0, %s249
      %s251 = sphi 0, %s249
      %s252 = sphi 0, %s251
      %s266 = sphi 0, %s252
      %s272 = sphi 0, %s274
      %s275 = sphi 0, %s272
      %s276 = sphi 0, %s275
      %s292 = sphi 0, %s276
    $region4: #{tpu_custom_call.1} parent=1 // loop_header_branch
      %24 = sbr.rel (%p22) target = $region8
    $region5: #{tpu_custom_call.1} parent=1 // loop_body
      %s26 = ssub.s32 %s21, 1
      %s27 = ssub.s32 %s21, 2
      %s28 = sadd.s32 %s21, 1
      %s29 = ssub.s32 %s21, %s28
      %p30 = scmp.eq.s32.totalorder %s29, 0
      %s32 = sadd.s32 %s31, 1
      %s33 = scalar_select %p30, %s31, %s32
      %p36 = pneg %p30
      %p37 = scmp.eq.s32.totalorder %s21, 1
      %p38 = por %p36, %p37
      %p39 = scmp.ne.s32.totalorder %s31, %s34
      %p40 = scmp.eq.s32.totalorder %s21, 0
      %p41 = por %p39, %p40
      %p42 = scmp.ne.s32.totalorder %s31, %s34
      %p43 = scmp.eq.s32.totalorder %s26, 1
      %p44 = por %p42, %p43
      %p45 = scmp.ne.s32.totalorder %s34, %s35
      %p46 = scmp.eq.s32.totalorder %s26, 0
      %p47 = por %p45, %p46
      %p48 = scmp.ne.s32.totalorder %s34, %s35
      %p49 = scmp.eq.s32.totalorder %s27, 1
      %p50 = por %p48, %p49
      %p52 = scmp.ne.s32.totalorder %s35, %s51
      %p53 = scmp.eq.s32.totalorder %s27, 0
      %p54 = por %p52, %p53
      %s55 = ssub.s32 %s21, %s28
      %p56 = scmp.eq.s32.totalorder %s55, 0
      %s58 = sadd.s32 %s57, 1
      %s59 = scalar_select %p56, %s57, %s58
      %p62 = pneg %p56
      %p63 = scmp.eq.s32.totalorder %s21, 1
      %p64 = por %p62, %p63
      %p65 = scmp.ne.s32.totalorder %s57, %s60
      %p66 = scmp.eq.s32.totalorder %s21, 0
      %p67 = por %p65, %p66
      %p68 = scmp.ne.s32.totalorder %s57, %s60
      %p69 = scmp.eq.s32.totalorder %s26, 1
      %p70 = por %p68, %p69
      %p71 = scmp.ne.s32.totalorder %s60, %s61
      %p72 = scmp.eq.s32.totalorder %s26, 0
      %p73 = por %p71, %p72
      %p74 = scmp.ne.s32.totalorder %s60, %s61
      %p75 = scmp.eq.s32.totalorder %s27, 1
      %p76 = por %p74, %p75
      %p78 = scmp.ne.s32.totalorder %s61, %s77
      %p79 = scmp.eq.s32.totalorder %s27, 0
      %p80 = por %p78, %p79
      %s82 = sadd.s32 %s81, 1
      %p85 = scmp.eq.s32.totalorder %s21, 1
      %p86 = scmp.ne.s32.totalorder %s81, %s83
      %p87 = scmp.eq.s32.totalorder %s21, 0
      %p88 = por %p86, %p87
      %p89 = scmp.ne.s32.totalorder %s81, %s83
      %p90 = scmp.eq.s32.totalorder %s26, 1
      %p91 = por %p89, %p90
      %p92 = scmp.ne.s32.totalorder %s83, %s84
      %p93 = scmp.eq.s32.totalorder %s26, 0
      %p94 = por %p92, %p93
      %p95 = scmp.ne.s32.totalorder %s83, %s84
      %p96 = scmp.eq.s32.totalorder %s27, 1
      %p97 = por %p95, %p96
      %p99 = scmp.ne.s32.totalorder %s84, %s98
      %p100 = scmp.eq.s32.totalorder %s27, 0
      %p101 = por %p99, %p100
      %s103 = sadd.s32 %s102, 1
      %p106 = scmp.eq.s32.totalorder %s21, 1
      %p107 = scmp.ne.s32.totalorder %s102, %s104
      %p108 = scmp.eq.s32.totalorder %s21, 0
      %p109 = por %p107, %p108
      %p110 = scmp.ne.s32.totalorder %s102, %s104
      %p111 = scmp.eq.s32.totalorder %s26, 1
      %p112 = por %p110, %p111
      %p113 = scmp.ne.s32.totalorder %s104, %s105
      %p114 = scmp.eq.s32.totalorder %s26, 0
      %p115 = por %p113, %p114
      %p116 = scmp.ne.s32.totalorder %s104, %s105
      %p117 = scmp.eq.s32.totalorder %s27, 1
      %p118 = por %p116, %p117
      %p120 = scmp.ne.s32.totalorder %s105, %s119
      %p121 = scmp.eq.s32.totalorder %s27, 0
      %p122 = por %p120, %p121
      %s124 = sadd.s32 %s123, 1
      %p127 = scmp.eq.s32.totalorder %s21, 1
      %p128 = scmp.ne.s32.totalorder %s123, %s125
      %p129 = scmp.eq.s32.totalorder %s21, 0
      %p130 = por %p128, %p129
      %p131 = scmp.ne.s32.totalorder %s123, %s125
      %p132 = scmp.eq.s32.totalorder %s26, 1
      %p133 = por %p131, %p132
      %p134 = scmp.ne.s32.totalorder %s125, %s126
      %p135 = scmp.eq.s32.totalorder %s26, 0
      %p136 = por %p134, %p135
      %p137 = scmp.ne.s32.totalorder %s125, %s126
      %p138 = scmp.eq.s32.totalorder %s27, 1
      %p139 = por %p137, %p138
      %p141 = scmp.ne.s32.totalorder %s126, %s140
      %p142 = scmp.eq.s32.totalorder %s27, 0
      %p143 = por %p141, %p142
      %s145 = sadd.s32 %s144, 1
      %p148 = scmp.eq.s32.totalorder %s21, 1
      %p149 = scmp.ne.s32.totalorder %s144, %s146
      %p150 = scmp.eq.s32.totalorder %s21, 0
      %p151 = por %p149, %p150
      %p152 = scmp.ne.s32.totalorder %s144, %s146
      %p153 = scmp.eq.s32.totalorder %s26, 1
      %p154 = por %p152, %p153
      %p155 = scmp.ne.s32.totalorder %s146, %s147
      %p156 = scmp.eq.s32.totalorder %s26, 0
      %p157 = por %p155, %p156
      %p158 = scmp.ne.s32.totalorder %s146, %s147
      %p159 = scmp.eq.s32.totalorder %s27, 1
      %p160 = por %p158, %p159
      %p162 = scmp.ne.s32.totalorder %s147, %s161
      %p163 = scmp.eq.s32.totalorder %s27, 0
      %p164 = por %p162, %p163
      %s166 = sadd.s32 %s165, 1
      %p169 = scmp.eq.s32.totalorder %s21, 1
      %p170 = scmp.ne.s32.totalorder %s165, %s167
      %p171 = scmp.eq.s32.totalorder %s21, 0
      %p172 = por %p170, %p171
      %p173 = scmp.ne.s32.totalorder %s165, %s167
      %p174 = scmp.eq.s32.totalorder %s26, 1
      %p175 = por %p173, %p174
      %p176 = scmp.ne.s32.totalorder %s167, %s168
      %p177 = scmp.eq.s32.totalorder %s26, 0
      %p178 = por %p176, %p177
      %p179 = scmp.ne.s32.totalorder %s167, %s168
      %p180 = scmp.eq.s32.totalorder %s27, 1
      %p181 = por %p179, %p180
      %p183 = scmp.ne.s32.totalorder %s168, %s182
      %p184 = scmp.eq.s32.totalorder %s27, 0
      %p185 = por %p183, %p184
      %s187 = sadd.s32 %s186, 1
      %p190 = scmp.eq.s32.totalorder %s21, 1
      %p191 = scmp.ne.s32.totalorder %s186, %s188
      %p192 = scmp.eq.s32.totalorder %s21, 0
      %p193 = por %p191, %p192
      %p194 = scmp.ne.s32.totalorder %s186, %s188
      %p195 = scmp.eq.s32.totalorder %s26, 1
      %p196 = por %p194, %p195
      %p197 = scmp.ne.s32.totalorder %s188, %s189
      %p198 = scmp.eq.s32.totalorder %s26, 0
      %p199 = por %p197, %p198
      %p200 = scmp.ne.s32.totalorder %s188, %s189
      %p201 = scmp.eq.s32.totalorder %s27, 1
      %p202 = por %p200, %p201
      %p204 = scmp.ne.s32.totalorder %s189, %s203
      %p205 = scmp.eq.s32.totalorder %s27, 0
      %p206 = por %p204, %p205
      %s208 = sadd.s32 %s207, 1
      %p211 = scmp.eq.s32.totalorder %s21, 1
      %p212 = scmp.ne.s32.totalorder %s207, %s209
      %p213 = scmp.eq.s32.totalorder %s21, 0
      %p214 = por %p212, %p213
      %p215 = scmp.ne.s32.totalorder %s207, %s209
      %p216 = scmp.eq.s32.totalorder %s26, 1
      %p217 = por %p215, %p216
      %p218 = scmp.ne.s32.totalorder %s209, %s210
      %p219 = scmp.eq.s32.totalorder %s26, 0
      %p220 = por %p218, %p219
      %p221 = scmp.ne.s32.totalorder %s209, %s210
      %p222 = scmp.eq.s32.totalorder %s27, 1
      %p223 = por %p221, %p222
      %p225 = scmp.ne.s32.totalorder %s210, %s224
      %p226 = scmp.eq.s32.totalorder %s27, 0
      %p227 = por %p225, %p226
      %s229 = sadd.s32 %s228, 1
      %p232 = scmp.eq.s32.totalorder %s21, 1
      %p233 = scmp.ne.s32.totalorder %s228, %s230
      %p234 = scmp.eq.s32.totalorder %s21, 0
      %p235 = por %p233, %p234
      %p236 = scmp.ne.s32.totalorder %s228, %s230
      %p237 = scmp.eq.s32.totalorder %s26, 1
      %p238 = por %p236, %p237
      %p239 = scmp.ne.s32.totalorder %s230, %s231
      %p240 = scmp.eq.s32.totalorder %s26, 0
      %p241 = por %p239, %p240
      %p242 = scmp.ne.s32.totalorder %s230, %s231
      %p243 = scmp.eq.s32.totalorder %s27, 1
      %p244 = por %p242, %p243
      %p246 = scmp.ne.s32.totalorder %s231, %s245
      %p247 = scmp.eq.s32.totalorder %s27, 0
      %p248 = por %p246, %p247
      %s250 = sadd.s32 %s249, 1
      %p253 = scmp.eq.s32.totalorder %s21, 1
      %p254 = scmp.ne.s32.totalorder %s249, %s251
      %p255 = scmp.eq.s32.totalorder %s21, 0
      %p256 = por %p254, %p255
      %p257 = scmp.ne.s32.totalorder %s249, %s251
      %p258 = scmp.eq.s32.totalorder %s26, 1
      %p259 = por %p257, %p258
      %p260 = scmp.ne.s32.totalorder %s251, %s252
      %p261 = scmp.eq.s32.totalorder %s26, 0
      %p262 = por %p260, %p261
      %p263 = scmp.ne.s32.totalorder %s251, %s252
      %p264 = scmp.eq.s32.totalorder %s27, 1
      %p265 = por %p263, %p264
      %p267 = scmp.ne.s32.totalorder %s252, %s266
      %p268 = scmp.eq.s32.totalorder %s27, 0
      %p269 = por %p267, %p268
      %s270 = ssub.s32 %s21, %s28
      %p271 = scmp.eq.s32.totalorder %s270, 0
      %s273 = sadd.s32 %s272, 1
      %s274 = scalar_select %p271, %s272, %s273
      %p277 = pneg %p271
      %p278 = scmp.eq.s32.totalorder %s21, 1
      %p279 = por %p277, %p278
      %p280 = scmp.ne.s32.totalorder %s272, %s275
      %p281 = scmp.eq.s32.totalorder %s21, 0
      %p282 = por %p280, %p281
      %p283 = scmp.ne.s32.totalorder %s272, %s275
      %p284 = scmp.eq.s32.totalorder %s26, 1
      %p285 = por %p283, %p284
      %p286 = scmp.ne.s32.totalorder %s275, %s276
      %p287 = scmp.eq.s32.totalorder %s26, 0
      %p288 = por %p286, %p287
      %p289 = scmp.ne.s32.totalorder %s275, %s276
      %p290 = scmp.eq.s32.totalorder %s27, 1
      %p291 = por %p289, %p290
      %p293 = scmp.ne.s32.totalorder %s276, %s292
      %p294 = scmp.eq.s32.totalorder %s27, 0
      %p295 = por %p293, %p294
      %p296 = scmp.le.s32.totalorder 1, %s21
      %p297 = scmp.lt.s32.totalorder %s21, 3
      %p298 = pnand %p296, %p297
      %p299 = pneg %p298
      // Predicated region
      $region9: #{tpu_custom_call.1} parent=5 // pred_check
        _
      $region10: #{tpu_custom_call.1} parent=5 // pred_check_branch
        %301 = sbr.rel (%p298) target = $region12
      $region11: #{tpu_custom_call.1} parent=5 // pred_region
        %s302 = ssub.s32 %s21, 1
        // Predicated region
        $region13: #{tpu_custom_call.1} parent=11 // pred_check
          %p303 = pneg %p94
        $region14: #{tpu_custom_call.1} parent=11 // pred_check_branch
          %305 = sbr.rel (%p303) target = $region16
        $region15: #{tpu_custom_call.1} parent=11 // pred_region
          _
        $region16: #{tpu_custom_call.1} parent=11 // pred_fallthru
          _
        // Predicated region
        $region17: #{tpu_custom_call.1} parent=11 // pred_check
          %p306 = pneg %p115
        $region18: #{tpu_custom_call.1} parent=11 // pred_check_branch
          %308 = sbr.rel (%p306) target = $region20
        $region19: #{tpu_custom_call.1} parent=11 // pred_region
          _
        $region20: #{tpu_custom_call.1} parent=11 // pred_fallthru
          _
        // Predicated region
        $region21: #{tpu_custom_call.1} parent=11 // pred_check
          %p309 = pneg %p136
        $region22: #{tpu_custom_call.1} parent=11 // pred_check_branch
          %311 = sbr.rel (%p309) target = $region24
        $region23: #{tpu_custom_call.1} parent=11 // pred_region
          _
        $region24: #{tpu_custom_call.1} parent=11 // pred_fallthru
          _
        // Predicated region
        $region25: #{tpu_custom_call.1} parent=11 // pred_check
          %p312 = pneg %p157
        $region26: #{tpu_custom_call.1} parent=11 // pred_check_branch
          %314 = sbr.rel (%p312) target = $region28
        $region27: #{tpu_custom_call.1} parent=11 // pred_region
          %s316 = ssub.s32 18432, 18432
          %317 = vsyncadd [#allocation5], %s316
          %s318 = sshll.u32 [#allocation4], 4
          %s319 = int_to_ptr.vmem [resolvable:$true] %s318
          %324 = dma.hbm_to_vmem [thread:$0]  %s5, 18432, %s319, [#allocation5], 128, 128, 8
        $region28: #{tpu_custom_call.1} parent=11 // pred_fallthru
          _
        // Predicated region
        $region29: #{tpu_custom_call.1} parent=11 // pred_check
          %p325 = pneg %p178
        $region30: #{tpu_custom_call.1} parent=11 // pred_check_branch
          %327 = sbr.rel (%p325) target = $region32
        $region31: #{tpu_custom_call.1} parent=11 // pred_region
          _
        $region32: #{tpu_custom_call.1} parent=11 // pred_fallthru
          _
        // Predicated region
        $region33: #{tpu_custom_call.1} parent=11 // pred_check
          %p328 = pneg %p199
        $region34: #{tpu_custom_call.1} parent=11 // pred_check_branch
          %330 = sbr.rel (%p328) target = $region36
        $region35: #{tpu_custom_call.1} parent=11 // pred_region
          _
        $region36: #{tpu_custom_call.1} parent=11 // pred_fallthru
          _
        // Predicated region
        $region37: #{tpu_custom_call.1} parent=11 // pred_check
          %p331 = pneg %p220
        $region38: #{tpu_custom_call.1} parent=11 // pred_check_branch
          %333 = sbr.rel (%p331) target = $region40
        $region39: #{tpu_custom_call.1} parent=11 // pred_region
          _
        $region40: #{tpu_custom_call.1} parent=11 // pred_fallthru
          _
        // Predicated region
        $region41: #{tpu_custom_call.1} parent=11 // pred_check
          %p334 = pneg %p241
        $region42: #{tpu_custom_call.1} parent=11 // pred_check_branch
          %336 = sbr.rel (%p334) target = $region44
        $region43: #{tpu_custom_call.1} parent=11 // pred_region
          _
        $region44: #{tpu_custom_call.1} parent=11 // pred_fallthru
          _
        // Predicated region
        $region45: #{tpu_custom_call.1} parent=11 // pred_check
          %p337 = pneg %p262
        $region46: #{tpu_custom_call.1} parent=11 // pred_check_branch
          %339 = sbr.rel (%p337) target = $region48
        $region47: #{tpu_custom_call.1} parent=11 // pred_region
          _
        $region48: #{tpu_custom_call.1} parent=11 // pred_fallthru
          _
      $region12: #{tpu_custom_call.1} parent=5 // pred_fallthru
        _
      %p340 = scmp.lt.s32.totalorder %s21, 2
      // Predicated region
      $region49: #{tpu_custom_call.1} parent=5 // pred_check
        %p341 = pneg %p340
      $region50: #{tpu_custom_call.1} parent=5 // pred_check_branch
        %343 = sbr.rel (%p341) target = $region52
      $region51: #{tpu_custom_call.1} parent=5 // pred_region
        // Predicated region
        $region53: #{tpu_custom_call.1} parent=51 // pred_check
          %p344 = pneg %p41
        $region54: #{tpu_custom_call.1} parent=51 // pred_check_branch
          %346 = sbr.rel (%p344) target = $region56
        $region55: #{tpu_custom_call.1} parent=51 // pred_region
          %p347 = scmp.lt.s32.totalorder %s21, 1
          %s348 = scalar_select %p347, %s21, 1
          %s349 = smul.addr %s348, 36
          %s350 = smul.addr %s349, 8
          %s351 = scalar_lea.vmem %s0, %s350
        $region56: #{tpu_custom_call.1} parent=51 // pred_fallthru
          _
        // Predicated region
        $region57: #{tpu_custom_call.1} parent=51 // pred_check
          %p352 = pneg %p67
        $region58: #{tpu_custom_call.1} parent=51 // pred_check_branch
          %354 = sbr.rel (%p352) target = $region60
        $region59: #{tpu_custom_call.1} parent=51 // pred_region
          %p355 = scmp.lt.s32.totalorder %s21, 1
          %s356 = scalar_select %p355, %s21, 1
          %s357 = smul.addr %s356, 36
          %s358 = smul.addr %s357, 8
          %s359 = scalar_lea.vmem %s1, %s358
        $region60: #{tpu_custom_call.1} parent=51 // pred_fallthru
          _
      $region52: #{tpu_custom_call.1} parent=5 // pred_fallthru
        _
      %p360 = scmp.le.s32.totalorder 1, %s21
      %p361 = scmp.lt.s32.totalorder %s21, 3
      %p362 = pnand %p360, %p361
      %p363 = pneg %p362
      // Predicated region
      $region61: #{tpu_custom_call.1} parent=5 // pred_check
        _
      $region62: #{tpu_custom_call.1} parent=5 // pred_check_branch
        %365 = sbr.rel (%p362) target = $region64
      $region63: #{tpu_custom_call.1} parent=5 // pred_region
        %s366 = ssub.s32 %s21, 1
        // Predicated region
        $region65: #{tpu_custom_call.1} parent=63 // pred_check
          %p367 = pneg %p157
        $region66: #{tpu_custom_call.1} parent=63 // pred_check_branch
          %369 = sbr.rel (%p367) target = $region68
        $region67: #{tpu_custom_call.1} parent=63 // pred_region
          %370 = dma.done [#allocation5], 18432
        $region68: #{tpu_custom_call.1} parent=63 // pred_fallthru
          _
        %p371 = scmp.lt.s32.totalorder %s26, 1
        %s372 = scalar_select %p371, %s26, 1
        %s373 = smul.addr %s372, 36
        %s374 = smul.addr %s373, 8
        %s375 = scalar_lea.vmem %s0, %s374
        %p376 = pneg %p47
        %p377 = pneg %p44
        %p378 = scmp.lt.s32.totalorder %s26, 1
        %s379 = scalar_select %p378, %s26, 1
        %s380 = smul.addr %s379, 36
        %s381 = smul.addr %s380, 8
        %s382 = scalar_lea.vmem %s1, %s381
        %p383 = pneg %p73
        %p384 = pneg %p70
        %p385 = pneg %p94
        %p386 = pneg %p91
        %p387 = pneg %p115
        %p388 = pneg %p112
        %p389 = pneg %p136
        %p390 = pneg %p133
        %p391 = pneg %p157
        %p392 = pneg %p154
        %p393 = pneg %p178
        %p394 = pneg %p175
        %p395 = pneg %p199
        %p396 = pneg %p196
        %p397 = pneg %p220
        %p398 = pneg %p217
        %p399 = pneg %p241
        %p400 = pneg %p238
        %p401 = pneg %p262
        %p402 = pneg %p259
        %p403 = pneg %p288
        %p404 = pneg %p285
        %s405 = sand.u32 %s275, 1
        %s406 = scalar_lea.sflag [#allocation6], %s405
        %s407 = sand.u32 %s275, 1
        %s408 = smul.addr %s407, 64
        %s409 = scalar_lea.vmem [#allocation7], %s408
        %p410 = scmp.lt.s32.totalorder %s26, 1
        %s411 = scalar_select %p410, %s26, 1
        %s412 = smul.addr %s411, 36
        %s413 = smul.addr %s412, 8
        %s414 = scalar_lea.vmem %s0, %s413
        %p415 = scmp.lt.s32.totalorder %s26, 1
        %s416 = scalar_select %p415, %s26, 1
        %s417 = smul.addr %s416, 36
        %s418 = smul.addr %s417, 8
        %s419 = scalar_lea.vmem %s1, %s418
        %v420 = vld [vmem:[%s414] sm:$0xff]
        %v421 = vld [vmem:[%s414 + $0x8] sm:$0xff]
        %v422 = vld [vmem:[%s414 + $0x10] sm:$0x1]
        %v423 = vld [vmem:[%s414 + $0x20] sm:$0xff]
        %v424 = vld [vmem:[%s414 + $0x28] sm:$0xff]
        %v425 = vld [vmem:[%s414 + $0x30] sm:$0x1]
        %v426 = vld [vmem:[%s414 + $0x40] sm:$0xff]
        %v427 = vld [vmem:[%s414 + $0x48] sm:$0xff]
        %v428 = vld [vmem:[%s414 + $0x50] sm:$0x1]
        %v429 = vld [vmem:[%s414 + $0x60] sm:$0xff]
        %v430 = vld [vmem:[%s414 + $0x68] sm:$0xff]
        %v431 = vld [vmem:[%s414 + $0x70] sm:$0x1]
        %v432 = vld [vmem:[%s414 + $0x80] sm:$0xff]
        %v433 = vld [vmem:[%s414 + $0x88] sm:$0xff]
        %v434 = vld [vmem:[%s414 + $0x90] sm:$0x1]
        %v435 = vld [vmem:[%s414 + $0xa0] sm:$0xff]
        %v436 = vld [vmem:[%s414 + $0xa8] sm:$0xff]
        %v437 = vld [vmem:[%s414 + $0xb0] sm:$0x1]
        %v438 = vld [vmem:[%s414 + $0xc0] sm:$0xff]
        %v439 = vld [vmem:[%s414 + $0xc8] sm:$0xff]
        %v440 = vld [vmem:[%s414 + $0xd0] sm:$0x1]
        %v441 = vld [vmem:[%s414 + $0xe0] sm:$0xff]
        %v442 = vld [vmem:[%s414 + $0xe8] sm:$0xff]
        %v443 = vld [vmem:[%s414 + $0xf0] sm:$0x1]
        %vm460 = vcmask 1046528
        %v461 = vrot.slane %v420, 1
        %v462 = vrot.slane %v422, 1
        %v463 = vsel %vm460, %v461, %v462
        %v464 = vrot.slane %v423, 1
        %v465 = vrot.slane %v425, 1
        %v466 = vsel %vm460, %v464, %v465
        %v467 = vrot.slane %v426, 1
        %v468 = vrot.slane %v428, 1
        %v469 = vsel %vm460, %v467, %v468
        %v470 = vrot.slane %v429, 1
        %v471 = vrot.slane %v431, 1
        %v472 = vsel %vm460, %v470, %v471
        %v473 = vrot.slane %v432, 1
        %v474 = vrot.slane %v434, 1
        %v475 = vsel %vm460, %v473, %v474
        %v476 = vrot.slane %v435, 1
        %v477 = vrot.slane %v437, 1
        %v478 = vsel %vm460, %v476, %v477
        %v479 = vrot.slane %v438, 1
        %v480 = vrot.slane %v440, 1
        %v481 = vsel %vm460, %v479, %v480
        %v482 = vrot.slane %v441, 1
        %v483 = vrot.slane %v443, 1
        %v484 = vsel %vm460, %v482, %v483
        %v493 = vld [vmem:[%s419] sm:$0xff]
        %v494 = vld [vmem:[%s419 + $0x8] sm:$0xff]
        %v495 = vld [vmem:[%s419 + $0x10] sm:$0x1]
        %v496 = vld [vmem:[%s419 + $0x20] sm:$0xff]
        %v497 = vld [vmem:[%s419 + $0x28] sm:$0xff]
        %v498 = vld [vmem:[%s419 + $0x30] sm:$0x1]
        %v499 = vld [vmem:[%s419 + $0x40] sm:$0xff]
        %v500 = vld [vmem:[%s419 + $0x48] sm:$0xff]
        %v501 = vld [vmem:[%s419 + $0x50] sm:$0x1]
        %v502 = vld [vmem:[%s419 + $0x60] sm:$0xff]
        %v503 = vld [vmem:[%s419 + $0x68] sm:$0xff]
        %v504 = vld [vmem:[%s419 + $0x70] sm:$0x1]
        %v505 = vld [vmem:[%s419 + $0x80] sm:$0xff]
        %v506 = vld [vmem:[%s419 + $0x88] sm:$0xff]
        %v507 = vld [vmem:[%s419 + $0x90] sm:$0x1]
        %v508 = vld [vmem:[%s419 + $0xa0] sm:$0xff]
        %v509 = vld [vmem:[%s419 + $0xa8] sm:$0xff]
        %v510 = vld [vmem:[%s419 + $0xb0] sm:$0x1]
        %v511 = vld [vmem:[%s419 + $0xc0] sm:$0xff]
        %v512 = vld [vmem:[%s419 + $0xc8] sm:$0xff]
        %v513 = vld [vmem:[%s419 + $0xd0] sm:$0x1]
        %v514 = vld [vmem:[%s419 + $0xe0] sm:$0xff]
        %v515 = vld [vmem:[%s419 + $0xe8] sm:$0xff]
        %v516 = vld [vmem:[%s419 + $0xf0] sm:$0x1]
        %v533 = vrot.slane %v493, 1
        %v534 = vrot.slane %v495, 1
        %v535 = vsel %vm460, %v533, %v534
        %v536 = vrot.slane %v496, 1
        %v537 = vrot.slane %v498, 1
        %v538 = vsel %vm460, %v536, %v537
        %v539 = vrot.slane %v499, 1
        %v540 = vrot.slane %v501, 1
        %v541 = vsel %vm460, %v539, %v540
        %v542 = vrot.slane %v502, 1
        %v543 = vrot.slane %v504, 1
        %v544 = vsel %vm460, %v542, %v543
        %v545 = vrot.slane %v505, 1
        %v546 = vrot.slane %v507, 1
        %v547 = vsel %vm460, %v545, %v546
        %v548 = vrot.slane %v508, 1
        %v549 = vrot.slane %v510, 1
        %v550 = vsel %vm460, %v548, %v549
        %v551 = vrot.slane %v511, 1
        %v552 = vrot.slane %v513, 1
        %v553 = vsel %vm460, %v551, %v552
        %v554 = vrot.slane %v514, 1
        %v555 = vrot.slane %v516, 1
        %v556 = vsel %vm460, %v554, %v555
        %s565 = scalar_lea.vmem %s414, 32
        %v566 = vld [vmem:[%s565] sm:$0xff]
        %v567 = vld [vmem:[%s565 + $0x8] sm:$0xff]
        %v568 = vld [vmem:[%s565 + $0x10] sm:$0x1]
        %v569 = vld [vmem:[%s565 + $0x20] sm:$0xff]
        %v570 = vld [vmem:[%s565 + $0x28] sm:$0xff]
        %v571 = vld [vmem:[%s565 + $0x30] sm:$0x1]
        %v572 = vld [vmem:[%s565 + $0x40] sm:$0xff]
        %v573 = vld [vmem:[%s565 + $0x48] sm:$0xff]
        %v574 = vld [vmem:[%s565 + $0x50] sm:$0x1]
        %v575 = vld [vmem:[%s565 + $0x60] sm:$0xff]
        %v576 = vld [vmem:[%s565 + $0x68] sm:$0xff]
        %v577 = vld [vmem:[%s565 + $0x70] sm:$0x1]
        %v578 = vld [vmem:[%s565 + $0x80] sm:$0xff]
        %v579 = vld [vmem:[%s565 + $0x88] sm:$0xff]
        %v580 = vld [vmem:[%s565 + $0x90] sm:$0x1]
        %v581 = vld [vmem:[%s565 + $0xa0] sm:$0xff]
        %v582 = vld [vmem:[%s565 + $0xa8] sm:$0xff]
        %v583 = vld [vmem:[%s565 + $0xb0] sm:$0x1]
        %v584 = vld [vmem:[%s565 + $0xc0] sm:$0xff]
        %v585 = vld [vmem:[%s565 + $0xc8] sm:$0xff]
        %v586 = vld [vmem:[%s565 + $0xd0] sm:$0x1]
        %v587 = vld [vmem:[%s565 + $0xe0] sm:$0xff]
        %v588 = vld [vmem:[%s565 + $0xe8] sm:$0xff]
        %v589 = vld [vmem:[%s565 + $0xf0] sm:$0x1]
        %v606 = vrot.slane %v566, 1
        %v607 = vrot.slane %v568, 1
        %v608 = vsel %vm460, %v606, %v607
        %v609 = vrot.slane %v569, 1
        %v610 = vrot.slane %v571, 1
        %v611 = vsel %vm460, %v609, %v610
        %v612 = vrot.slane %v572, 1
        %v613 = vrot.slane %v574, 1
        %v614 = vsel %vm460, %v612, %v613
        %v615 = vrot.slane %v575, 1
        %v616 = vrot.slane %v577, 1
        %v617 = vsel %vm460, %v615, %v616
        %v618 = vrot.slane %v578, 1
        %v619 = vrot.slane %v580, 1
        %v620 = vsel %vm460, %v618, %v619
        %v621 = vrot.slane %v581, 1
        %v622 = vrot.slane %v583, 1
        %v623 = vsel %vm460, %v621, %v622
        %v624 = vrot.slane %v584, 1
        %v625 = vrot.slane %v586, 1
        %v626 = vsel %vm460, %v624, %v625
        %v627 = vrot.slane %v587, 1
        %v628 = vrot.slane %v589, 1
        %v629 = vsel %vm460, %v627, %v628
        %v638 = vld [vmem:[%s2] sm:$0xff]
        %v639 = vld [vmem:[%s2 + $0x8] sm:$0xff]
        %v640 = vld [vmem:[%s2 + $0x10] sm:$0xff]
        %v641 = vld [vmem:[%s2 + $0x18] sm:$0xff]
        %v642 = vld [vmem:[%s2 + $0x20] sm:$0xff]
        %v643 = vld [vmem:[%s2 + $0x28] sm:$0xff]
        %v644 = vld [vmem:[%s2 + $0x30] sm:$0xff]
        %v645 = vld [vmem:[%s2 + $0x38] sm:$0xff]
        %v646 = vld [vmem:[%s2 + $0x40] sm:$0xff]
        %v647 = vld [vmem:[%s2 + $0x48] sm:$0xff]
        %v648 = vld [vmem:[%s2 + $0x50] sm:$0xff]
        %v649 = vld [vmem:[%s2 + $0x58] sm:$0xff]
        %v650 = vld [vmem:[%s2 + $0x60] sm:$0xff]
        %v651 = vld [vmem:[%s2 + $0x68] sm:$0xff]
        %v652 = vld [vmem:[%s2 + $0x70] sm:$0xff]
        %v653 = vld [vmem:[%s2 + $0x78] sm:$0xff]
        %v654 = vld [vmem:[%s2 + $0x80] sm:$0xff]
        %v655 = vld [vmem:[%s2 + $0x88] sm:$0xff]
        %v656 = vld [vmem:[%s2 + $0x90] sm:$0xff]
        %v657 = vld [vmem:[%s2 + $0x98] sm:$0xff]
        %v658 = vld [vmem:[%s2 + $0xa0] sm:$0xff]
        %v659 = vld [vmem:[%s2 + $0xa8] sm:$0xff]
        %v660 = vld [vmem:[%s2 + $0xb0] sm:$0xff]
        %v661 = vld [vmem:[%s2 + $0xb8] sm:$0xff]
        %v662 = vld [vmem:[%s2 + $0xc0] sm:$0xff]
        %v663 = vld [vmem:[%s2 + $0xc8] sm:$0xff]
        %v664 = vld [vmem:[%s2 + $0xd0] sm:$0xff]
        %v665 = vld [vmem:[%s2 + $0xd8] sm:$0xff]
        %v666 = vld [vmem:[%s2 + $0xe0] sm:$0xff]
        %v667 = vld [vmem:[%s2 + $0xe8] sm:$0xff]
        %v668 = vld [vmem:[%s2 + $0xf0] sm:$0xff]
        %v669 = vld [vmem:[%s2 + $0xf8] sm:$0xff]
        %v670 = vld [vmem:[%s2 + $0x100] sm:$0xff]
        %v671 = vld [vmem:[%s2 + $0x108] sm:$0xff]
        %v672 = vld [vmem:[%s2 + $0x110] sm:$0xff]
        %v673 = vld [vmem:[%s2 + $0x118] sm:$0xff]
        %v674 = vld [vmem:[%s2 + $0x120] sm:$0xff]
        %v675 = vld [vmem:[%s2 + $0x128] sm:$0xff]
        %v676 = vld [vmem:[%s2 + $0x130] sm:$0xff]
        %v677 = vld [vmem:[%s2 + $0x138] sm:$0xff]
        %v678 = vld [vmem:[%s2 + $0x140] sm:$0xff]
        %v679 = vld [vmem:[%s2 + $0x148] sm:$0xff]
        %v680 = vld [vmem:[%s2 + $0x150] sm:$0xff]
        %v681 = vld [vmem:[%s2 + $0x158] sm:$0xff]
        %v682 = vld [vmem:[%s2 + $0x160] sm:$0xff]
        %v683 = vld [vmem:[%s2 + $0x168] sm:$0xff]
        %v684 = vld [vmem:[%s2 + $0x170] sm:$0xff]
        %v685 = vld [vmem:[%s2 + $0x178] sm:$0xff]
        %686 = vmatprep.subr.mxu0 0.0
        %687 = vmatpush1.msra.mxu0 %v638
        %688 = vmatprep.subr.mxu0 0.0
        %689 = vmatpush1.msra.mxu0 %v639
        %690 = vmatprep.subr.mxu0 0.0
        %691 = vmatpush1.msra.mxu0 %v640
        %692 = vmatprep.subr.mxu0 0.0
        %693 = vmatpush1.msra.mxu0 %v641
        %694 = vmatprep.subr.mxu0 0.0
        %695 = vmatpush1.msra.mxu0 %v642
        %696 = vmatprep.subr.mxu0 0.0
        %697 = vmatpush1.msra.mxu0 %v643
        %698 = vmatprep.subr.mxu0 0.0
        %699 = vmatpush1.msra.mxu0 %v644
        %700 = vmatprep.subr.mxu0 0.0
        %701 = vmatpush1.msra.mxu0 %v645
        %702 = vmatprep.subr.mxu0 0.0
        %703 = vmatpush1.msra.mxu0 %v646
        %704 = vmatprep.subr.mxu0 0.0
        %705 = vmatpush1.msra.mxu0 %v647
        %706 = vmatprep.subr.mxu0 0.0
        %707 = vmatpush1.msra.mxu0 %v648
        %708 = vmatprep.subr.mxu0 0.0
        %709 = vmatpush1.msra.mxu0 %v649
        %710 = vmatprep.subr.mxu0 0.0
        %711 = vmatpush1.msra.mxu0 %v650
        %712 = vmatprep.subr.mxu0 0.0
        %713 = vmatpush1.msra.mxu0 %v651
        %714 = vmatprep.subr.mxu0 0.0
        %715 = vmatpush1.msra.mxu0 %v652
        %716 = vmatprep.subr.mxu0 0.0
        %717 = vmatpush1.msra.mxu0 %v653
        %718 = vmatprep.subr.mxu0 0.0
        %719 = vmatpush1.msra.mxu0 %v654
        %720 = vmatprep.subr.mxu0 0.0
        %721 = vmatpush1.msra.mxu0 %v655
        %722 = vmatprep.subr.mxu0 0.0
        %723 = vmatpush1.msra.mxu0 %v656
        %724 = vmatprep.subr.mxu0 0.0
        %725 = vmatpush1.msra.mxu0 %v657
        %726 = vmatprep.subr.mxu0 0.0
        %727 = vmatpush1.msra.mxu0 %v658
        %728 = vmatprep.subr.mxu0 0.0
        %729 = vmatpush1.msra.mxu0 %v659
        %730 = vmatprep.subr.mxu0 0.0
        %731 = vmatpush1.msra.mxu0 %v660
        %732 = vmatprep.subr.mxu0 0.0
        %733 = vmatpush1.msra.mxu0 %v661
        %734 = vmatprep.subr.mxu0 0.0
        %735 = vmatpush1.msra.mxu0 %v662
        %736 = vmatprep.subr.mxu0 0.0
        %737 = vmatpush1.msra.mxu0 %v663
        %738 = vmatprep.subr.mxu0 0.0
        %739 = vmatpush1.msra.mxu0 %v664
        %740 = vmatprep.subr.mxu0 0.0
        %741 = vmatpush1.msra.mxu0 %v665
        %742 = vmatprep.subr.mxu0 0.0
        %743 = vmatpush1.msra.mxu0 %v666
        %744 = vmatprep.subr.mxu0 0.0
        %745 = vmatpush1.msra.mxu0 %v667
        %746 = vmatprep.subr.mxu0 0.0
        %747 = vmatpush1.msra.mxu0 %v668
        %748 = vmatprep.subr.mxu0 0.0
        %749 = vmatpush1.msra.mxu0 %v669
        %750 = vmatprep.mubr.f32.mxu0 %v421
        %751 = vmatmul.mubr.f32.gmra.mrb[0].mxu0 %v420
        %v752 = vpop.f32.mrb[0].mxu0
        %v753 = vadd.f32 0.0, %v752
        %v754 = vpop.f32.mrb[0].mxu0
        %755 = vmatprep.mubr.f32.mxu0 %v424
        %756 = vmatmul.mubr.f32.gmra.mrb[0].mxu0 %v423
        %v757 = vpop.f32.mrb[0].mxu0
        %v758 = vadd.f32 0.0, %v757
        %v759 = vpop.f32.mrb[0].mxu0
        %760 = vmatprep.mubr.f32.mxu0 %v427
        %761 = vmatmul.mubr.f32.gmra.mrb[0].mxu0 %v426
        %v762 = vpop.f32.mrb[0].mxu0
        %v763 = vadd.f32 0.0, %v762
        %v764 = vpop.f32.mrb[0].mxu0
        %765 = vmatprep.mubr.f32.mxu0 %v430
        %766 = vmatmul.mubr.f32.gmra.mrb[0].mxu0 %v429
        %v767 = vpop.f32.mrb[0].mxu0
        %v768 = vadd.f32 0.0, %v767
        %v769 = vpop.f32.mrb[0].mxu0
        %770 = vmatprep.mubr.f32.mxu0 %v433
        %771 = vmatmul.mubr.f32.gmra.mrb[0].mxu0 %v432
        %v772 = vpop.f32.mrb[0].mxu0
        %v773 = vadd.f32 0.0, %v772
        %v774 = vpop.f32.mrb[0].mxu0
        %775 = vmatprep.mubr.f32.mxu0 %v436
        %776 = vmatmul.mubr.f32.gmra.mrb[0].mxu0 %v435
        %v777 = vpop.f32.mrb[0].mxu0
        %v778 = vadd.f32 0.0, %v777
        %v779 = vpop.f32.mrb[0].mxu0
        %780 = vmatprep.mubr.f32.mxu0 %v439
        %781 = vmatmul.mubr.f32.gmra.mrb[0].mxu0 %v438
        %v782 = vpop.f32.mrb[0].mxu0
        %v783 = vadd.f32 0.0, %v782
        %v784 = vpop.f32.mrb[0].mxu0
        %785 = vmatprep.mubr.f32.mxu0 %v442
        %786 = vmatmul.mubr.f32.gmra.mrb[0].mxu0 %v441
        %v787 = vpop.f32.mrb[0].mxu0
        %v788 = vadd.f32 0.0, %v787
        %v789 = vpop.f32.mrb[0].mxu0
        %790 = vdwg.mxu0
        %791 = vmatprep.subr.mxu0 0.0
        %792 = vmatpush1.msra.mxu0 %v670
        %793 = vmatprep.subr.mxu0 0.0
        %794 = vmatpush1.msra.mxu0 %v671
        %795 = vmatprep.subr.mxu0 0.0
        %796 = vmatpush1.msra.mxu0 %v672
        %797 = vmatprep.subr.mxu0 0.0
        %798 = vmatpush1.msra.mxu0 %v673
        %799 = vmatprep.subr.mxu0 0.0
        %800 = vmatpush1.msra.mxu0 %v674
        %801 = vmatprep.subr.mxu0 0.0
        %802 = vmatpush1.msra.mxu0 %v675
        %803 = vmatprep.subr.mxu0 0.0
        %804 = vmatpush1.msra.mxu0 %v676
        %805 = vmatprep.subr.mxu0 0.0
        %806 = vmatpush1.msra.mxu0 %v677
        %807 = vmatprep.subr.mxu0 0.0
        %808 = vmatpush1.msra.mxu0 %v678
        %809 = vmatprep.subr.mxu0 0.0
        %810 = vmatpush1.msra.mxu0 %v679
        %811 = vmatprep.subr.mxu0 0.0
        %812 = vmatpush1.msra.mxu0 %v680
        %813 = vmatprep.subr.mxu0 0.0
        %814 = vmatpush1.msra.mxu0 %v681
        %815 = vmatprep.subr.mxu0 0.0
        %816 = vmatpush1.msra.mxu0 %v682
        %817 = vmatprep.subr.mxu0 0.0
        %818 = vmatpush1.msra.mxu0 %v683
        %819 = vmatprep.subr.mxu0 0.0
        %820 = vmatpush1.msra.mxu0 %v684
        %821 = vmatprep.subr.mxu0 0.0
        %822 = vmatpush1.msra.mxu0 %v685
        %823 = vmatprep.subr.mxu0 0.0
        %824 = vmatpush1.msra.mxu0 0.0
        %825 = vmatprep.subr.mxu0 0.0
        %826 = vmatpush1.msra.mxu0 0.0
        %827 = vmatprep.subr.mxu0 0.0
        %828 = vmatpush1.msra.mxu0 0.0
        %829 = vmatprep.subr.mxu0 0.0
        %830 = vmatpush1.msra.mxu0 0.0
        %831 = vmatprep.subr.mxu0 0.0
        %832 = vmatpush1.msra.mxu0 0.0
        %833 = vmatprep.subr.mxu0 0.0
        %834 = vmatpush1.msra.mxu0 0.0
        %835 = vmatprep.subr.mxu0 0.0
        %836 = vmatpush1.msra.mxu0 0.0
        %837 = vmatprep.subr.mxu0 0.0
        %838 = vmatpush1.msra.mxu0 0.0
        %839 = vmatprep.subr.mxu0 0.0
        %840 = vmatpush1.msra.mxu0 0.0
        %841 = vmatprep.subr.mxu0 0.0
        %842 = vmatpush1.msra.mxu0 0.0
        %843 = vmatprep.subr.mxu0 0.0
        %844 = vmatpush1.msra.mxu0 0.0
        %845 = vmatprep.subr.mxu0 0.0
        %846 = vmatpush1.msra.mxu0 0.0
        %847 = vmatprep.subr.mxu0 0.0
        %848 = vmatpush1.msra.mxu0 0.0
        %849 = vmatprep.subr.mxu0 0.0
        %850 = vmatpush1.msra.mxu0 0.0
        %851 = vmatprep.subr.mxu0 0.0
        %852 = vmatpush1.msra.mxu0 0.0
        %853 = vmatprep.subr.mxu0 0.0
        %854 = vmatpush1.msra.mxu0 0.0
        %855 = vmatprep.mubr.f32.mxu0 0.0
        %856 = vmatmul.mubr.f32.gmra.mrb[0].mxu0 %v463
        %v857 = vpop.f32.mrb[0].mxu0
        %v858 = vadd.f32 %v753, %v857
        %v859 = vpop.f32.mrb[0].mxu0
        %860 = vmatprep.mubr.f32.mxu0 0.0
        %861 = vmatmul.mubr.f32.gmra.mrb[0].mxu0 %v466
        %v862 = vpop.f32.mrb[0].mxu0
        %v863 = vadd.f32 %v758, %v862
        %v864 = vpop.f32.mrb[0].mxu0
        %865 = vmatprep.mubr.f32.mxu0 0.0
        %866 = vmatmul.mubr.f32.gmra.mrb[0].mxu0 %v469
        %v867 = vpop.f32.mrb[0].mxu0
        %v868 = vadd.f32 %v763, %v867
        %v869 = vpop.f32.mrb[0].mxu0
        %870 = vmatprep.mubr.f32.mxu0 0.0
        %871 = vmatmul.mubr.f32.gmra.mrb[0].mxu0 %v472
        %v872 = vpop.f32.mrb[0].mxu0
        %v873 = vadd.f32 %v768, %v872
        %v874 = vpop.f32.mrb[0].mxu0
        %875 = vmatprep.mubr.f32.mxu0 0.0
        %876 = vmatmul.mubr.f32.gmra.mrb[0].mxu0 %v475
        %v877 = vpop.f32.mrb[0].mxu0
        %v878 = vadd.f32 %v773, %v877
        %v879 = vpop.f32.mrb[0].mxu0
        %880 = vmatprep.mubr.f32.mxu0 0.0
        %881 = vmatmul.mubr.f32.gmra.mrb[0].mxu0 %v478
        %v882 = vpop.f32.mrb[0].mxu0
        %v883 = vadd.f32 %v778, %v882
        %v884 = vpop.f32.mrb[0].mxu0
        %885 = vmatprep.mubr.f32.mxu0 0.0
        %886 = vmatmul.mubr.f32.gmra.mrb[0].mxu0 %v481
        %v887 = vpop.f32.mrb[0].mxu0
        %v888 = vadd.f32 %v783, %v887
        %v889 = vpop.f32.mrb[0].mxu0
        %890 = vmatprep.mubr.f32.mxu0 0.0
        %891 = vmatmul.mubr.f32.gmra.mrb[0].mxu0 %v484
        %v892 = vpop.f32.mrb[0].mxu0
        %v893 = vadd.f32 %v788, %v892
        %v894 = vpop.f32.mrb[0].mxu0
        %895 = vdwg.mxu0
        %896 = vst [vmem:[#allocation2] sm:$0xff] %v858
        %897 = vst [vmem:[#allocation2 + $0x8] sm:$0xff] %v863
        %898 = vst [vmem:[#allocation2 + $0x10] sm:$0xff] %v868
        %899 = vst [vmem:[#allocation2 + $0x18] sm:$0xff] %v873
        %900 = vst [vmem:[#allocation2 + $0x20] sm:$0xff] %v878
        %901 = vst [vmem:[#allocation2 + $0x28] sm:$0xff] %v883
        %902 = vst [vmem:[#allocation2 + $0x30] sm:$0xff] %v888
        %903 = vst [vmem:[#allocation2 + $0x38] sm:$0xff] %v893
        %s904 = scalar_lea.vmem %s2, 384
        %v905 = vld [vmem:[%s904] sm:$0xff]
        %v906 = vld [vmem:[%s904 + $0x8] sm:$0xff]
        %v907 = vld [vmem:[%s904 + $0x10] sm:$0xff]
        %v908 = vld [vmem:[%s904 + $0x18] sm:$0xff]
        %v909 = vld [vmem:[%s904 + $0x20] sm:$0xff]
        %v910 = vld [vmem:[%s904 + $0x28] sm:$0xff]
        %v911 = vld [vmem:[%s904 + $0x30] sm:$0xff]
        %v912 = vld [vmem:[%s904 + $0x38] sm:$0xff]
        %v913 = vld [vmem:[%s904 + $0x40] sm:$0xff]
        %v914 = vld [vmem:[%s904 + $0x48] sm:$0xff]
        %v915 = vld [vmem:[%s904 + $0x50] sm:$0xff]
        %v916 = vld [vmem:[%s904 + $0x58] sm:$0xff]
        %v917 = vld [vmem:[%s904 + $0x60] sm:$0xff]
        %v918 = vld [vmem:[%s904 + $0x68] sm:$0xff]
        %v919 = vld [vmem:[%s904 + $0x70] sm:$0xff]
        %v920 = vld [vmem:[%s904 + $0x78] sm:$0xff]
        %v921 = vld [vmem:[%s904 + $0x80] sm:$0xff]
        %v922 = vld [vmem:[%s904 + $0x88] sm:$0xff]
        %v923 = vld [vmem:[%s904 + $0x90] sm:$0xff]
        %v924 = vld [vmem:[%s904 + $0x98] sm:$0xff]
        %v925 = vld [vmem:[%s904 + $0xa0] sm:$0xff]
        %v926 = vld [vmem:[%s904 + $0xa8] sm:$0xff]
        %v927 = vld [vmem:[%s904 + $0xb0] sm:$0xff]
        %v928 = vld [vmem:[%s904 + $0xb8] sm:$0xff]
        %v929 = vld [vmem:[%s904 + $0xc0] sm:$0xff]
        %v930 = vld [vmem:[%s904 + $0xc8] sm:$0xff]
        %v931 = vld [vmem:[%s904 + $0xd0] sm:$0xff]
        %v932 = vld [vmem:[%s904 + $0xd8] sm:$0xff]
        %v933 = vld [vmem:[%s904 + $0xe0] sm:$0xff]
        %v934 = vld [vmem:[%s904 + $0xe8] sm:$0xff]
        %v935 = vld [vmem:[%s904 + $0xf0] sm:$0xff]
        %v936 = vld [vmem:[%s904 + $0xf8] sm:$0xff]
        %v937 = vld [vmem:[%s904 + $0x100] sm:$0xff]
        %v938 = vld [vmem:[%s904 + $0x108] sm:$0xff]
        %v939 = vld [vmem:[%s904 + $0x110] sm:$0xff]
        %v940 = vld [vmem:[%s904 + $0x118] sm:$0xff]
        %v941 = vld [vmem:[%s904 + $0x120] sm:$0xff]
        %v942 = vld [vmem:[%s904 + $0x128] sm:$0xff]
        %v943 = vld [vmem:[%s904 + $0x130] sm:$0xff]
        %v944 = vld [vmem:[%s904 + $0x138] sm:$0xff]
        %v945 = vld [vmem:[%s904 + $0x140] sm:$0xff]
        %v946 = vld [vmem:[%s904 + $0x148] sm:$0xff]
        %v947 = vld [vmem:[%s904 + $0x150] sm:$0xff]
        %v948 = vld [vmem:[%s904 + $0x158] sm:$0xff]
        %v949 = vld [vmem:[%s904 + $0x160] sm:$0xff]
        %v950 = vld [vmem:[%s904 + $0x168] sm:$0xff]
        %v951 = vld [vmem:[%s904 + $0x170] sm:$0xff]
        %v952 = vld [vmem:[%s904 + $0x178] sm:$0xff]
        %953 = vmatprep.subr.mxu0 0.0
        %954 = vmatpush1.msra.mxu0 %v905
        %955 = vmatprep.subr.mxu0 0.0
        %956 = vmatpush1.msra.mxu0 %v906
        %957 = vmatprep.subr.mxu0 0.0
        %958 = vmatpush1.msra.mxu0 %v907
        %959 = vmatprep.subr.mxu0 0.0
        %960 = vmatpush1.msra.mxu0 %v908
        %961 = vmatprep.subr.mxu0 0.0
        %962 = vmatpush1.msra.mxu0 %v909
        %963 = vmatprep.subr.mxu0 0.0
        %964 = vmatpush1.msra.mxu0 %v910
        %965 = vmatprep.subr.mxu0 0.0
        %966 = vmatpush1.msra.mxu0 %v911
        %967 = vmatprep.subr.mxu0 0.0
        %968 = vmatpush1.msra.mxu0 %v912
        %969 = vmatprep.subr.mxu0 0.0
        %970 = vmatpush1.msra.mxu0 %v913
        %971 = vmatprep.subr.mxu0 0.0
        %972 = vmatpush1.msra.mxu0 %v914
        %973 = vmatprep.subr.mxu0 0.0
        %974 = vmatpush1.msra.mxu0 %v915
        %975 = vmatprep.subr.mxu0 0.0
        %976 = vmatpush1.msra.mxu0 %v916
        %977 = vmatprep.subr.mxu0 0.0
        %978 = vmatpush1.msra.mxu0 %v917
        %979 = vmatprep.subr.mxu0 0.0
        %980 = vmatpush1.msra.mxu0 %v918
        %981 = vmatprep.subr.mxu0 0.0
        %982 = vmatpush1.msra.mxu0 %v919
        %983 = vmatprep.subr.mxu0 0.0
        %984 = vmatpush1.msra.mxu0 %v920
        %985 = vmatprep.subr.mxu0 0.0
        %986 = vmatpush1.msra.mxu0 %v921
        %987 = vmatprep.subr.mxu0 0.0
        %988 = vmatpush1.msra.mxu0 %v922
        %989 = vmatprep.subr.mxu0 0.0
        %990 = vmatpush1.msra.mxu0 %v923
        %991 = vmatprep.subr.mxu0 0.0
        %992 = vmatpush1.msra.mxu0 %v924
        %993 = vmatprep.subr.mxu0 0.0
        %994 = vmatpush1.msra.mxu0 %v925
        %995 = vmatprep.subr.mxu0 0.0
        %996 = vmatpush1.msra.mxu0 %v926
        %997 = vmatprep.subr.mxu0 0.0
        %998 = vmatpush1.msra.mxu0 %v927
        %999 = vmatprep.subr.mxu0 0.0
        %1000 = vmatpush1.msra.mxu0 %v928
        %1001 = vmatprep.subr.mxu0 0.0
        %1002 = vmatpush1.msra.mxu0 %v929
        %1003 = vmatprep.subr.mxu0 0.0
        %1004 = vmatpush1.msra.mxu0 %v930
        %1005 = vmatprep.subr.mxu0 0.0
        %1006 = vmatpush1.msra.mxu0 %v931
        %1007 = vmatprep.subr.mxu0 0.0
        %1008 = vmatpush1.msra.mxu0 %v932
        %1009 = vmatprep.subr.mxu0 0.0
        %1010 = vmatpush1.msra.mxu0 %v933
        %1011 = vmatprep.subr.mxu0 0.0
        %1012 = vmatpush1.msra.mxu0 %v934
        %1013 = vmatprep.subr.mxu0 0.0
        %1014 = vmatpush1.msra.mxu0 %v935
        %1015 = vmatprep.subr.mxu0 0.0
        %1016 = vmatpush1.msra.mxu0 %v936
        %1017 = vmatprep.mubr.f32.mxu0 %v494
        %1018 = vmatmul.mubr.f32.gmra.mrb[0].mxu0 %v493
        %v1019 = vpop.f32.mrb[0].mxu0
        %v1020 = vadd.f32 0.0, %v1019
        %v1021 = vpop.f32.mrb[0].mxu0
        %1022 = vmatprep.mubr.f32.mxu0 %v497
        %1023 = vmatmul.mubr.f32.gmra.mrb[0].mxu0 %v496
        %v1024 = vpop.f32.mrb[0].mxu0
        %v1025 = vadd.f32 0.0, %v1024
        %v1026 = vpop.f32.mrb[0].mxu0
        %1027 = vmatprep.mubr.f32.mxu0 %v500
        %1028 = vmatmul.mubr.f32.gmra.mrb[0].mxu0 %v499
        %v1029 = vpop.f32.mrb[0].mxu0
        %v1030 = vadd.f32 0.0, %v1029
        %v1031 = vpop.f32.mrb[0].mxu0
        %1032 = vmatprep.mubr.f32.mxu0 %v503
        %1033 = vmatmul.mubr.f32.gmra.mrb[0].mxu0 %v502
        %v1034 = vpop.f32.mrb[0].mxu0
        %v1035 = vadd.f32 0.0, %v1034
        %v1036 = vpop.f32.mrb[0].mxu0
        %1037 = vmatprep.mubr.f32.mxu0 %v506
        %1038 = vmatmul.mubr.f32.gmra.mrb[0].mxu0 %v505
        %v1039 = vpop.f32.mrb[0].mxu0
        %v1040 = vadd.f32 0.0, %v1039
        %v1041 = vpop.f32.mrb[0].mxu0
        %1042 = vmatprep.mubr.f32.mxu0 %v509
        %1043 = vmatmul.mubr.f32.gmra.mrb[0].mxu0 %v508
        %v1044 = vpop.f32.mrb[0].mxu0
        %v1045 = vadd.f32 0.0, %v1044
        %v1046 = vpop.f32.mrb[0].mxu0
        %1047 = vmatprep.mubr.f32.mxu0 %v512
        %1048 = vmatmul.mubr.f32.gmra.mrb[0].mxu0 %v511
        %v1049 = vpop.f32.mrb[0].mxu0
        %v1050 = vadd.f32 0.0, %v1049
        %v1051 = vpop.f32.mrb[0].mxu0
        %1052 = vmatprep.mubr.f32.mxu0 %v515
        %1053 = vmatmul.mubr.f32.gmra.mrb[0].mxu0 %v514
        %v1054 = vpop.f32.mrb[0].mxu0
        %v1055 = vadd.f32 0.0, %v1054
        %v1056 = vpop.f32.mrb[0].mxu0
        %1057 = vdwg.mxu0
        %1058 = vmatprep.subr.mxu0 0.0
        %1059 = vmatpush1.msra.mxu0 %v937
        %1060 = vmatprep.subr.mxu0 0.0
        %1061 = vmatpush1.msra.mxu0 %v938
        %1062 = vmatprep.subr.mxu0 0.0
        %1063 = vmatpush1.msra.mxu0 %v939
        %1064 = vmatprep.subr.mxu0 0.0
        %1065 = vmatpush1.msra.mxu0 %v940
        %1066 = vmatprep.subr.mxu0 0.0
        %1067 = vmatpush1.msra.mxu0 %v941
        %1068 = vmatprep.subr.mxu0 0.0
        %1069 = vmatpush1.msra.mxu0 %v942
        %1070 = vmatprep.subr.mxu0 0.0
        %1071 = vmatpush1.msra.mxu0 %v943
        %1072 = vmatprep.subr.mxu0 0.0
        %1073 = vmatpush1.msra.mxu0 %v944
        %1074 = vmatprep.subr.mxu0 0.0
        %1075 = vmatpush1.msra.mxu0 %v945
        %1076 = vmatprep.subr.mxu0 0.0
        %1077 = vmatpush1.msra.mxu0 %v946
        %1078 = vmatprep.subr.mxu0 0.0
        %1079 = vmatpush1.msra.mxu0 %v947
        %1080 = vmatprep.subr.mxu0 0.0
        %1081 = vmatpush1.msra.mxu0 %v948
        %1082 = vmatprep.subr.mxu0 0.0
        %1083 = vmatpush1.msra.mxu0 %v949
        %1084 = vmatprep.subr.mxu0 0.0
        %1085 = vmatpush1.msra.mxu0 %v950
        %1086 = vmatprep.subr.mxu0 0.0
        %1087 = vmatpush1.msra.mxu0 %v951
        %1088 = vmatprep.subr.mxu0 0.0
        %1089 = vmatpush1.msra.mxu0 %v952
        %1090 = vmatprep.subr.mxu0 0.0
        %1091 = vmatpush1.msra.mxu0 0.0
        %1092 = vmatprep.subr.mxu0 0.0
        %1093 = vmatpush1.msra.mxu0 0.0
        %1094 = vmatprep.subr.mxu0 0.0
        %1095 = vmatpush1.msra.mxu0 0.0
        %1096 = vmatprep.subr.mxu0 0.0
        %1097 = vmatpush1.msra.mxu0 0.0
        %1098 = vmatprep.subr.mxu0 0.0
        %1099 = vmatpush1.msra.mxu0 0.0
        %1100 = vmatprep.subr.mxu0 0.0
        %1101 = vmatpush1.msra.mxu0 0.0
        %1102 = vmatprep.subr.mxu0 0.0
        %1103 = vmatpush1.msra.mxu0 0.0
        %1104 = vmatprep.subr.mxu0 0.0
        %1105 = vmatpush1.msra.mxu0 0.0
        %1106 = vmatprep.subr.mxu0 0.0
        %1107 = vmatpush1.msra.mxu0 0.0
        %1108 = vmatprep.subr.mxu0 0.0
        %1109 = vmatpush1.msra.mxu0 0.0
        %1110 = vmatprep.subr.mxu0 0.0
        %1111 = vmatpush1.msra.mxu0 0.0
        %1112 = vmatprep.subr.mxu0 0.0
        %1113 = vmatpush1.msra.mxu0 0.0
        %1114 = vmatprep.subr.mxu0 0.0
        %1115 = vmatpush1.msra.mxu0 0.0
        %1116 = vmatprep.subr.mxu0 0.0
        %1117 = vmatpush1.msra.mxu0 0.0
        %1118 = vmatprep.subr.mxu0 0.0
        %1119 = vmatpush1.msra.mxu0 0.0
        %1120 = vmatprep.subr.mxu0 0.0
        %1121 = vmatpush1.msra.mxu0 0.0
        %1122 = vmatprep.mubr.f32.mxu0 0.0
        %1123 = vmatmul.mubr.f32.gmra.mrb[0].mxu0 %v535
        %v1124 = vpop.f32.mrb[0].mxu0
        %v1125 = vadd.f32 %v1020, %v1124
        %v1126 = vpop.f32.mrb[0].mxu0
        %1127 = vmatprep.mubr.f32.mxu0 0.0
        %1128 = vmatmul.mubr.f32.gmra.mrb[0].mxu0 %v538
        %v1129 = vpop.f32.mrb[0].mxu0
        %v1130 = vadd.f32 %v1025, %v1129
        %v1131 = vpop.f32.mrb[0].mxu0
        %1132 = vmatprep.mubr.f32.mxu0 0.0
        %1133 = vmatmul.mubr.f32.gmra.mrb[0].mxu0 %v541
        %v1134 = vpop.f32.mrb[0].mxu0
        %v1135 = vadd.f32 %v1030, %v1134
        %v1136 = vpop.f32.mrb[0].mxu0
        %1137 = vmatprep.mubr.f32.mxu0 0.0
        %1138 = vmatmul.mubr.f32.gmra.mrb[0].mxu0 %v544
        %v1139 = vpop.f32.mrb[0].mxu0
        %v1140 = vadd.f32 %v1035, %v1139
        %v1141 = vpop.f32.mrb[0].mxu0
        %1142 = vmatprep.mubr.f32.mxu0 0.0
        %1143 = vmatmul.mubr.f32.gmra.mrb[0].mxu0 %v547
        %v1144 = vpop.f32.mrb[0].mxu0
        %v1145 = vadd.f32 %v1040, %v1144
        %v1146 = vpop.f32.mrb[0].mxu0
        %1147 = vmatprep.mubr.f32.mxu0 0.0
        %1148 = vmatmul.mubr.f32.gmra.mrb[0].mxu0 %v550
        %v1149 = vpop.f32.mrb[0].mxu0
        %v1150 = vadd.f32 %v1045, %v1149
        %v1151 = vpop.f32.mrb[0].mxu0
        %1152 = vmatprep.mubr.f32.mxu0 0.0
        %1153 = vmatmul.mubr.f32.gmra.mrb[0].mxu0 %v553
        %v1154 = vpop.f32.mrb[0].mxu0
        %v1155 = vadd.f32 %v1050, %v1154
        %v1156 = vpop.f32.mrb[0].mxu0
        %1157 = vmatprep.mubr.f32.mxu0 0.0
        %1158 = vmatmul.mubr.f32.gmra.mrb[0].mxu0 %v556
        %v1159 = vpop.f32.mrb[0].mxu0
        %v1160 = vadd.f32 %v1055, %v1159
        %v1161 = vpop.f32.mrb[0].mxu0
        %1162 = vdwg.mxu0
        %v1163 = vld [vmem:[#allocation2] sm:$0xff]
        %v1164 = vld [vmem:[#allocation2 + $0x8] sm:$0xff]
        %v1165 = vld [vmem:[#allocation2 + $0x10] sm:$0xff]
        %v1166 = vld [vmem:[#allocation2 + $0x18] sm:$0xff]
        %v1167 = vld [vmem:[#allocation2 + $0x20] sm:$0xff]
        %v1168 = vld [vmem:[#allocation2 + $0x28] sm:$0xff]
        %v1169 = vld [vmem:[#allocation2 + $0x30] sm:$0xff]
        %v1170 = vld [vmem:[#allocation2 + $0x38] sm:$0xff]
        %v1171 = vadd.f32 %v1163, %v1125
        %v1172 = vadd.f32 %v1164, %v1130
        %v1173 = vadd.f32 %v1165, %v1135
        %v1174 = vadd.f32 %v1166, %v1140
        %v1175 = vadd.f32 %v1167, %v1145
        %v1176 = vadd.f32 %v1168, %v1150
        %v1177 = vadd.f32 %v1169, %v1155
        %v1178 = vadd.f32 %v1170, %v1160
        %1179 = vst [vmem:[#allocation2] sm:$0xff] %v1171
        %1180 = vst [vmem:[#allocation2 + $0x8] sm:$0xff] %v1172
        %1181 = vst [vmem:[#allocation2 + $0x10] sm:$0xff] %v1173
        %1182 = vst [vmem:[#allocation2 + $0x18] sm:$0xff] %v1174
        %1183 = vst [vmem:[#allocation2 + $0x20] sm:$0xff] %v1175
        %1184 = vst [vmem:[#allocation2 + $0x28] sm:$0xff] %v1176
        %1185 = vst [vmem:[#allocation2 + $0x30] sm:$0xff] %v1177
        %1186 = vst [vmem:[#allocation2 + $0x38] sm:$0xff] %v1178
        %s1187 = scalar_lea.vmem %s2, 768
        %v1188 = vld [vmem:[%s1187] sm:$0xff]
        %v1189 = vld [vmem:[%s1187 + $0x8] sm:$0xff]
        %v1190 = vld [vmem:[%s1187 + $0x10] sm:$0xff]
        %v1191 = vld [vmem:[%s1187 + $0x18] sm:$0xff]
        %v1192 = vld [vmem:[%s1187 + $0x20] sm:$0xff]
        %v1193 = vld [vmem:[%s1187 + $0x28] sm:$0xff]
        %v1194 = vld [vmem:[%s1187 + $0x30] sm:$0xff]
        %v1195 = vld [vmem:[%s1187 + $0x38] sm:$0xff]
        %v1196 = vld [vmem:[%s1187 + $0x40] sm:$0xff]
        %v1197 = vld [vmem:[%s1187 + $0x48] sm:$0xff]
        %v1198 = vld [vmem:[%s1187 + $0x50] sm:$0xff]
        %v1199 = vld [vmem:[%s1187 + $0x58] sm:$0xff]
        %v1200 = vld [vmem:[%s1187 + $0x60] sm:$0xff]
        %v1201 = vld [vmem:[%s1187 + $0x68] sm:$0xff]
        %v1202 = vld [vmem:[%s1187 + $0x70] sm:$0xff]
        %v1203 = vld [vmem:[%s1187 + $0x78] sm:$0xff]
        %v1204 = vld [vmem:[%s1187 + $0x80] sm:$0xff]
        %v1205 = vld [vmem:[%s1187 + $0x88] sm:$0xff]
        %v1206 = vld [vmem:[%s1187 + $0x90] sm:$0xff]
        %v1207 = vld [vmem:[%s1187 + $0x98] sm:$0xff]
        %v1208 = vld [vmem:[%s1187 + $0xa0] sm:$0xff]
        %v1209 = vld [vmem:[%s1187 + $0xa8] sm:$0xff]
        %v1210 = vld [vmem:[%s1187 + $0xb0] sm:$0xff]
        %v1211 = vld [vmem:[%s1187 + $0xb8] sm:$0xff]
        %v1212 = vld [vmem:[%s1187 + $0xc0] sm:$0xff]
        %v1213 = vld [vmem:[%s1187 + $0xc8] sm:$0xff]
        %v1214 = vld [vmem:[%s1187 + $0xd0] sm:$0xff]
        %v1215 = vld [vmem:[%s1187 + $0xd8] sm:$0xff]
        %v1216 = vld [vmem:[%s1187 + $0xe0] sm:$0xff]
        %v1217 = vld [vmem:[%s1187 + $0xe8] sm:$0xff]
        %v1218 = vld [vmem:[%s1187 + $0xf0] sm:$0xff]
        %v1219 = vld [vmem:[%s1187 + $0xf8] sm:$0xff]
        %v1220 = vld [vmem:[%s1187 + $0x100] sm:$0xff]
        %v1221 = vld [vmem:[%s1187 + $0x108] sm:$0xff]
        %v1222 = vld [vmem:[%s1187 + $0x110] sm:$0xff]
        %v1223 = vld [vmem:[%s1187 + $0x118] sm:$0xff]
        %v1224 = vld [vmem:[%s1187 + $0x120] sm:$0xff]
        %v1225 = vld [vmem:[%s1187 + $0x128] sm:$0xff]
        %v1226 = vld [vmem:[%s1187 + $0x130] sm:$0xff]
        %v1227 = vld [vmem:[%s1187 + $0x138] sm:$0xff]
        %v1228 = vld [vmem:[%s1187 + $0x140] sm:$0xff]
        %v1229 = vld [vmem:[%s1187 + $0x148] sm:$0xff]
        %v1230 = vld [vmem:[%s1187 + $0x150] sm:$0xff]
        %v1231 = vld [vmem:[%s1187 + $0x158] sm:$0xff]
        %v1232 = vld [vmem:[%s1187 + $0x160] sm:$0xff]
        %v1233 = vld [vmem:[%s1187 + $0x168] sm:$0xff]
        %v1234 = vld [vmem:[%s1187 + $0x170] sm:$0xff]
        %v1235 = vld [vmem:[%s1187 + $0x178] sm:$0xff]
        %1236 = vmatprep.subr.mxu0 0.0
        %1237 = vmatpush1.msra.mxu0 %v1188
        %1238 = vmatprep.subr.mxu0 0.0
        %1239 = vmatpush1.msra.mxu0 %v1189
        %1240 = vmatprep.subr.mxu0 0.0
        %1241 = vmatpush1.msra.mxu0 %v1190
        %1242 = vmatprep.subr.mxu0 0.0
        %1243 = vmatpush1.msra.mxu0 %v1191
        %1244 = vmatprep.subr.mxu0 0.0
        %1245 = vmatpush1.msra.mxu0 %v1192
        %1246 = vmatprep.subr.mxu0 0.0
        %1247 = vmatpush1.msra.mxu0 %v1193
        %1248 = vmatprep.subr.mxu0 0.0
        %1249 = vmatpush1.msra.mxu0 %v1194
        %1250 = vmatprep.subr.mxu0 0.0
        %1251 = vmatpush1.msra.mxu0 %v1195
        %1252 = vmatprep.subr.mxu0 0.0
        %1253 = vmatpush1.msra.mxu0 %v1196
        %1254 = vmatprep.subr.mxu0 0.0
        %1255 = vmatpush1.msra.mxu0 %v1197
        %1256 = vmatprep.subr.mxu0 0.0
        %1257 = vmatpush1.msra.mxu0 %v1198
        %1258 = vmatprep.subr.mxu0 0.0
        %1259 = vmatpush1.msra.mxu0 %v1199
        %1260 = vmatprep.subr.mxu0 0.0
        %1261 = vmatpush1.msra.mxu0 %v1200
        %1262 = vmatprep.subr.mxu0 0.0
        %1263 = vmatpush1.msra.mxu0 %v1201
        %1264 = vmatprep.subr.mxu0 0.0
        %1265 = vmatpush1.msra.mxu0 %v1202
        %1266 = vmatprep.subr.mxu0 0.0
        %1267 = vmatpush1.msra.mxu0 %v1203
        %1268 = vmatprep.subr.mxu0 0.0
        %1269 = vmatpush1.msra.mxu0 %v1204
        %1270 = vmatprep.subr.mxu0 0.0
        %1271 = vmatpush1.msra.mxu0 %v1205
        %1272 = vmatprep.subr.mxu0 0.0
        %1273 = vmatpush1.msra.mxu0 %v1206
        %1274 = vmatprep.subr.mxu0 0.0
        %1275 = vmatpush1.msra.mxu0 %v1207
        %1276 = vmatprep.subr.mxu0 0.0
        %1277 = vmatpush1.msra.mxu0 %v1208
        %1278 = vmatprep.subr.mxu0 0.0
        %1279 = vmatpush1.msra.mxu0 %v1209
        %1280 = vmatprep.subr.mxu0 0.0
        %1281 = vmatpush1.msra.mxu0 %v1210
        %1282 = vmatprep.subr.mxu0 0.0
        %1283 = vmatpush1.msra.mxu0 %v1211
        %1284 = vmatprep.subr.mxu0 0.0
        %1285 = vmatpush1.msra.mxu0 %v1212
        %1286 = vmatprep.subr.mxu0 0.0
        %1287 = vmatpush1.msra.mxu0 %v1213
        %1288 = vmatprep.subr.mxu0 0.0
        %1289 = vmatpush1.msra.mxu0 %v1214
        %1290 = vmatprep.subr.mxu0 0.0
        %1291 = vmatpush1.msra.mxu0 %v1215
        %1292 = vmatprep.subr.mxu0 0.0
        %1293 = vmatpush1.msra.mxu0 %v1216
        %1294 = vmatprep.subr.mxu0 0.0
        %1295 = vmatpush1.msra.mxu0 %v1217
        %1296 = vmatprep.subr.mxu0 0.0
        %1297 = vmatpush1.msra.mxu0 %v1218
        %1298 = vmatprep.subr.mxu0 0.0
        %1299 = vmatpush1.msra.mxu0 %v1219
        %1300 = vmatprep.mubr.f32.mxu0 %v567
        %1301 = vmatmul.mubr.f32.gmra.mrb[0].mxu0 %v566
        %v1302 = vpop.f32.mrb[0].mxu0
        %v1303 = vadd.f32 0.0, %v1302
        %v1304 = vpop.f32.mrb[0].mxu0
        %1305 = vmatprep.mubr.f32.mxu0 %v570
        %1306 = vmatmul.mubr.f32.gmra.mrb[0].mxu0 %v569
        %v1307 = vpop.f32.mrb[0].mxu0
        %v1308 = vadd.f32 0.0, %v1307
        %v1309 = vpop.f32.mrb[0].mxu0
        %1310 = vmatprep.mubr.f32.mxu0 %v573
        %1311 = vmatmul.mubr.f32.gmra.mrb[0].mxu0 %v572
        %v1312 = vpop.f32.mrb[0].mxu0
        %v1313 = vadd.f32 0.0, %v1312
        %v1314 = vpop.f32.mrb[0].mxu0
        %1315 = vmatprep.mubr.f32.mxu0 %v576
        %1316 = vmatmul.mubr.f32.gmra.mrb[0].mxu0 %v575
        %v1317 = vpop.f32.mrb[0].mxu0
        %v1318 = vadd.f32 0.0, %v1317
        %v1319 = vpop.f32.mrb[0].mxu0
        %1320 = vmatprep.mubr.f32.mxu0 %v579
        %1321 = vmatmul.mubr.f32.gmra.mrb[0].mxu0 %v578
        %v1322 = vpop.f32.mrb[0].mxu0
        %v1323 = vadd.f32 0.0, %v1322
        %v1324 = vpop.f32.mrb[0].mxu0
        %1325 = vmatprep.mubr.f32.mxu0 %v582
        %1326 = vmatmul.mubr.f32.gmra.mrb[0].mxu0 %v581
        %v1327 = vpop.f32.mrb[0].mxu0
        %v1328 = vadd.f32 0.0, %v1327
        %v1329 = vpop.f32.mrb[0].mxu0
        %1330 = vmatprep.mubr.f32.mxu0 %v585
        %1331 = vmatmul.mubr.f32.gmra.mrb[0].mxu0 %v584
        %v1332 = vpop.f32.mrb[0].mxu0
        %v1333 = vadd.f32 0.0, %v1332
        %v1334 = vpop.f32.mrb[0].mxu0
        %1335 = vmatprep.mubr.f32.mxu0 %v588
        %1336 = vmatmul.mubr.f32.gmra.mrb[0].mxu0 %v587
        %v1337 = vpop.f32.mrb[0].mxu0
        %v1338 = vadd.f32 0.0, %v1337
        %v1339 = vpop.f32.mrb[0].mxu0
        %1340 = vdwg.mxu0
        %1341 = vmatprep.subr.mxu0 0.0
        %1342 = vmatpush1.msra.mxu0 %v1220
        %1343 = vmatprep.subr.mxu0 0.0
        %1344 = vmatpush1.msra.mxu0 %v1221
        %1345 = vmatprep.subr.mxu0 0.0
        %1346 = vmatpush1.msra.mxu0 %v1222
        %1347 = vmatprep.subr.mxu0 0.0
        %1348 = vmatpush1.msra.mxu0 %v1223
        %1349 = vmatprep.subr.mxu0 0.0
        %1350 = vmatpush1.msra.mxu0 %v1224
        %1351 = vmatprep.subr.mxu0 0.0
        %1352 = vmatpush1.msra.mxu0 %v1225
        %1353 = vmatprep.subr.mxu0 0.0
        %1354 = vmatpush1.msra.mxu0 %v1226
        %1355 = vmatprep.subr.mxu0 0.0
        %1356 = vmatpush1.msra.mxu0 %v1227
        %1357 = vmatprep.subr.mxu0 0.0
        %1358 = vmatpush1.msra.mxu0 %v1228
        %1359 = vmatprep.subr.mxu0 0.0
        %1360 = vmatpush1.msra.mxu0 %v1229
        %1361 = vmatprep.subr.mxu0 0.0
        %1362 = vmatpush1.msra.mxu0 %v1230
        %1363 = vmatprep.subr.mxu0 0.0
        %1364 = vmatpush1.msra.mxu0 %v1231
        %1365 = vmatprep.subr.mxu0 0.0
        %1366 = vmatpush1.msra.mxu0 %v1232
        %1367 = vmatprep.subr.mxu0 0.0
        %1368 = vmatpush1.msra.mxu0 %v1233
        %1369 = vmatprep.subr.mxu0 0.0
        %1370 = vmatpush1.msra.mxu0 %v1234
        %1371 = vmatprep.subr.mxu0 0.0
        %1372 = vmatpush1.msra.mxu0 %v1235
        %1373 = vmatprep.subr.mxu0 0.0
        %1374 = vmatpush1.msra.mxu0 0.0
        %1375 = vmatprep.subr.mxu0 0.0
        %1376 = vmatpush1.msra.mxu0 0.0
        %1377 = vmatprep.subr.mxu0 0.0
        %1378 = vmatpush1.msra.mxu0 0.0
        %1379 = vmatprep.subr.mxu0 0.0
        %1380 = vmatpush1.msra.mxu0 0.0
        %1381 = vmatprep.subr.mxu0 0.0
        %1382 = vmatpush1.msra.mxu0 0.0
        %1383 = vmatprep.subr.mxu0 0.0
        %1384 = vmatpush1.msra.mxu0 0.0
        %1385 = vmatprep.subr.mxu0 0.0
        %1386 = vmatpush1.msra.mxu0 0.0
        %1387 = vmatprep.subr.mxu0 0.0
        %1388 = vmatpush1.msra.mxu0 0.0
        %1389 = vmatprep.subr.mxu0 0.0
        %1390 = vmatpush1.msra.mxu0 0.0
        %1391 = vmatprep.subr.mxu0 0.0
        %1392 = vmatpush1.msra.mxu0 0.0
        %1393 = vmatprep.subr.mxu0 0.0
        %1394 = vmatpush1.msra.mxu0 0.0
        %1395 = vmatprep.subr.mxu0 0.0
        %1396 = vmatpush1.msra.mxu0 0.0
        %1397 = vmatprep.subr.mxu0 0.0
        %1398 = vmatpush1.msra.mxu0 0.0
        %1399 = vmatprep.subr.mxu0 0.0
        %1400 = vmatpush1.msra.mxu0 0.0
        %1401 = vmatprep.subr.mxu0 0.0
        %1402 = vmatpush1.msra.mxu0 0.0
        %1403 = vmatprep.subr.mxu0 0.0
        %1404 = vmatpush1.msra.mxu0 0.0
        %1405 = vmatprep.mubr.f32.mxu0 0.0
        %1406 = vmatmul.mubr.f32.gmra.mrb[0].mxu0 %v608
        %v1407 = vpop.f32.mrb[0].mxu0
        %v1408 = vadd.f32 %v1303, %v1407
        %v1409 = vpop.f32.mrb[0].mxu0
        %1410 = vmatprep.mubr.f32.mxu0 0.0
        %1411 = vmatmul.mubr.f32.gmra.mrb[0].mxu0 %v611
        %v1412 = vpop.f32.mrb[0].mxu0
        %v1413 = vadd.f32 %v1308, %v1412
        %v1414 = vpop.f32.mrb[0].mxu0
        %1415 = vmatprep.mubr.f32.mxu0 0.0
        %1416 = vmatmul.mubr.f32.gmra.mrb[0].mxu0 %v614
        %v1417 = vpop.f32.mrb[0].mxu0
        %v1418 = vadd.f32 %v1313, %v1417
        %v1419 = vpop.f32.mrb[0].mxu0
        %1420 = vmatprep.mubr.f32.mxu0 0.0
        %1421 = vmatmul.mubr.f32.gmra.mrb[0].mxu0 %v617
        %v1422 = vpop.f32.mrb[0].mxu0
        %v1423 = vadd.f32 %v1318, %v1422
        %v1424 = vpop.f32.mrb[0].mxu0
        %1425 = vmatprep.mubr.f32.mxu0 0.0
        %1426 = vmatmul.mubr.f32.gmra.mrb[0].mxu0 %v620
        %v1427 = vpop.f32.mrb[0].mxu0
        %v1428 = vadd.f32 %v1323, %v1427
        %v1429 = vpop.f32.mrb[0].mxu0
        %1430 = vmatprep.mubr.f32.mxu0 0.0
        %1431 = vmatmul.mubr.f32.gmra.mrb[0].mxu0 %v623
        %v1432 = vpop.f32.mrb[0].mxu0
        %v1433 = vadd.f32 %v1328, %v1432
        %v1434 = vpop.f32.mrb[0].mxu0
        %1435 = vmatprep.mubr.f32.mxu0 0.0
        %1436 = vmatmul.mubr.f32.gmra.mrb[0].mxu0 %v626
        %v1437 = vpop.f32.mrb[0].mxu0
        %v1438 = vadd.f32 %v1333, %v1437
        %v1439 = vpop.f32.mrb[0].mxu0
        %1440 = vmatprep.mubr.f32.mxu0 0.0
        %1441 = vmatmul.mubr.f32.gmra.mrb[0].mxu0 %v629
        %v1442 = vpop.f32.mrb[0].mxu0
        %v1443 = vadd.f32 %v1338, %v1442
        %v1444 = vpop.f32.mrb[0].mxu0
        %1445 = vdwg.mxu0
        %v1446 = vld [vmem:[#allocation2] sm:$0xff]
        %v1447 = vld [vmem:[#allocation2 + $0x8] sm:$0xff]
        %v1448 = vld [vmem:[#allocation2 + $0x10] sm:$0xff]
        %v1449 = vld [vmem:[#allocation2 + $0x18] sm:$0xff]
        %v1450 = vld [vmem:[#allocation2 + $0x20] sm:$0xff]
        %v1451 = vld [vmem:[#allocation2 + $0x28] sm:$0xff]
        %v1452 = vld [vmem:[#allocation2 + $0x30] sm:$0xff]
        %v1453 = vld [vmem:[#allocation2 + $0x38] sm:$0xff]
        %v1454 = vadd.f32 %v1446, %v1408
        %v1455 = vadd.f32 %v1447, %v1413
        %v1456 = vadd.f32 %v1448, %v1418
        %v1457 = vadd.f32 %v1449, %v1423
        %v1458 = vadd.f32 %v1450, %v1428
        %v1459 = vadd.f32 %v1451, %v1433
        %v1460 = vadd.f32 %v1452, %v1438
        %v1461 = vadd.f32 %v1453, %v1443
        %1462 = vst [vmem:[#allocation2] sm:$0xff] %v1454
        %1463 = vst [vmem:[#allocation2 + $0x8] sm:$0xff] %v1455
        %1464 = vst [vmem:[#allocation2 + $0x10] sm:$0xff] %v1456
        %1465 = vst [vmem:[#allocation2 + $0x18] sm:$0xff] %v1457
        %1466 = vst [vmem:[#allocation2 + $0x20] sm:$0xff] %v1458
        %1467 = vst [vmem:[#allocation2 + $0x28] sm:$0xff] %v1459
        %1468 = vst [vmem:[#allocation2 + $0x30] sm:$0xff] %v1460
        %1469 = vst [vmem:[#allocation2 + $0x38] sm:$0xff] %v1461
        %v1470 = vld [vmem:[#allocation2] sm:$0xff]
        %v1471 = vld [vmem:[#allocation2 + $0x8] sm:$0xff]
        %v1472 = vld [vmem:[#allocation2 + $0x10] sm:$0xff]
        %v1473 = vld [vmem:[#allocation2 + $0x18] sm:$0xff]
        %v1474 = vld [vmem:[#allocation2 + $0x20] sm:$0xff]
        %v1475 = vld [vmem:[#allocation2 + $0x28] sm:$0xff]
        %v1476 = vld [vmem:[#allocation2 + $0x30] sm:$0xff]
        %v1477 = vld [vmem:[#allocation2 + $0x38] sm:$0xff]
        %v1478 = vld [vmem:[%s3] sm:$0x1]
        %v1480 = vlaneseq
        %v1481 = vshrl.u32 %v1480, 7
        %v1482 = vsub.s32 0, %v1481
        %v1483 = vrot.slane %v1478, %v1482
        %v1485 = vmul.f32 %v1470, %v1483
        %v1486 = vmul.f32 %v1471, %v1483
        %v1487 = vmul.f32 %v1472, %v1483
        %v1488 = vmul.f32 %v1473, %v1483
        %v1489 = vmul.f32 %v1474, %v1483
        %v1490 = vmul.f32 %v1475, %v1483
        %v1491 = vmul.f32 %v1476, %v1483
        %v1492 = vmul.f32 %v1477, %v1483
        %v1493 = vld [vmem:[%s4] sm:$0x1]
        %v1495 = vlaneseq
        %v1496 = vshrl.u32 %v1495, 7
        %v1497 = vsub.s32 0, %v1496
        %v1498 = vrot.slane %v1493, %v1497
        %v1500 = vadd.f32 %v1485, %v1498
        %v1501 = vadd.f32 %v1486, %v1498
        %v1502 = vadd.f32 %v1487, %v1498
        %v1503 = vadd.f32 %v1488, %v1498
        %v1504 = vadd.f32 %v1489, %v1498
        %v1505 = vadd.f32 %v1490, %v1498
        %v1506 = vadd.f32 %v1491, %v1498
        %v1507 = vadd.f32 %v1492, %v1498
        %v1508 = vmax.f32 %v1500, 0.0
        %v1509 = vmax.f32 %v1501, 0.0
        %v1510 = vmax.f32 %v1502, 0.0
        %v1511 = vmax.f32 %v1503, 0.0
        %v1512 = vmax.f32 %v1504, 0.0
        %v1513 = vmax.f32 %v1505, 0.0
        %v1514 = vmax.f32 %v1506, 0.0
        %v1515 = vmax.f32 %v1507, 0.0
        %1516 = vst [vmem:[#allocation3] sm:$0xff] 0.0
        %1517 = vst [vmem:[#allocation3 + $0x8] sm:$0x3] 0.0
        %1518 = vst [vmem:[#allocation3 + $0x10] sm:$0xff] 0.0
        %1519 = vst [vmem:[#allocation3 + $0x18] sm:$0x3] 0.0
        %1520 = vst [vmem:[#allocation3 + $0x20] sm:$0xff] 0.0
        %1521 = vst [vmem:[#allocation3 + $0x28] sm:$0x3] 0.0
        %1522 = vst [vmem:[#allocation3 + $0x30] sm:$0xff] 0.0
        %1523 = vst [vmem:[#allocation3 + $0x38] sm:$0x3] 0.0
        %1524 = vst [vmem:[#allocation3 + $0x40] sm:$0xff] 0.0
        %1525 = vst [vmem:[#allocation3 + $0x48] sm:$0x3] 0.0
        %1526 = vst [vmem:[#allocation3 + $0x50] sm:$0xff] 0.0
        %1527 = vst [vmem:[#allocation3 + $0x58] sm:$0x3] 0.0
        %1528 = vst [vmem:[#allocation3 + $0x60] sm:$0xff] 0.0
        %1529 = vst [vmem:[#allocation3 + $0x68] sm:$0x3] 0.0
        %1530 = vst [vmem:[#allocation3 + $0x70] sm:$0xff] 0.0
        %1531 = vst [vmem:[#allocation3 + $0x78] sm:$0x3] 0.0
        %1532 = vst [vmem:[#allocation3 + $0x80] sm:$0xff] 0.0
        %1533 = vst [vmem:[#allocation3 + $0x88] sm:$0x3] 0.0
        %1534 = vst [vmem:[#allocation3 + $0x90] sm:$0xff] 0.0
        %1535 = vst [vmem:[#allocation3 + $0x98] sm:$0x3] 0.0
        %s1536 = scalar_lea.vmem [#allocation3], 16
        %1537 = vst [vmem:[%s1536 + $0x1] sm:$0xff] %v1508
        %1538 = vst [vmem:[%s1536 + $0x11] sm:$0xff] %v1509
        %1539 = vst [vmem:[%s1536 + $0x21] sm:$0xff] %v1510
        %1540 = vst [vmem:[%s1536 + $0x31] sm:$0xff] %v1511
        %1541 = vst [vmem:[%s1536 + $0x41] sm:$0xff] %v1512
        %1542 = vst [vmem:[%s1536 + $0x51] sm:$0xff] %v1513
        %1543 = vst [vmem:[%s1536 + $0x61] sm:$0xff] %v1514
        %1544 = vst [vmem:[%s1536 + $0x71] sm:$0xff] %v1515
        %v1545 = vld [vmem:[#allocation3] sm:$0xff]
        %v1546 = vld [vmem:[#allocation3 + $0x8] sm:$0x3]
        %v1547 = vld [vmem:[#allocation3 + $0x10] sm:$0xff]
        %v1548 = vld [vmem:[#allocation3 + $0x18] sm:$0x3]
        %v1549 = vld [vmem:[#allocation3 + $0x20] sm:$0xff]
        %v1550 = vld [vmem:[#allocation3 + $0x28] sm:$0x3]
        %v1551 = vld [vmem:[#allocation3 + $0x30] sm:$0xff]
        %v1552 = vld [vmem:[#allocation3 + $0x38] sm:$0x3]
        %v1553 = vld [vmem:[#allocation3 + $0x40] sm:$0xff]
        %v1554 = vld [vmem:[#allocation3 + $0x48] sm:$0x3]
        %v1555 = vld [vmem:[#allocation3 + $0x50] sm:$0xff]
        %v1556 = vld [vmem:[#allocation3 + $0x58] sm:$0x3]
        %v1557 = vld [vmem:[#allocation3 + $0x60] sm:$0xff]
        %v1558 = vld [vmem:[#allocation3 + $0x68] sm:$0x3]
        %v1559 = vld [vmem:[#allocation3 + $0x70] sm:$0xff]
        %v1560 = vld [vmem:[#allocation3 + $0x78] sm:$0x3]
        %v1577 = vrot.slane %v1545, 1
        %v1578 = vrot.slane %v1546, 1
        %v1579 = vsel %vm460, %v1577, %v1578
        %v1580 = vrot.slane %v1547, 1
        %v1581 = vrot.slane %v1548, 1
        %v1582 = vsel %vm460, %v1580, %v1581
        %v1583 = vrot.slane %v1549, 1
        %v1584 = vrot.slane %v1550, 1
        %v1585 = vsel %vm460, %v1583, %v1584
        %v1586 = vrot.slane %v1551, 1
        %v1587 = vrot.slane %v1552, 1
        %v1588 = vsel %vm460, %v1586, %v1587
        %v1589 = vrot.slane %v1553, 1
        %v1590 = vrot.slane %v1554, 1
        %v1591 = vsel %vm460, %v1589, %v1590
        %v1592 = vrot.slane %v1555, 1
        %v1593 = vrot.slane %v1556, 1
        %v1594 = vsel %vm460, %v1592, %v1593
        %v1595 = vrot.slane %v1557, 1
        %v1596 = vrot.slane %v1558, 1
        %v1597 = vsel %vm460, %v1595, %v1596
        %v1598 = vrot.slane %v1559, 1
        %v1599 = vrot.slane %v1560, 1
        %v1600 = vsel %vm460, %v1598, %v1599
        %vm1609 = vcmask 1045504
        %v1610 = vrot.slane %v1545, 2
        %v1611 = vrot.slane %v1546, 2
        %v1612 = vsel %vm1609, %v1610, %v1611
        %v1613 = vrot.slane %v1547, 2
        %v1614 = vrot.slane %v1548, 2
        %v1615 = vsel %vm1609, %v1613, %v1614
        %v1616 = vrot.slane %v1549, 2
        %v1617 = vrot.slane %v1550, 2
        %v1618 = vsel %vm1609, %v1616, %v1617
        %v1619 = vrot.slane %v1551, 2
        %v1620 = vrot.slane %v1552, 2
        %v1621 = vsel %vm1609, %v1619, %v1620
        %v1622 = vrot.slane %v1553, 2
        %v1623 = vrot.slane %v1554, 2
        %v1624 = vsel %vm1609, %v1622, %v1623
        %v1625 = vrot.slane %v1555, 2
        %v1626 = vrot.slane %v1556, 2
        %v1627 = vsel %vm1609, %v1625, %v1626
        %v1628 = vrot.slane %v1557, 2
        %v1629 = vrot.slane %v1558, 2
        %v1630 = vsel %vm1609, %v1628, %v1629
        %v1631 = vrot.slane %v1559, 2
        %v1632 = vrot.slane %v1560, 2
        %v1633 = vsel %vm1609, %v1631, %v1632
        %v1642 = vld [vmem:[%s1536] sm:$0xff]
        %v1643 = vld [vmem:[%s1536 + $0x8] sm:$0x3]
        %v1644 = vld [vmem:[%s1536 + $0x10] sm:$0xff]
        %v1645 = vld [vmem:[%s1536 + $0x18] sm:$0x3]
        %v1646 = vld [vmem:[%s1536 + $0x20] sm:$0xff]
        %v1647 = vld [vmem:[%s1536 + $0x28] sm:$0x3]
        %v1648 = vld [vmem:[%s1536 + $0x30] sm:$0xff]
        %v1649 = vld [vmem:[%s1536 + $0x38] sm:$0x3]
        %v1650 = vld [vmem:[%s1536 + $0x40] sm:$0xff]
        %v1651 = vld [vmem:[%s1536 + $0x48] sm:$0x3]
        %v1652 = vld [vmem:[%s1536 + $0x50] sm:$0xff]
        %v1653 = vld [vmem:[%s1536 + $0x58] sm:$0x3]
        %v1654 = vld [vmem:[%s1536 + $0x60] sm:$0xff]
        %v1655 = vld [vmem:[%s1536 + $0x68] sm:$0x3]
        %v1656 = vld [vmem:[%s1536 + $0x70] sm:$0xff]
        %v1657 = vld [vmem:[%s1536 + $0x78] sm:$0x3]
        %v1674 = vrot.slane %v1642, 1
        %v1675 = vrot.slane %v1643, 1
        %v1676 = vsel %vm460, %v1674, %v1675
        %v1677 = vrot.slane %v1644, 1
        %v1678 = vrot.slane %v1645, 1
        %v1679 = vsel %vm460, %v1677, %v1678
        %v1680 = vrot.slane %v1646, 1
        %v1681 = vrot.slane %v1647, 1
        %v1682 = vsel %vm460, %v1680, %v1681
        %v1683 = vrot.slane %v1648, 1
        %v1684 = vrot.slane %v1649, 1
        %v1685 = vsel %vm460, %v1683, %v1684
        %v1686 = vrot.slane %v1650, 1
        %v1687 = vrot.slane %v1651, 1
        %v1688 = vsel %vm460, %v1686, %v1687
        %v1689 = vrot.slane %v1652, 1
        %v1690 = vrot.slane %v1653, 1
        %v1691 = vsel %vm460, %v1689, %v1690
        %v1692 = vrot.slane %v1654, 1
        %v1693 = vrot.slane %v1655, 1
        %v1694 = vsel %vm460, %v1692, %v1693
        %v1695 = vrot.slane %v1656, 1
        %v1696 = vrot.slane %v1657, 1
        %v1697 = vsel %vm460, %v1695, %v1696
        %v1706 = vrot.slane %v1642, 2
        %v1707 = vrot.slane %v1643, 2
        %v1708 = vsel %vm1609, %v1706, %v1707
        %v1709 = vrot.slane %v1644, 2
        %v1710 = vrot.slane %v1645, 2
        %v1711 = vsel %vm1609, %v1709, %v1710
        %v1712 = vrot.slane %v1646, 2
        %v1713 = vrot.slane %v1647, 2
        %v1714 = vsel %vm1609, %v1712, %v1713
        %v1715 = vrot.slane %v1648, 2
        %v1716 = vrot.slane %v1649, 2
        %v1717 = vsel %vm1609, %v1715, %v1716
        %v1718 = vrot.slane %v1650, 2
        %v1719 = vrot.slane %v1651, 2
        %v1720 = vsel %vm1609, %v1718, %v1719
        %v1721 = vrot.slane %v1652, 2
        %v1722 = vrot.slane %v1653, 2
        %v1723 = vsel %vm1609, %v1721, %v1722
        %v1724 = vrot.slane %v1654, 2
        %v1725 = vrot.slane %v1655, 2
        %v1726 = vsel %vm1609, %v1724, %v1725
        %v1727 = vrot.slane %v1656, 2
        %v1728 = vrot.slane %v1657, 2
        %v1729 = vsel %vm1609, %v1727, %v1728
        %s1738 = scalar_lea.vmem [#allocation3], 32
        %v1739 = vld [vmem:[%s1738] sm:$0xff]
        %v1740 = vld [vmem:[%s1738 + $0x8] sm:$0x3]
        %v1741 = vld [vmem:[%s1738 + $0x10] sm:$0xff]
        %v1742 = vld [vmem:[%s1738 + $0x18] sm:$0x3]
        %v1743 = vld [vmem:[%s1738 + $0x20] sm:$0xff]
        %v1744 = vld [vmem:[%s1738 + $0x28] sm:$0x3]
        %v1745 = vld [vmem:[%s1738 + $0x30] sm:$0xff]
        %v1746 = vld [vmem:[%s1738 + $0x38] sm:$0x3]
        %v1747 = vld [vmem:[%s1738 + $0x40] sm:$0xff]
        %v1748 = vld [vmem:[%s1738 + $0x48] sm:$0x3]
        %v1749 = vld [vmem:[%s1738 + $0x50] sm:$0xff]
        %v1750 = vld [vmem:[%s1738 + $0x58] sm:$0x3]
        %v1751 = vld [vmem:[%s1738 + $0x60] sm:$0xff]
        %v1752 = vld [vmem:[%s1738 + $0x68] sm:$0x3]
        %v1753 = vld [vmem:[%s1738 + $0x70] sm:$0xff]
        %v1754 = vld [vmem:[%s1738 + $0x78] sm:$0x3]
        %v1771 = vrot.slane %v1739, 1
        %v1772 = vrot.slane %v1740, 1
        %v1773 = vsel %vm460, %v1771, %v1772
        %v1774 = vrot.slane %v1741, 1
        %v1775 = vrot.slane %v1742, 1
        %v1776 = vsel %vm460, %v1774, %v1775
        %v1777 = vrot.slane %v1743, 1
        %v1778 = vrot.slane %v1744, 1
        %v1779 = vsel %vm460, %v1777, %v1778
        %v1780 = vrot.slane %v1745, 1
        %v1781 = vrot.slane %v1746, 1
        %v1782 = vsel %vm460, %v1780, %v1781
        %v1783 = vrot.slane %v1747, 1
        %v1784 = vrot.slane %v1748, 1
        %v1785 = vsel %vm460, %v1783, %v1784
        %v1786 = vrot.slane %v1749, 1
        %v1787 = vrot.slane %v1750, 1
        %v1788 = vsel %vm460, %v1786, %v1787
        %v1789 = vrot.slane %v1751, 1
        %v1790 = vrot.slane %v1752, 1
        %v1791 = vsel %vm460, %v1789, %v1790
        %v1792 = vrot.slane %v1753, 1
        %v1793 = vrot.slane %v1754, 1
        %v1794 = vsel %vm460, %v1792, %v1793
        %v1803 = vrot.slane %v1739, 2
        %v1804 = vrot.slane %v1740, 2
        %v1805 = vsel %vm1609, %v1803, %v1804
        %v1806 = vrot.slane %v1741, 2
        %v1807 = vrot.slane %v1742, 2
        %v1808 = vsel %vm1609, %v1806, %v1807
        %v1809 = vrot.slane %v1743, 2
        %v1810 = vrot.slane %v1744, 2
        %v1811 = vsel %vm1609, %v1809, %v1810
        %v1812 = vrot.slane %v1745, 2
        %v1813 = vrot.slane %v1746, 2
        %v1814 = vsel %vm1609, %v1812, %v1813
        %v1815 = vrot.slane %v1747, 2
        %v1816 = vrot.slane %v1748, 2
        %v1817 = vsel %vm1609, %v1815, %v1816
        %v1818 = vrot.slane %v1749, 2
        %v1819 = vrot.slane %v1750, 2
        %v1820 = vsel %vm1609, %v1818, %v1819
        %v1821 = vrot.slane %v1751, 2
        %v1822 = vrot.slane %v1752, 2
        %v1823 = vsel %vm1609, %v1821, %v1822
        %v1824 = vrot.slane %v1753, 2
        %v1825 = vrot.slane %v1754, 2
        %v1826 = vsel %vm1609, %v1824, %v1825
        %v1835 = vld [vmem:[#allocation4] sm:$0xff]
        %v1836 = vld [vmem:[#allocation4 + $0x8] sm:$0xff]
        %v1837 = vld [vmem:[#allocation4 + $0x10] sm:$0xff]
        %v1838 = vld [vmem:[#allocation4 + $0x18] sm:$0xff]
        %v1839 = vld [vmem:[#allocation4 + $0x20] sm:$0xff]
        %v1840 = vld [vmem:[#allocation4 + $0x28] sm:$0xff]
        %v1841 = vld [vmem:[#allocation4 + $0x30] sm:$0xff]
        %v1842 = vld [vmem:[#allocation4 + $0x38] sm:$0xff]
        %v1843 = vld [vmem:[#allocation4 + $0x40] sm:$0xff]
        %v1844 = vld [vmem:[#allocation4 + $0x48] sm:$0xff]
        %v1845 = vld [vmem:[#allocation4 + $0x50] sm:$0xff]
        %v1846 = vld [vmem:[#allocation4 + $0x58] sm:$0xff]
        %v1847 = vld [vmem:[#allocation4 + $0x60] sm:$0xff]
        %v1848 = vld [vmem:[#allocation4 + $0x68] sm:$0xff]
        %v1849 = vld [vmem:[#allocation4 + $0x70] sm:$0xff]
        %v1850 = vld [vmem:[#allocation4 + $0x78] sm:$0xff]
        %v1851 = vld [vmem:[#allocation4 + $0x80] sm:$0xff]
        %v1852 = vld [vmem:[#allocation4 + $0x88] sm:$0xff]
        %v1853 = vld [vmem:[#allocation4 + $0x90] sm:$0xff]
        %v1854 = vld [vmem:[#allocation4 + $0x98] sm:$0xff]
        %v1855 = vld [vmem:[#allocation4 + $0xa0] sm:$0xff]
        %v1856 = vld [vmem:[#allocation4 + $0xa8] sm:$0xff]
        %v1857 = vld [vmem:[#allocation4 + $0xb0] sm:$0xff]
        %v1858 = vld [vmem:[#allocation4 + $0xb8] sm:$0xff]
        %v1859 = vld [vmem:[#allocation4 + $0xc0] sm:$0xff]
        %v1860 = vld [vmem:[#allocation4 + $0xc8] sm:$0xff]
        %v1861 = vld [vmem:[#allocation4 + $0xd0] sm:$0xff]
        %v1862 = vld [vmem:[#allocation4 + $0xd8] sm:$0xff]
        %v1863 = vld [vmem:[#allocation4 + $0xe0] sm:$0xff]
        %v1864 = vld [vmem:[#allocation4 + $0xe8] sm:$0xff]
        %v1865 = vld [vmem:[#allocation4 + $0xf0] sm:$0xff]
        %v1866 = vld [vmem:[#allocation4 + $0xf8] sm:$0xff]
        %v1867 = vld [vmem:[#allocation4 + $0x100] sm:$0xff]
        %v1868 = vld [vmem:[#allocation4 + $0x108] sm:$0xff]
        %v1869 = vld [vmem:[#allocation4 + $0x110] sm:$0xff]
        %v1870 = vld [vmem:[#allocation4 + $0x118] sm:$0xff]
        %v1871 = vld [vmem:[#allocation4 + $0x120] sm:$0xff]
        %v1872 = vld [vmem:[#allocation4 + $0x128] sm:$0xff]
        %v1873 = vld [vmem:[#allocation4 + $0x130] sm:$0xff]
        %v1874 = vld [vmem:[#allocation4 + $0x138] sm:$0xff]
        %v1875 = vld [vmem:[#allocation4 + $0x140] sm:$0xff]
        %v1876 = vld [vmem:[#allocation4 + $0x148] sm:$0xff]
        %v1877 = vld [vmem:[#allocation4 + $0x150] sm:$0xff]
        %v1878 = vld [vmem:[#allocation4 + $0x158] sm:$0xff]
        %v1879 = vld [vmem:[#allocation4 + $0x160] sm:$0xff]
        %v1880 = vld [vmem:[#allocation4 + $0x168] sm:$0xff]
        %v1881 = vld [vmem:[#allocation4 + $0x170] sm:$0xff]
        %v1882 = vld [vmem:[#allocation4 + $0x178] sm:$0xff]
        %1883 = vmatprep.subr.mxu0 0.0
        %1884 = vmatpush1.msra.mxu0 %v1835
        %1885 = vmatprep.subr.mxu0 0.0
        %1886 = vmatpush1.msra.mxu0 %v1836
        %1887 = vmatprep.subr.mxu0 0.0
        %1888 = vmatpush1.msra.mxu0 %v1837
        %1889 = vmatprep.subr.mxu0 0.0
        %1890 = vmatpush1.msra.mxu0 %v1838
        %1891 = vmatprep.subr.mxu0 0.0
        %1892 = vmatpush1.msra.mxu0 %v1839
        %1893 = vmatprep.subr.mxu0 0.0
        %1894 = vmatpush1.msra.mxu0 %v1840
        %1895 = vmatprep.subr.mxu0 0.0
        %1896 = vmatpush1.msra.mxu0 %v1841
        %1897 = vmatprep.subr.mxu0 0.0
        %1898 = vmatpush1.msra.mxu0 %v1842
        %1899 = vmatprep.subr.mxu0 0.0
        %1900 = vmatpush1.msra.mxu0 %v1843
        %1901 = vmatprep.subr.mxu0 0.0
        %1902 = vmatpush1.msra.mxu0 %v1844
        %1903 = vmatprep.subr.mxu0 0.0
        %1904 = vmatpush1.msra.mxu0 %v1845
        %1905 = vmatprep.subr.mxu0 0.0
        %1906 = vmatpush1.msra.mxu0 %v1846
        %1907 = vmatprep.subr.mxu0 0.0
        %1908 = vmatpush1.msra.mxu0 %v1847
        %1909 = vmatprep.subr.mxu0 0.0
        %1910 = vmatpush1.msra.mxu0 %v1848
        %1911 = vmatprep.subr.mxu0 0.0
        %1912 = vmatpush1.msra.mxu0 %v1849
        %1913 = vmatprep.subr.mxu0 0.0
        %1914 = vmatpush1.msra.mxu0 %v1850
        %1915 = vmatprep.subr.mxu0 0.0
        %1916 = vmatpush1.msra.mxu0 %v1851
        %1917 = vmatprep.subr.mxu0 0.0
        %1918 = vmatpush1.msra.mxu0 %v1852
        %1919 = vmatprep.subr.mxu0 0.0
        %1920 = vmatpush1.msra.mxu0 %v1853
        %1921 = vmatprep.subr.mxu0 0.0
        %1922 = vmatpush1.msra.mxu0 %v1854
        %1923 = vmatprep.subr.mxu0 0.0
        %1924 = vmatpush1.msra.mxu0 %v1855
        %1925 = vmatprep.subr.mxu0 0.0
        %1926 = vmatpush1.msra.mxu0 %v1856
        %1927 = vmatprep.subr.mxu0 0.0
        %1928 = vmatpush1.msra.mxu0 %v1857
        %1929 = vmatprep.subr.mxu0 0.0
        %1930 = vmatpush1.msra.mxu0 %v1858
        %1931 = vmatprep.subr.mxu0 0.0
        %1932 = vmatpush1.msra.mxu0 %v1859
        %1933 = vmatprep.subr.mxu0 0.0
        %1934 = vmatpush1.msra.mxu0 %v1860
        %1935 = vmatprep.subr.mxu0 0.0
        %1936 = vmatpush1.msra.mxu0 %v1861
        %1937 = vmatprep.subr.mxu0 0.0
        %1938 = vmatpush1.msra.mxu0 %v1862
        %1939 = vmatprep.subr.mxu0 0.0
        %1940 = vmatpush1.msra.mxu0 %v1863
        %1941 = vmatprep.subr.mxu0 0.0
        %1942 = vmatpush1.msra.mxu0 %v1864
        %1943 = vmatprep.subr.mxu0 0.0
        %1944 = vmatpush1.msra.mxu0 %v1865
        %1945 = vmatprep.subr.mxu0 0.0
        %1946 = vmatpush1.msra.mxu0 %v1866
        %1947 = vmatprep.mubr.f32.mxu0 %v1579
        %1948 = vmatmul.mubr.f32.gmra.mrb[0].mxu0 %v1545
        %v1949 = vpop.f32.mrb[0].mxu0
        %v1950 = vadd.f32 0.0, %v1949
        %v1951 = vpop.f32.mrb[0].mxu0
        %1952 = vmatprep.mubr.f32.mxu0 %v1582
        %1953 = vmatmul.mubr.f32.gmra.mrb[0].mxu0 %v1547
        %v1954 = vpop.f32.mrb[0].mxu0
        %v1955 = vadd.f32 0.0, %v1954
        %v1956 = vpop.f32.mrb[0].mxu0
        %1957 = vmatprep.mubr.f32.mxu0 %v1585
        %1958 = vmatmul.mubr.f32.gmra.mrb[0].mxu0 %v1549
        %v1959 = vpop.f32.mrb[0].mxu0
        %v1960 = vadd.f32 0.0, %v1959
        %v1961 = vpop.f32.mrb[0].mxu0
        %1962 = vmatprep.mubr.f32.mxu0 %v1588
        %1963 = vmatmul.mubr.f32.gmra.mrb[0].mxu0 %v1551
        %v1964 = vpop.f32.mrb[0].mxu0
        %v1965 = vadd.f32 0.0, %v1964
        %v1966 = vpop.f32.mrb[0].mxu0
        %1967 = vmatprep.mubr.f32.mxu0 %v1591
        %1968 = vmatmul.mubr.f32.gmra.mrb[0].mxu0 %v1553
        %v1969 = vpop.f32.mrb[0].mxu0
        %v1970 = vadd.f32 0.0, %v1969
        %v1971 = vpop.f32.mrb[0].mxu0
        %1972 = vmatprep.mubr.f32.mxu0 %v1594
        %1973 = vmatmul.mubr.f32.gmra.mrb[0].mxu0 %v1555
        %v1974 = vpop.f32.mrb[0].mxu0
        %v1975 = vadd.f32 0.0, %v1974
        %v1976 = vpop.f32.mrb[0].mxu0
        %1977 = vmatprep.mubr.f32.mxu0 %v1597
        %1978 = vmatmul.mubr.f32.gmra.mrb[0].mxu0 %v1557
        %v1979 = vpop.f32.mrb[0].mxu0
        %v1980 = vadd.f32 0.0, %v1979
        %v1981 = vpop.f32.mrb[0].mxu0
        %1982 = vmatprep.mubr.f32.mxu0 %v1600
        %1983 = vmatmul.mubr.f32.gmra.mrb[0].mxu0 %v1559
        %v1984 = vpop.f32.mrb[0].mxu0
        %v1985 = vadd.f32 0.0, %v1984
        %v1986 = vpop.f32.mrb[0].mxu0
        %1987 = vdwg.mxu0
        %1988 = vmatprep.subr.mxu0 0.0
        %1989 = vmatpush1.msra.mxu0 %v1867
        %1990 = vmatprep.subr.mxu0 0.0
        %1991 = vmatpush1.msra.mxu0 %v1868
        %1992 = vmatprep.subr.mxu0 0.0
        %1993 = vmatpush1.msra.mxu0 %v1869
        %1994 = vmatprep.subr.mxu0 0.0
        %1995 = vmatpush1.msra.mxu0 %v1870
        %1996 = vmatprep.subr.mxu0 0.0
        %1997 = vmatpush1.msra.mxu0 %v1871
        %1998 = vmatprep.subr.mxu0 0.0
        %1999 = vmatpush1.msra.mxu0 %v1872
        %2000 = vmatprep.subr.mxu0 0.0
        %2001 = vmatpush1.msra.mxu0 %v1873
        %2002 = vmatprep.subr.mxu0 0.0
        %2003 = vmatpush1.msra.mxu0 %v1874
        %2004 = vmatprep.subr.mxu0 0.0
        %2005 = vmatpush1.msra.mxu0 %v1875
        %2006 = vmatprep.subr.mxu0 0.0
        %2007 = vmatpush1.msra.mxu0 %v1876
        %2008 = vmatprep.subr.mxu0 0.0
        %2009 = vmatpush1.msra.mxu0 %v1877
        %2010 = vmatprep.subr.mxu0 0.0
        %2011 = vmatpush1.msra.mxu0 %v1878
        %2012 = vmatprep.subr.mxu0 0.0
        %2013 = vmatpush1.msra.mxu0 %v1879
        %2014 = vmatprep.subr.mxu0 0.0
        %2015 = vmatpush1.msra.mxu0 %v1880
        %2016 = vmatprep.subr.mxu0 0.0
        %2017 = vmatpush1.msra.mxu0 %v1881
        %2018 = vmatprep.subr.mxu0 0.0
        %2019 = vmatpush1.msra.mxu0 %v1882
        %2020 = vmatprep.subr.mxu0 0.0
        %2021 = vmatpush1.msra.mxu0 0.0
        %2022 = vmatprep.subr.mxu0 0.0
        %2023 = vmatpush1.msra.mxu0 0.0
        %2024 = vmatprep.subr.mxu0 0.0
        %2025 = vmatpush1.msra.mxu0 0.0
        %2026 = vmatprep.subr.mxu0 0.0
        %2027 = vmatpush1.msra.mxu0 0.0
        %2028 = vmatprep.subr.mxu0 0.0
        %2029 = vmatpush1.msra.mxu0 0.0
        %2030 = vmatprep.subr.mxu0 0.0
        %2031 = vmatpush1.msra.mxu0 0.0
        %2032 = vmatprep.subr.mxu0 0.0
        %2033 = vmatpush1.msra.mxu0 0.0
        %2034 = vmatprep.subr.mxu0 0.0
        %2035 = vmatpush1.msra.mxu0 0.0
        %2036 = vmatprep.subr.mxu0 0.0
        %2037 = vmatpush1.msra.mxu0 0.0
        %2038 = vmatprep.subr.mxu0 0.0
        %2039 = vmatpush1.msra.mxu0 0.0
        %2040 = vmatprep.subr.mxu0 0.0
        %2041 = vmatpush1.msra.mxu0 0.0
        %2042 = vmatprep.subr.mxu0 0.0
        %2043 = vmatpush1.msra.mxu0 0.0
        %2044 = vmatprep.subr.mxu0 0.0
        %2045 = vmatpush1.msra.mxu0 0.0
        %2046 = vmatprep.subr.mxu0 0.0
        %2047 = vmatpush1.msra.mxu0 0.0
        %2048 = vmatprep.subr.mxu0 0.0
        %2049 = vmatpush1.msra.mxu0 0.0
        %2050 = vmatprep.subr.mxu0 0.0
        %2051 = vmatpush1.msra.mxu0 0.0
        %2052 = vmatprep.mubr.f32.mxu0 0.0
        %2053 = vmatmul.mubr.f32.gmra.mrb[0].mxu0 %v1612
        %v2054 = vpop.f32.mrb[0].mxu0
        %v2055 = vadd.f32 %v1950, %v2054
        %v2056 = vpop.f32.mrb[0].mxu0
        %2057 = vmatprep.mubr.f32.mxu0 0.0
        %2058 = vmatmul.mubr.f32.gmra.mrb[0].mxu0 %v1615
        %v2059 = vpop.f32.mrb[0].mxu0
        %v2060 = vadd.f32 %v1955, %v2059
        %v2061 = vpop.f32.mrb[0].mxu0
        %2062 = vmatprep.mubr.f32.mxu0 0.0
        %2063 = vmatmul.mubr.f32.gmra.mrb[0].mxu0 %v1618
        %v2064 = vpop.f32.mrb[0].mxu0
        %v2065 = vadd.f32 %v1960, %v2064
        %v2066 = vpop.f32.mrb[0].mxu0
        %2067 = vmatprep.mubr.f32.mxu0 0.0
        %2068 = vmatmul.mubr.f32.gmra.mrb[0].mxu0 %v1621
        %v2069 = vpop.f32.mrb[0].mxu0
        %v2070 = vadd.f32 %v1965, %v2069
        %v2071 = vpop.f32.mrb[0].mxu0
        %2072 = vmatprep.mubr.f32.mxu0 0.0
        %2073 = vmatmul.mubr.f32.gmra.mrb[0].mxu0 %v1624
        %v2074 = vpop.f32.mrb[0].mxu0
        %v2075 = vadd.f32 %v1970, %v2074
        %v2076 = vpop.f32.mrb[0].mxu0
        %2077 = vmatprep.mubr.f32.mxu0 0.0
        %2078 = vmatmul.mubr.f32.gmra.mrb[0].mxu0 %v1627
        %v2079 = vpop.f32.mrb[0].mxu0
        %v2080 = vadd.f32 %v1975, %v2079
        %v2081 = vpop.f32.mrb[0].mxu0
        %2082 = vmatprep.mubr.f32.mxu0 0.0
        %2083 = vmatmul.mubr.f32.gmra.mrb[0].mxu0 %v1630
        %v2084 = vpop.f32.mrb[0].mxu0
        %v2085 = vadd.f32 %v1980, %v2084
        %v2086 = vpop.f32.mrb[0].mxu0
        %2087 = vmatprep.mubr.f32.mxu0 0.0
        %2088 = vmatmul.mubr.f32.gmra.mrb[0].mxu0 %v1633
        %v2089 = vpop.f32.mrb[0].mxu0
        %v2090 = vadd.f32 %v1985, %v2089
        %v2091 = vpop.f32.mrb[0].mxu0
        %2092 = vdwg.mxu0
        %2093 = vst [vmem:[#allocation2] sm:$0xff] %v2055
        %2094 = vst [vmem:[#allocation2 + $0x8] sm:$0xff] %v2060
        %2095 = vst [vmem:[#allocation2 + $0x10] sm:$0xff] %v2065
        %2096 = vst [vmem:[#allocation2 + $0x18] sm:$0xff] %v2070
        %2097 = vst [vmem:[#allocation2 + $0x20] sm:$0xff] %v2075
        %2098 = vst [vmem:[#allocation2 + $0x28] sm:$0xff] %v2080
        %2099 = vst [vmem:[#allocation2 + $0x30] sm:$0xff] %v2085
        %2100 = vst [vmem:[#allocation2 + $0x38] sm:$0xff] %v2090
        %s2101 = scalar_lea.vmem [#allocation4], 384
        %v2102 = vld [vmem:[%s2101] sm:$0xff]
        %v2103 = vld [vmem:[%s2101 + $0x8] sm:$0xff]
        %v2104 = vld [vmem:[%s2101 + $0x10] sm:$0xff]
        %v2105 = vld [vmem:[%s2101 + $0x18] sm:$0xff]
        %v2106 = vld [vmem:[%s2101 + $0x20] sm:$0xff]
        %v2107 = vld [vmem:[%s2101 + $0x28] sm:$0xff]
        %v2108 = vld [vmem:[%s2101 + $0x30] sm:$0xff]
        %v2109 = vld [vmem:[%s2101 + $0x38] sm:$0xff]
        %v2110 = vld [vmem:[%s2101 + $0x40] sm:$0xff]
        %v2111 = vld [vmem:[%s2101 + $0x48] sm:$0xff]
        %v2112 = vld [vmem:[%s2101 + $0x50] sm:$0xff]
        %v2113 = vld [vmem:[%s2101 + $0x58] sm:$0xff]
        %v2114 = vld [vmem:[%s2101 + $0x60] sm:$0xff]
        %v2115 = vld [vmem:[%s2101 + $0x68] sm:$0xff]
        %v2116 = vld [vmem:[%s2101 + $0x70] sm:$0xff]
        %v2117 = vld [vmem:[%s2101 + $0x78] sm:$0xff]
        %v2118 = vld [vmem:[%s2101 + $0x80] sm:$0xff]
        %v2119 = vld [vmem:[%s2101 + $0x88] sm:$0xff]
        %v2120 = vld [vmem:[%s2101 + $0x90] sm:$0xff]
        %v2121 = vld [vmem:[%s2101 + $0x98] sm:$0xff]
        %v2122 = vld [vmem:[%s2101 + $0xa0] sm:$0xff]
        %v2123 = vld [vmem:[%s2101 + $0xa8] sm:$0xff]
        %v2124 = vld [vmem:[%s2101 + $0xb0] sm:$0xff]
        %v2125 = vld [vmem:[%s2101 + $0xb8] sm:$0xff]
        %v2126 = vld [vmem:[%s2101 + $0xc0] sm:$0xff]
        %v2127 = vld [vmem:[%s2101 + $0xc8] sm:$0xff]
        %v2128 = vld [vmem:[%s2101 + $0xd0] sm:$0xff]
        %v2129 = vld [vmem:[%s2101 + $0xd8] sm:$0xff]
        %v2130 = vld [vmem:[%s2101 + $0xe0] sm:$0xff]
        %v2131 = vld [vmem:[%s2101 + $0xe8] sm:$0xff]
        %v2132 = vld [vmem:[%s2101 + $0xf0] sm:$0xff]
        %v2133 = vld [vmem:[%s2101 + $0xf8] sm:$0xff]
        %v2134 = vld [vmem:[%s2101 + $0x100] sm:$0xff]
        %v2135 = vld [vmem:[%s2101 + $0x108] sm:$0xff]
        %v2136 = vld [vmem:[%s2101 + $0x110] sm:$0xff]
        %v2137 = vld [vmem:[%s2101 + $0x118] sm:$0xff]
        %v2138 = vld [vmem:[%s2101 + $0x120] sm:$0xff]
        %v2139 = vld [vmem:[%s2101 + $0x128] sm:$0xff]
        %v2140 = vld [vmem:[%s2101 + $0x130] sm:$0xff]
        %v2141 = vld [vmem:[%s2101 + $0x138] sm:$0xff]
        %v2142 = vld [vmem:[%s2101 + $0x140] sm:$0xff]
        %v2143 = vld [vmem:[%s2101 + $0x148] sm:$0xff]
        %v2144 = vld [vmem:[%s2101 + $0x150] sm:$0xff]
        %v2145 = vld [vmem:[%s2101 + $0x158] sm:$0xff]
        %v2146 = vld [vmem:[%s2101 + $0x160] sm:$0xff]
        %v2147 = vld [vmem:[%s2101 + $0x168] sm:$0xff]
        %v2148 = vld [vmem:[%s2101 + $0x170] sm:$0xff]
        %v2149 = vld [vmem:[%s2101 + $0x178] sm:$0xff]
        %2150 = vmatprep.subr.mxu0 0.0
        %2151 = vmatpush1.msra.mxu0 %v2102
        %2152 = vmatprep.subr.mxu0 0.0
        %2153 = vmatpush1.msra.mxu0 %v2103
        %2154 = vmatprep.subr.mxu0 0.0
        %2155 = vmatpush1.msra.mxu0 %v2104
        %2156 = vmatprep.subr.mxu0 0.0
        %2157 = vmatpush1.msra.mxu0 %v2105
        %2158 = vmatprep.subr.mxu0 0.0
        %2159 = vmatpush1.msra.mxu0 %v2106
        %2160 = vmatprep.subr.mxu0 0.0
        %2161 = vmatpush1.msra.mxu0 %v2107
        %2162 = vmatprep.subr.mxu0 0.0
        %2163 = vmatpush1.msra.mxu0 %v2108
        %2164 = vmatprep.subr.mxu0 0.0
        %2165 = vmatpush1.msra.mxu0 %v2109
        %2166 = vmatprep.subr.mxu0 0.0
        %2167 = vmatpush1.msra.mxu0 %v2110
        %2168 = vmatprep.subr.mxu0 0.0
        %2169 = vmatpush1.msra.mxu0 %v2111
        %2170 = vmatprep.subr.mxu0 0.0
        %2171 = vmatpush1.msra.mxu0 %v2112
        %2172 = vmatprep.subr.mxu0 0.0
        %2173 = vmatpush1.msra.mxu0 %v2113
        %2174 = vmatprep.subr.mxu0 0.0
        %2175 = vmatpush1.msra.mxu0 %v2114
        %2176 = vmatprep.subr.mxu0 0.0
        %2177 = vmatpush1.msra.mxu0 %v2115
        %2178 = vmatprep.subr.mxu0 0.0
        %2179 = vmatpush1.msra.mxu0 %v2116
        %2180 = vmatprep.subr.mxu0 0.0
        %2181 = vmatpush1.msra.mxu0 %v2117
        %2182 = vmatprep.subr.mxu0 0.0
        %2183 = vmatpush1.msra.mxu0 %v2118
        %2184 = vmatprep.subr.mxu0 0.0
        %2185 = vmatpush1.msra.mxu0 %v2119
        %2186 = vmatprep.subr.mxu0 0.0
        %2187 = vmatpush1.msra.mxu0 %v2120
        %2188 = vmatprep.subr.mxu0 0.0
        %2189 = vmatpush1.msra.mxu0 %v2121
        %2190 = vmatprep.subr.mxu0 0.0
        %2191 = vmatpush1.msra.mxu0 %v2122
        %2192 = vmatprep.subr.mxu0 0.0
        %2193 = vmatpush1.msra.mxu0 %v2123
        %2194 = vmatprep.subr.mxu0 0.0
        %2195 = vmatpush1.msra.mxu0 %v2124
        %2196 = vmatprep.subr.mxu0 0.0
        %2197 = vmatpush1.msra.mxu0 %v2125
        %2198 = vmatprep.subr.mxu0 0.0
        %2199 = vmatpush1.msra.mxu0 %v2126
        %2200 = vmatprep.subr.mxu0 0.0
        %2201 = vmatpush1.msra.mxu0 %v2127
        %2202 = vmatprep.subr.mxu0 0.0
        %2203 = vmatpush1.msra.mxu0 %v2128
        %2204 = vmatprep.subr.mxu0 0.0
        %2205 = vmatpush1.msra.mxu0 %v2129
        %2206 = vmatprep.subr.mxu0 0.0
        %2207 = vmatpush1.msra.mxu0 %v2130
        %2208 = vmatprep.subr.mxu0 0.0
        %2209 = vmatpush1.msra.mxu0 %v2131
        %2210 = vmatprep.subr.mxu0 0.0
        %2211 = vmatpush1.msra.mxu0 %v2132
        %2212 = vmatprep.subr.mxu0 0.0
        %2213 = vmatpush1.msra.mxu0 %v2133
        %2214 = vmatprep.mubr.f32.mxu0 %v1676
        %2215 = vmatmul.mubr.f32.gmra.mrb[0].mxu0 %v1642
        %v2216 = vpop.f32.mrb[0].mxu0
        %v2217 = vadd.f32 0.0, %v2216
        %v2218 = vpop.f32.mrb[0].mxu0
        %2219 = vmatprep.mubr.f32.mxu0 %v1679
        %2220 = vmatmul.mubr.f32.gmra.mrb[0].mxu0 %v1644
        %v2221 = vpop.f32.mrb[0].mxu0
        %v2222 = vadd.f32 0.0, %v2221
        %v2223 = vpop.f32.mrb[0].mxu0
        %2224 = vmatprep.mubr.f32.mxu0 %v1682
        %2225 = vmatmul.mubr.f32.gmra.mrb[0].mxu0 %v1646
        %v2226 = vpop.f32.mrb[0].mxu0
        %v2227 = vadd.f32 0.0, %v2226
        %v2228 = vpop.f32.mrb[0].mxu0
        %2229 = vmatprep.mubr.f32.mxu0 %v1685
        %2230 = vmatmul.mubr.f32.gmra.mrb[0].mxu0 %v1648
        %v2231 = vpop.f32.mrb[0].mxu0
        %v2232 = vadd.f32 0.0, %v2231
        %v2233 = vpop.f32.mrb[0].mxu0
        %2234 = vmatprep.mubr.f32.mxu0 %v1688
        %2235 = vmatmul.mubr.f32.gmra.mrb[0].mxu0 %v1650
        %v2236 = vpop.f32.mrb[0].mxu0
        %v2237 = vadd.f32 0.0, %v2236
        %v2238 = vpop.f32.mrb[0].mxu0
        %2239 = vmatprep.mubr.f32.mxu0 %v1691
        %2240 = vmatmul.mubr.f32.gmra.mrb[0].mxu0 %v1652
        %v2241 = vpop.f32.mrb[0].mxu0
        %v2242 = vadd.f32 0.0, %v2241
        %v2243 = vpop.f32.mrb[0].mxu0
        %2244 = vmatprep.mubr.f32.mxu0 %v1694
        %2245 = vmatmul.mubr.f32.gmra.mrb[0].mxu0 %v1654
        %v2246 = vpop.f32.mrb[0].mxu0
        %v2247 = vadd.f32 0.0, %v2246
        %v2248 = vpop.f32.mrb[0].mxu0
        %2249 = vmatprep.mubr.f32.mxu0 %v1697
        %2250 = vmatmul.mubr.f32.gmra.mrb[0].mxu0 %v1656
        %v2251 = vpop.f32.mrb[0].mxu0
        %v2252 = vadd.f32 0.0, %v2251
        %v2253 = vpop.f32.mrb[0].mxu0
        %2254 = vdwg.mxu0
        %2255 = vmatprep.subr.mxu0 0.0
        %2256 = vmatpush1.msra.mxu0 %v2134
        %2257 = vmatprep.subr.mxu0 0.0
        %2258 = vmatpush1.msra.mxu0 %v2135
        %2259 = vmatprep.subr.mxu0 0.0
        %2260 = vmatpush1.msra.mxu0 %v2136
        %2261 = vmatprep.subr.mxu0 0.0
        %2262 = vmatpush1.msra.mxu0 %v2137
        %2263 = vmatprep.subr.mxu0 0.0
        %2264 = vmatpush1.msra.mxu0 %v2138
        %2265 = vmatprep.subr.mxu0 0.0
        %2266 = vmatpush1.msra.mxu0 %v2139
        %2267 = vmatprep.subr.mxu0 0.0
        %2268 = vmatpush1.msra.mxu0 %v2140
        %2269 = vmatprep.subr.mxu0 0.0
        %2270 = vmatpush1.msra.mxu0 %v2141
        %2271 = vmatprep.subr.mxu0 0.0
        %2272 = vmatpush1.msra.mxu0 %v2142
        %2273 = vmatprep.subr.mxu0 0.0
        %2274 = vmatpush1.msra.mxu0 %v2143
        %2275 = vmatprep.subr.mxu0 0.0
        %2276 = vmatpush1.msra.mxu0 %v2144
        %2277 = vmatprep.subr.mxu0 0.0
        %2278 = vmatpush1.msra.mxu0 %v2145
        %2279 = vmatprep.subr.mxu0 0.0
        %2280 = vmatpush1.msra.mxu0 %v2146
        %2281 = vmatprep.subr.mxu0 0.0
        %2282 = vmatpush1.msra.mxu0 %v2147
        %2283 = vmatprep.subr.mxu0 0.0
        %2284 = vmatpush1.msra.mxu0 %v2148
        %2285 = vmatprep.subr.mxu0 0.0
        %2286 = vmatpush1.msra.mxu0 %v2149
        %2287 = vmatprep.subr.mxu0 0.0
        %2288 = vmatpush1.msra.mxu0 0.0
        %2289 = vmatprep.subr.mxu0 0.0
        %2290 = vmatpush1.msra.mxu0 0.0
        %2291 = vmatprep.subr.mxu0 0.0
        %2292 = vmatpush1.msra.mxu0 0.0
        %2293 = vmatprep.subr.mxu0 0.0
        %2294 = vmatpush1.msra.mxu0 0.0
        %2295 = vmatprep.subr.mxu0 0.0
        %2296 = vmatpush1.msra.mxu0 0.0
        %2297 = vmatprep.subr.mxu0 0.0
        %2298 = vmatpush1.msra.mxu0 0.0
        %2299 = vmatprep.subr.mxu0 0.0
        %2300 = vmatpush1.msra.mxu0 0.0
        %2301 = vmatprep.subr.mxu0 0.0
        %2302 = vmatpush1.msra.mxu0 0.0
        %2303 = vmatprep.subr.mxu0 0.0
        %2304 = vmatpush1.msra.mxu0 0.0
        %2305 = vmatprep.subr.mxu0 0.0
        %2306 = vmatpush1.msra.mxu0 0.0
        %2307 = vmatprep.subr.mxu0 0.0
        %2308 = vmatpush1.msra.mxu0 0.0
        %2309 = vmatprep.subr.mxu0 0.0
        %2310 = vmatpush1.msra.mxu0 0.0
        %2311 = vmatprep.subr.mxu0 0.0
        %2312 = vmatpush1.msra.mxu0 0.0
        %2313 = vmatprep.subr.mxu0 0.0
        %2314 = vmatpush1.msra.mxu0 0.0
        %2315 = vmatprep.subr.mxu0 0.0
        %2316 = vmatpush1.msra.mxu0 0.0
        %2317 = vmatprep.subr.mxu0 0.0
        %2318 = vmatpush1.msra.mxu0 0.0
        %2319 = vmatprep.mubr.f32.mxu0 0.0
        %2320 = vmatmul.mubr.f32.gmra.mrb[0].mxu0 %v1708
        %v2321 = vpop.f32.mrb[0].mxu0
        %v2322 = vadd.f32 %v2217, %v2321
        %v2323 = vpop.f32.mrb[0].mxu0
        %2324 = vmatprep.mubr.f32.mxu0 0.0
        %2325 = vmatmul.mubr.f32.gmra.mrb[0].mxu0 %v1711
        %v2326 = vpop.f32.mrb[0].mxu0
        %v2327 = vadd.f32 %v2222, %v2326
        %v2328 = vpop.f32.mrb[0].mxu0
        %2329 = vmatprep.mubr.f32.mxu0 0.0
        %2330 = vmatmul.mubr.f32.gmra.mrb[0].mxu0 %v1714
        %v2331 = vpop.f32.mrb[0].mxu0
        %v2332 = vadd.f32 %v2227, %v2331
        %v2333 = vpop.f32.mrb[0].mxu0
        %2334 = vmatprep.mubr.f32.mxu0 0.0
        %2335 = vmatmul.mubr.f32.gmra.mrb[0].mxu0 %v1717
        %v2336 = vpop.f32.mrb[0].mxu0
        %v2337 = vadd.f32 %v2232, %v2336
        %v2338 = vpop.f32.mrb[0].mxu0
        %2339 = vmatprep.mubr.f32.mxu0 0.0
        %2340 = vmatmul.mubr.f32.gmra.mrb[0].mxu0 %v1720
        %v2341 = vpop.f32.mrb[0].mxu0
        %v2342 = vadd.f32 %v2237, %v2341
        %v2343 = vpop.f32.mrb[0].mxu0
        %2344 = vmatprep.mubr.f32.mxu0 0.0
        %2345 = vmatmul.mubr.f32.gmra.mrb[0].mxu0 %v1723
        %v2346 = vpop.f32.mrb[0].mxu0
        %v2347 = vadd.f32 %v2242, %v2346
        %v2348 = vpop.f32.mrb[0].mxu0
        %2349 = vmatprep.mubr.f32.mxu0 0.0
        %2350 = vmatmul.mubr.f32.gmra.mrb[0].mxu0 %v1726
        %v2351 = vpop.f32.mrb[0].mxu0
        %v2352 = vadd.f32 %v2247, %v2351
        %v2353 = vpop.f32.mrb[0].mxu0
        %2354 = vmatprep.mubr.f32.mxu0 0.0
        %2355 = vmatmul.mubr.f32.gmra.mrb[0].mxu0 %v1729
        %v2356 = vpop.f32.mrb[0].mxu0
        %v2357 = vadd.f32 %v2252, %v2356
        %v2358 = vpop.f32.mrb[0].mxu0
        %2359 = vdwg.mxu0
        %v2360 = vld [vmem:[#allocation2] sm:$0xff]
        %v2361 = vld [vmem:[#allocation2 + $0x8] sm:$0xff]
        %v2362 = vld [vmem:[#allocation2 + $0x10] sm:$0xff]
        %v2363 = vld [vmem:[#allocation2 + $0x18] sm:$0xff]
        %v2364 = vld [vmem:[#allocation2 + $0x20] sm:$0xff]
        %v2365 = vld [vmem:[#allocation2 + $0x28] sm:$0xff]
        %v2366 = vld [vmem:[#allocation2 + $0x30] sm:$0xff]
        %v2367 = vld [vmem:[#allocation2 + $0x38] sm:$0xff]
        %v2368 = vadd.f32 %v2360, %v2322
        %v2369 = vadd.f32 %v2361, %v2327
        %v2370 = vadd.f32 %v2362, %v2332
        %v2371 = vadd.f32 %v2363, %v2337
        %v2372 = vadd.f32 %v2364, %v2342
        %v2373 = vadd.f32 %v2365, %v2347
        %v2374 = vadd.f32 %v2366, %v2352
        %v2375 = vadd.f32 %v2367, %v2357
        %2376 = vst [vmem:[#allocation2] sm:$0xff] %v2368
        %2377 = vst [vmem:[#allocation2 + $0x8] sm:$0xff] %v2369
        %2378 = vst [vmem:[#allocation2 + $0x10] sm:$0xff] %v2370
        %2379 = vst [vmem:[#allocation2 + $0x18] sm:$0xff] %v2371
        %2380 = vst [vmem:[#allocation2 + $0x20] sm:$0xff] %v2372
        %2381 = vst [vmem:[#allocation2 + $0x28] sm:$0xff] %v2373
        %2382 = vst [vmem:[#allocation2 + $0x30] sm:$0xff] %v2374
        %2383 = vst [vmem:[#allocation2 + $0x38] sm:$0xff] %v2375
        %s2384 = scalar_lea.vmem [#allocation4], 768
        %v2385 = vld [vmem:[%s2384] sm:$0xff]
        %v2386 = vld [vmem:[%s2384 + $0x8] sm:$0xff]
        %v2387 = vld [vmem:[%s2384 + $0x10] sm:$0xff]
        %v2388 = vld [vmem:[%s2384 + $0x18] sm:$0xff]
        %v2389 = vld [vmem:[%s2384 + $0x20] sm:$0xff]
        %v2390 = vld [vmem:[%s2384 + $0x28] sm:$0xff]
        %v2391 = vld [vmem:[%s2384 + $0x30] sm:$0xff]
        %v2392 = vld [vmem:[%s2384 + $0x38] sm:$0xff]
        %v2393 = vld [vmem:[%s2384 + $0x40] sm:$0xff]
        %v2394 = vld [vmem:[%s2384 + $0x48] sm:$0xff]
        %v2395 = vld [vmem:[%s2384 + $0x50] sm:$0xff]
        %v2396 = vld [vmem:[%s2384 + $0x58] sm:$0xff]
        %v2397 = vld [vmem:[%s2384 + $0x60] sm:$0xff]
        %v2398 = vld [vmem:[%s2384 + $0x68] sm:$0xff]
        %v2399 = vld [vmem:[%s2384 + $0x70] sm:$0xff]
        %v2400 = vld [vmem:[%s2384 + $0x78] sm:$0xff]
        %v2401 = vld [vmem:[%s2384 + $0x80] sm:$0xff]
        %v2402 = vld [vmem:[%s2384 + $0x88] sm:$0xff]
        %v2403 = vld [vmem:[%s2384 + $0x90] sm:$0xff]
        %v2404 = vld [vmem:[%s2384 + $0x98] sm:$0xff]
        %v2405 = vld [vmem:[%s2384 + $0xa0] sm:$0xff]
        %v2406 = vld [vmem:[%s2384 + $0xa8] sm:$0xff]
        %v2407 = vld [vmem:[%s2384 + $0xb0] sm:$0xff]
        %v2408 = vld [vmem:[%s2384 + $0xb8] sm:$0xff]
        %v2409 = vld [vmem:[%s2384 + $0xc0] sm:$0xff]
        %v2410 = vld [vmem:[%s2384 + $0xc8] sm:$0xff]
        %v2411 = vld [vmem:[%s2384 + $0xd0] sm:$0xff]
        %v2412 = vld [vmem:[%s2384 + $0xd8] sm:$0xff]
        %v2413 = vld [vmem:[%s2384 + $0xe0] sm:$0xff]
        %v2414 = vld [vmem:[%s2384 + $0xe8] sm:$0xff]
        %v2415 = vld [vmem:[%s2384 + $0xf0] sm:$0xff]
        %v2416 = vld [vmem:[%s2384 + $0xf8] sm:$0xff]
        %v2417 = vld [vmem:[%s2384 + $0x100] sm:$0xff]
        %v2418 = vld [vmem:[%s2384 + $0x108] sm:$0xff]
        %v2419 = vld [vmem:[%s2384 + $0x110] sm:$0xff]
        %v2420 = vld [vmem:[%s2384 + $0x118] sm:$0xff]
        %v2421 = vld [vmem:[%s2384 + $0x120] sm:$0xff]
        %v2422 = vld [vmem:[%s2384 + $0x128] sm:$0xff]
        %v2423 = vld [vmem:[%s2384 + $0x130] sm:$0xff]
        %v2424 = vld [vmem:[%s2384 + $0x138] sm:$0xff]
        %v2425 = vld [vmem:[%s2384 + $0x140] sm:$0xff]
        %v2426 = vld [vmem:[%s2384 + $0x148] sm:$0xff]
        %v2427 = vld [vmem:[%s2384 + $0x150] sm:$0xff]
        %v2428 = vld [vmem:[%s2384 + $0x158] sm:$0xff]
        %v2429 = vld [vmem:[%s2384 + $0x160] sm:$0xff]
        %v2430 = vld [vmem:[%s2384 + $0x168] sm:$0xff]
        %v2431 = vld [vmem:[%s2384 + $0x170] sm:$0xff]
        %v2432 = vld [vmem:[%s2384 + $0x178] sm:$0xff]
        %2433 = vmatprep.subr.mxu0 0.0
        %2434 = vmatpush1.msra.mxu0 %v2385
        %2435 = vmatprep.subr.mxu0 0.0
        %2436 = vmatpush1.msra.mxu0 %v2386
        %2437 = vmatprep.subr.mxu0 0.0
        %2438 = vmatpush1.msra.mxu0 %v2387
        %2439 = vmatprep.subr.mxu0 0.0
        %2440 = vmatpush1.msra.mxu0 %v2388
        %2441 = vmatprep.subr.mxu0 0.0
        %2442 = vmatpush1.msra.mxu0 %v2389
        %2443 = vmatprep.subr.mxu0 0.0
        %2444 = vmatpush1.msra.mxu0 %v2390
        %2445 = vmatprep.subr.mxu0 0.0
        %2446 = vmatpush1.msra.mxu0 %v2391
        %2447 = vmatprep.subr.mxu0 0.0
        %2448 = vmatpush1.msra.mxu0 %v2392
        %2449 = vmatprep.subr.mxu0 0.0
        %2450 = vmatpush1.msra.mxu0 %v2393
        %2451 = vmatprep.subr.mxu0 0.0
        %2452 = vmatpush1.msra.mxu0 %v2394
        %2453 = vmatprep.subr.mxu0 0.0
        %2454 = vmatpush1.msra.mxu0 %v2395
        %2455 = vmatprep.subr.mxu0 0.0
        %2456 = vmatpush1.msra.mxu0 %v2396
        %2457 = vmatprep.subr.mxu0 0.0
        %2458 = vmatpush1.msra.mxu0 %v2397
        %2459 = vmatprep.subr.mxu0 0.0
        %2460 = vmatpush1.msra.mxu0 %v2398
        %2461 = vmatprep.subr.mxu0 0.0
        %2462 = vmatpush1.msra.mxu0 %v2399
        %2463 = vmatprep.subr.mxu0 0.0
        %2464 = vmatpush1.msra.mxu0 %v2400
        %2465 = vmatprep.subr.mxu0 0.0
        %2466 = vmatpush1.msra.mxu0 %v2401
        %2467 = vmatprep.subr.mxu0 0.0
        %2468 = vmatpush1.msra.mxu0 %v2402
        %2469 = vmatprep.subr.mxu0 0.0
        %2470 = vmatpush1.msra.mxu0 %v2403
        %2471 = vmatprep.subr.mxu0 0.0
        %2472 = vmatpush1.msra.mxu0 %v2404
        %2473 = vmatprep.subr.mxu0 0.0
        %2474 = vmatpush1.msra.mxu0 %v2405
        %2475 = vmatprep.subr.mxu0 0.0
        %2476 = vmatpush1.msra.mxu0 %v2406
        %2477 = vmatprep.subr.mxu0 0.0
        %2478 = vmatpush1.msra.mxu0 %v2407
        %2479 = vmatprep.subr.mxu0 0.0
        %2480 = vmatpush1.msra.mxu0 %v2408
        %2481 = vmatprep.subr.mxu0 0.0
        %2482 = vmatpush1.msra.mxu0 %v2409
        %2483 = vmatprep.subr.mxu0 0.0
        %2484 = vmatpush1.msra.mxu0 %v2410
        %2485 = vmatprep.subr.mxu0 0.0
        %2486 = vmatpush1.msra.mxu0 %v2411
        %2487 = vmatprep.subr.mxu0 0.0
        %2488 = vmatpush1.msra.mxu0 %v2412
        %2489 = vmatprep.subr.mxu0 0.0
        %2490 = vmatpush1.msra.mxu0 %v2413
        %2491 = vmatprep.subr.mxu0 0.0
        %2492 = vmatpush1.msra.mxu0 %v2414
        %2493 = vmatprep.subr.mxu0 0.0
        %2494 = vmatpush1.msra.mxu0 %v2415
        %2495 = vmatprep.subr.mxu0 0.0
        %2496 = vmatpush1.msra.mxu0 %v2416
        %2497 = vmatprep.mubr.f32.mxu0 %v1773
        %2498 = vmatmul.mubr.f32.gmra.mrb[0].mxu0 %v1739
        %v2499 = vpop.f32.mrb[0].mxu0
        %v2500 = vadd.f32 0.0, %v2499
        %v2501 = vpop.f32.mrb[0].mxu0
        %2502 = vmatprep.mubr.f32.mxu0 %v1776
        %2503 = vmatmul.mubr.f32.gmra.mrb[0].mxu0 %v1741
        %v2504 = vpop.f32.mrb[0].mxu0
        %v2505 = vadd.f32 0.0, %v2504
        %v2506 = vpop.f32.mrb[0].mxu0
        %2507 = vmatprep.mubr.f32.mxu0 %v1779
        %2508 = vmatmul.mubr.f32.gmra.mrb[0].mxu0 %v1743
        %v2509 = vpop.f32.mrb[0].mxu0
        %v2510 = vadd.f32 0.0, %v2509
        %v2511 = vpop.f32.mrb[0].mxu0
        %2512 = vmatprep.mubr.f32.mxu0 %v1782
        %2513 = vmatmul.mubr.f32.gmra.mrb[0].mxu0 %v1745
        %v2514 = vpop.f32.mrb[0].mxu0
        %v2515 = vadd.f32 0.0, %v2514
        %v2516 = vpop.f32.mrb[0].mxu0
        %2517 = vmatprep.mubr.f32.mxu0 %v1785
        %2518 = vmatmul.mubr.f32.gmra.mrb[0].mxu0 %v1747
        %v2519 = vpop.f32.mrb[0].mxu0
        %v2520 = vadd.f32 0.0, %v2519
        %v2521 = vpop.f32.mrb[0].mxu0
        %2522 = vmatprep.mubr.f32.mxu0 %v1788
        %2523 = vmatmul.mubr.f32.gmra.mrb[0].mxu0 %v1749
        %v2524 = vpop.f32.mrb[0].mxu0
        %v2525 = vadd.f32 0.0, %v2524
        %v2526 = vpop.f32.mrb[0].mxu0
        %2527 = vmatprep.mubr.f32.mxu0 %v1791
        %2528 = vmatmul.mubr.f32.gmra.mrb[0].mxu0 %v1751
        %v2529 = vpop.f32.mrb[0].mxu0
        %v2530 = vadd.f32 0.0, %v2529
        %v2531 = vpop.f32.mrb[0].mxu0
        %2532 = vmatprep.mubr.f32.mxu0 %v1794
        %2533 = vmatmul.mubr.f32.gmra.mrb[0].mxu0 %v1753
        %v2534 = vpop.f32.mrb[0].mxu0
        %v2535 = vadd.f32 0.0, %v2534
        %v2536 = vpop.f32.mrb[0].mxu0
        %2537 = vdwg.mxu0
        %2538 = vmatprep.subr.mxu0 0.0
        %2539 = vmatpush1.msra.mxu0 %v2417
        %2540 = vmatprep.subr.mxu0 0.0
        %2541 = vmatpush1.msra.mxu0 %v2418
        %2542 = vmatprep.subr.mxu0 0.0
        %2543 = vmatpush1.msra.mxu0 %v2419
        %2544 = vmatprep.subr.mxu0 0.0
        %2545 = vmatpush1.msra.mxu0 %v2420
        %2546 = vmatprep.subr.mxu0 0.0
        %2547 = vmatpush1.msra.mxu0 %v2421
        %2548 = vmatprep.subr.mxu0 0.0
        %2549 = vmatpush1.msra.mxu0 %v2422
        %2550 = vmatprep.subr.mxu0 0.0
        %2551 = vmatpush1.msra.mxu0 %v2423
        %2552 = vmatprep.subr.mxu0 0.0
        %2553 = vmatpush1.msra.mxu0 %v2424
        %2554 = vmatprep.subr.mxu0 0.0
        %2555 = vmatpush1.msra.mxu0 %v2425
        %2556 = vmatprep.subr.mxu0 0.0
        %2557 = vmatpush1.msra.mxu0 %v2426
        %2558 = vmatprep.subr.mxu0 0.0
        %2559 = vmatpush1.msra.mxu0 %v2427
        %2560 = vmatprep.subr.mxu0 0.0
        %2561 = vmatpush1.msra.mxu0 %v2428
        %2562 = vmatprep.subr.mxu0 0.0
        %2563 = vmatpush1.msra.mxu0 %v2429
        %2564 = vmatprep.subr.mxu0 0.0
        %2565 = vmatpush1.msra.mxu0 %v2430
        %2566 = vmatprep.subr.mxu0 0.0
        %2567 = vmatpush1.msra.mxu0 %v2431
        %2568 = vmatprep.subr.mxu0 0.0
        %2569 = vmatpush1.msra.mxu0 %v2432
        %2570 = vmatprep.subr.mxu0 0.0
        %2571 = vmatpush1.msra.mxu0 0.0
        %2572 = vmatprep.subr.mxu0 0.0
        %2573 = vmatpush1.msra.mxu0 0.0
        %2574 = vmatprep.subr.mxu0 0.0
        %2575 = vmatpush1.msra.mxu0 0.0
        %2576 = vmatprep.subr.mxu0 0.0
        %2577 = vmatpush1.msra.mxu0 0.0
        %2578 = vmatprep.subr.mxu0 0.0
        %2579 = vmatpush1.msra.mxu0 0.0
        %2580 = vmatprep.subr.mxu0 0.0
        %2581 = vmatpush1.msra.mxu0 0.0
        %2582 = vmatprep.subr.mxu0 0.0
        %2583 = vmatpush1.msra.mxu0 0.0
        %2584 = vmatprep.subr.mxu0 0.0
        %2585 = vmatpush1.msra.mxu0 0.0
        %2586 = vmatprep.subr.mxu0 0.0
        %2587 = vmatpush1.msra.mxu0 0.0
        %2588 = vmatprep.subr.mxu0 0.0
        %2589 = vmatpush1.msra.mxu0 0.0
        %2590 = vmatprep.subr.mxu0 0.0
        %2591 = vmatpush1.msra.mxu0 0.0
        %2592 = vmatprep.subr.mxu0 0.0
        %2593 = vmatpush1.msra.mxu0 0.0
        %2594 = vmatprep.subr.mxu0 0.0
        %2595 = vmatpush1.msra.mxu0 0.0
        %2596 = vmatprep.subr.mxu0 0.0
        %2597 = vmatpush1.msra.mxu0 0.0
        %2598 = vmatprep.subr.mxu0 0.0
        %2599 = vmatpush1.msra.mxu0 0.0
        %2600 = vmatprep.subr.mxu0 0.0
        %2601 = vmatpush1.msra.mxu0 0.0
        %2602 = vmatprep.mubr.f32.mxu0 0.0
        %2603 = vmatmul.mubr.f32.gmra.mrb[0].mxu0 %v1805
        %v2604 = vpop.f32.mrb[0].mxu0
        %v2605 = vadd.f32 %v2500, %v2604
        %v2606 = vpop.f32.mrb[0].mxu0
        %2607 = vmatprep.mubr.f32.mxu0 0.0
        %2608 = vmatmul.mubr.f32.gmra.mrb[0].mxu0 %v1808
        %v2609 = vpop.f32.mrb[0].mxu0
        %v2610 = vadd.f32 %v2505, %v2609
        %v2611 = vpop.f32.mrb[0].mxu0
        %2612 = vmatprep.mubr.f32.mxu0 0.0
        %2613 = vmatmul.mubr.f32.gmra.mrb[0].mxu0 %v1811
        %v2614 = vpop.f32.mrb[0].mxu0
        %v2615 = vadd.f32 %v2510, %v2614
        %v2616 = vpop.f32.mrb[0].mxu0
        %2617 = vmatprep.mubr.f32.mxu0 0.0
        %2618 = vmatmul.mubr.f32.gmra.mrb[0].mxu0 %v1814
        %v2619 = vpop.f32.mrb[0].mxu0
        %v2620 = vadd.f32 %v2515, %v2619
        %v2621 = vpop.f32.mrb[0].mxu0
        %2622 = vmatprep.mubr.f32.mxu0 0.0
        %2623 = vmatmul.mubr.f32.gmra.mrb[0].mxu0 %v1817
        %v2624 = vpop.f32.mrb[0].mxu0
        %v2625 = vadd.f32 %v2520, %v2624
        %v2626 = vpop.f32.mrb[0].mxu0
        %2627 = vmatprep.mubr.f32.mxu0 0.0
        %2628 = vmatmul.mubr.f32.gmra.mrb[0].mxu0 %v1820
        %v2629 = vpop.f32.mrb[0].mxu0
        %v2630 = vadd.f32 %v2525, %v2629
        %v2631 = vpop.f32.mrb[0].mxu0
        %2632 = vmatprep.mubr.f32.mxu0 0.0
        %2633 = vmatmul.mubr.f32.gmra.mrb[0].mxu0 %v1823
        %v2634 = vpop.f32.mrb[0].mxu0
        %v2635 = vadd.f32 %v2530, %v2634
        %v2636 = vpop.f32.mrb[0].mxu0
        %2637 = vmatprep.mubr.f32.mxu0 0.0
        %2638 = vmatmul.mubr.f32.gmra.mrb[0].mxu0 %v1826
        %v2639 = vpop.f32.mrb[0].mxu0
        %v2640 = vadd.f32 %v2535, %v2639
        %v2641 = vpop.f32.mrb[0].mxu0
        %2642 = vdwg.mxu0
        %v2643 = vld [vmem:[#allocation2] sm:$0xff]
        %v2644 = vld [vmem:[#allocation2 + $0x8] sm:$0xff]
        %v2645 = vld [vmem:[#allocation2 + $0x10] sm:$0xff]
        %v2646 = vld [vmem:[#allocation2 + $0x18] sm:$0xff]
        %v2647 = vld [vmem:[#allocation2 + $0x20] sm:$0xff]
        %v2648 = vld [vmem:[#allocation2 + $0x28] sm:$0xff]
        %v2649 = vld [vmem:[#allocation2 + $0x30] sm:$0xff]
        %v2650 = vld [vmem:[#allocation2 + $0x38] sm:$0xff]
        %v2651 = vadd.f32 %v2643, %v2605
        %v2652 = vadd.f32 %v2644, %v2610
        %v2653 = vadd.f32 %v2645, %v2615
        %v2654 = vadd.f32 %v2646, %v2620
        %v2655 = vadd.f32 %v2647, %v2625
        %v2656 = vadd.f32 %v2648, %v2630
        %v2657 = vadd.f32 %v2649, %v2635
        %v2658 = vadd.f32 %v2650, %v2640
        %2659 = vst [vmem:[#allocation2] sm:$0xff] %v2651
        %2660 = vst [vmem:[#allocation2 + $0x8] sm:$0xff] %v2652
        %2661 = vst [vmem:[#allocation2 + $0x10] sm:$0xff] %v2653
        %2662 = vst [vmem:[#allocation2 + $0x18] sm:$0xff] %v2654
        %2663 = vst [vmem:[#allocation2 + $0x20] sm:$0xff] %v2655
        %2664 = vst [vmem:[#allocation2 + $0x28] sm:$0xff] %v2656
        %2665 = vst [vmem:[#allocation2 + $0x30] sm:$0xff] %v2657
        %2666 = vst [vmem:[#allocation2 + $0x38] sm:$0xff] %v2658
        %v2667 = vld [vmem:[#allocation2] sm:$0xff]
        %v2668 = vld [vmem:[#allocation2 + $0x8] sm:$0xff]
        %v2669 = vld [vmem:[#allocation2 + $0x10] sm:$0xff]
        %v2670 = vld [vmem:[#allocation2 + $0x18] sm:$0xff]
        %v2671 = vld [vmem:[#allocation2 + $0x20] sm:$0xff]
        %v2672 = vld [vmem:[#allocation2 + $0x28] sm:$0xff]
        %v2673 = vld [vmem:[#allocation2 + $0x30] sm:$0xff]
        %v2674 = vld [vmem:[#allocation2 + $0x38] sm:$0xff]
        %v2675 = vld [vmem:[%s6] sm:$0x1]
        %v2677 = vlaneseq
        %v2678 = vshrl.u32 %v2677, 7
        %v2679 = vsub.s32 0, %v2678
        %v2680 = vrot.slane %v2675, %v2679
        %v2682 = vmul.f32 %v2667, %v2680
        %v2683 = vmul.f32 %v2668, %v2680
        %v2684 = vmul.f32 %v2669, %v2680
        %v2685 = vmul.f32 %v2670, %v2680
        %v2686 = vmul.f32 %v2671, %v2680
        %v2687 = vmul.f32 %v2672, %v2680
        %v2688 = vmul.f32 %v2673, %v2680
        %v2689 = vmul.f32 %v2674, %v2680
        %v2690 = vld [vmem:[%s7] sm:$0x1]
        %v2692 = vlaneseq
        %v2693 = vshrl.u32 %v2692, 7
        %v2694 = vsub.s32 0, %v2693
        %v2695 = vrot.slane %v2690, %v2694
        %v2697 = vadd.f32 %v2682, %v2695
        %v2698 = vadd.f32 %v2683, %v2695
        %v2699 = vadd.f32 %v2684, %v2695
        %v2700 = vadd.f32 %v2685, %v2695
        %v2701 = vadd.f32 %v2686, %v2695
        %v2702 = vadd.f32 %v2687, %v2695
        %v2703 = vadd.f32 %v2688, %v2695
        %v2704 = vadd.f32 %v2689, %v2695
        %v2705 = vld [vmem:[%s419 + $0x8] sm:$0xff]
        %v2706 = vld [vmem:[%s419 + $0x28] sm:$0xff]
        %v2707 = vld [vmem:[%s419 + $0x48] sm:$0xff]
        %v2708 = vld [vmem:[%s419 + $0x68] sm:$0xff]
        %v2709 = vld [vmem:[%s419 + $0x88] sm:$0xff]
        %v2710 = vld [vmem:[%s419 + $0xa8] sm:$0xff]
        %v2711 = vld [vmem:[%s419 + $0xc8] sm:$0xff]
        %v2712 = vld [vmem:[%s419 + $0xe8] sm:$0xff]
        %v2713 = vld [vmem:[%s8] sm:$0xff]
        %v2714 = vld [vmem:[%s8 + $0x8] sm:$0xff]
        %v2715 = vld [vmem:[%s8 + $0x10] sm:$0xff]
        %v2716 = vld [vmem:[%s8 + $0x18] sm:$0xff]
        %v2717 = vld [vmem:[%s8 + $0x20] sm:$0xff]
        %v2718 = vld [vmem:[%s8 + $0x28] sm:$0xff]
        %v2719 = vld [vmem:[%s8 + $0x30] sm:$0xff]
        %v2720 = vld [vmem:[%s8 + $0x38] sm:$0xff]
        %v2721 = vld [vmem:[%s8 + $0x40] sm:$0xff]
        %v2722 = vld [vmem:[%s8 + $0x48] sm:$0xff]
        %v2723 = vld [vmem:[%s8 + $0x50] sm:$0xff]
        %v2724 = vld [vmem:[%s8 + $0x58] sm:$0xff]
        %v2725 = vld [vmem:[%s8 + $0x60] sm:$0xff]
        %v2726 = vld [vmem:[%s8 + $0x68] sm:$0xff]
        %v2727 = vld [vmem:[%s8 + $0x70] sm:$0xff]
        %v2728 = vld [vmem:[%s8 + $0x78] sm:$0xff]
        %2729 = vmatprep.subr.mxu0 0.0
        %2730 = vmatpush1.msra.mxu0 %v2713
        %2731 = vmatprep.subr.mxu0 0.0
        %2732 = vmatpush1.msra.mxu0 %v2714
        %2733 = vmatprep.subr.mxu0 0.0
        %2734 = vmatpush1.msra.mxu0 %v2715
        %2735 = vmatprep.subr.mxu0 0.0
        %2736 = vmatpush1.msra.mxu0 %v2716
        %2737 = vmatprep.subr.mxu0 0.0
        %2738 = vmatpush1.msra.mxu0 %v2717
        %2739 = vmatprep.subr.mxu0 0.0
        %2740 = vmatpush1.msra.mxu0 %v2718
        %2741 = vmatprep.subr.mxu0 0.0
        %2742 = vmatpush1.msra.mxu0 %v2719
        %2743 = vmatprep.subr.mxu0 0.0
        %2744 = vmatpush1.msra.mxu0 %v2720
        %2745 = vmatprep.subr.mxu0 0.0
        %2746 = vmatpush1.msra.mxu0 %v2721
        %2747 = vmatprep.subr.mxu0 0.0
        %2748 = vmatpush1.msra.mxu0 %v2722
        %2749 = vmatprep.subr.mxu0 0.0
        %2750 = vmatpush1.msra.mxu0 %v2723
        %2751 = vmatprep.subr.mxu0 0.0
        %2752 = vmatpush1.msra.mxu0 %v2724
        %2753 = vmatprep.subr.mxu0 0.0
        %2754 = vmatpush1.msra.mxu0 %v2725
        %2755 = vmatprep.subr.mxu0 0.0
        %2756 = vmatpush1.msra.mxu0 %v2726
        %2757 = vmatprep.subr.mxu0 0.0
        %2758 = vmatpush1.msra.mxu0 %v2727
        %2759 = vmatprep.subr.mxu0 0.0
        %2760 = vmatpush1.msra.mxu0 %v2728
        %2761 = vmatprep.subr.mxu0 0.0
        %2762 = vmatpush1.msra.mxu0 0.0
        %2763 = vmatprep.subr.mxu0 0.0
        %2764 = vmatpush1.msra.mxu0 0.0
        %2765 = vmatprep.subr.mxu0 0.0
        %2766 = vmatpush1.msra.mxu0 0.0
        %2767 = vmatprep.subr.mxu0 0.0
        %2768 = vmatpush1.msra.mxu0 0.0
        %2769 = vmatprep.subr.mxu0 0.0
        %2770 = vmatpush1.msra.mxu0 0.0
        %2771 = vmatprep.subr.mxu0 0.0
        %2772 = vmatpush1.msra.mxu0 0.0
        %2773 = vmatprep.subr.mxu0 0.0
        %2774 = vmatpush1.msra.mxu0 0.0
        %2775 = vmatprep.subr.mxu0 0.0
        %2776 = vmatpush1.msra.mxu0 0.0
        %2777 = vmatprep.subr.mxu0 0.0
        %2778 = vmatpush1.msra.mxu0 0.0
        %2779 = vmatprep.subr.mxu0 0.0
        %2780 = vmatpush1.msra.mxu0 0.0
        %2781 = vmatprep.subr.mxu0 0.0
        %2782 = vmatpush1.msra.mxu0 0.0
        %2783 = vmatprep.subr.mxu0 0.0
        %2784 = vmatpush1.msra.mxu0 0.0
        %2785 = vmatprep.subr.mxu0 0.0
        %2786 = vmatpush1.msra.mxu0 0.0
        %2787 = vmatprep.subr.mxu0 0.0
        %2788 = vmatpush1.msra.mxu0 0.0
        %2789 = vmatprep.subr.mxu0 0.0
        %2790 = vmatpush1.msra.mxu0 0.0
        %2791 = vmatprep.subr.mxu0 0.0
        %2792 = vmatpush1.msra.mxu0 0.0
        %2793 = vmatprep.mubr.f32.mxu0 0.0
        %2794 = vmatmul.mubr.f32.gmra.mrb[0].mxu0 %v2705
        %v2795 = vpop.f32.mrb[0].mxu0
        %v2796 = vadd.f32 0.0, %v2795
        %v2797 = vpop.f32.mrb[0].mxu0
        %2798 = vmatprep.mubr.f32.mxu0 0.0
        %2799 = vmatmul.mubr.f32.gmra.mrb[0].mxu0 %v2706
        %v2800 = vpop.f32.mrb[0].mxu0
        %v2801 = vadd.f32 0.0, %v2800
        %v2802 = vpop.f32.mrb[0].mxu0
        %2803 = vmatprep.mubr.f32.mxu0 0.0
        %2804 = vmatmul.mubr.f32.gmra.mrb[0].mxu0 %v2707
        %v2805 = vpop.f32.mrb[0].mxu0
        %v2806 = vadd.f32 0.0, %v2805
        %v2807 = vpop.f32.mrb[0].mxu0
        %2808 = vmatprep.mubr.f32.mxu0 0.0
        %2809 = vmatmul.mubr.f32.gmra.mrb[0].mxu0 %v2708
        %v2810 = vpop.f32.mrb[0].mxu0
        %v2811 = vadd.f32 0.0, %v2810
        %v2812 = vpop.f32.mrb[0].mxu0
        %2813 = vmatprep.mubr.f32.mxu0 0.0
        %2814 = vmatmul.mubr.f32.gmra.mrb[0].mxu0 %v2709
        %v2815 = vpop.f32.mrb[0].mxu0
        %v2816 = vadd.f32 0.0, %v2815
        %v2817 = vpop.f32.mrb[0].mxu0
        %2818 = vmatprep.mubr.f32.mxu0 0.0
        %2819 = vmatmul.mubr.f32.gmra.mrb[0].mxu0 %v2710
        %v2820 = vpop.f32.mrb[0].mxu0
        %v2821 = vadd.f32 0.0, %v2820
        %v2822 = vpop.f32.mrb[0].mxu0
        %2823 = vmatprep.mubr.f32.mxu0 0.0
        %2824 = vmatmul.mubr.f32.gmra.mrb[0].mxu0 %v2711
        %v2825 = vpop.f32.mrb[0].mxu0
        %v2826 = vadd.f32 0.0, %v2825
        %v2827 = vpop.f32.mrb[0].mxu0
        %2828 = vmatprep.mubr.f32.mxu0 0.0
        %2829 = vmatmul.mubr.f32.gmra.mrb[0].mxu0 %v2712
        %v2830 = vpop.f32.mrb[0].mxu0
        %v2831 = vadd.f32 0.0, %v2830
        %v2832 = vpop.f32.mrb[0].mxu0
        %2833 = vdwg.mxu0
        %v2834 = vld [vmem:[%s9] sm:$0x1]
        %v2836 = vlaneseq
        %v2837 = vshrl.u32 %v2836, 7
        %v2838 = vsub.s32 0, %v2837
        %v2839 = vrot.slane %v2834, %v2838
        %v2841 = vmul.f32 %v2796, %v2839
        %v2842 = vmul.f32 %v2801, %v2839
        %v2843 = vmul.f32 %v2806, %v2839
        %v2844 = vmul.f32 %v2811, %v2839
        %v2845 = vmul.f32 %v2816, %v2839
        %v2846 = vmul.f32 %v2821, %v2839
        %v2847 = vmul.f32 %v2826, %v2839
        %v2848 = vmul.f32 %v2831, %v2839
        %v2849 = vld [vmem:[%s10] sm:$0x1]
        %v2851 = vlaneseq
        %v2852 = vshrl.u32 %v2851, 7
        %v2853 = vsub.s32 0, %v2852
        %v2854 = vrot.slane %v2849, %v2853
        %v2856 = vadd.f32 %v2841, %v2854
        %v2857 = vadd.f32 %v2842, %v2854
        %v2858 = vadd.f32 %v2843, %v2854
        %v2859 = vadd.f32 %v2844, %v2854
        %v2860 = vadd.f32 %v2845, %v2854
        %v2861 = vadd.f32 %v2846, %v2854
        %v2862 = vadd.f32 %v2847, %v2854
        %v2863 = vadd.f32 %v2848, %v2854
        %v2864 = vadd.f32 %v2697, %v2856
        %v2865 = vadd.f32 %v2698, %v2857
        %v2866 = vadd.f32 %v2699, %v2858
        %v2867 = vadd.f32 %v2700, %v2859
        %v2868 = vadd.f32 %v2701, %v2860
        %v2869 = vadd.f32 %v2702, %v2861
        %v2870 = vadd.f32 %v2703, %v2862
        %v2871 = vadd.f32 %v2704, %v2863
        %v2872 = vmax.f32 %v2864, 0.0
        %v2873 = vmax.f32 %v2865, 0.0
        %v2874 = vmax.f32 %v2866, 0.0
        %v2875 = vmax.f32 %v2867, 0.0
        %v2876 = vmax.f32 %v2868, 0.0
        %v2877 = vmax.f32 %v2869, 0.0
        %v2878 = vmax.f32 %v2870, 0.0
        %v2879 = vmax.f32 %v2871, 0.0
        %2880 = vst [vmem:[%s409] sm:$0xff] %v2872
        %2881 = vst [vmem:[%s409 + $0x8] sm:$0xff] %v2873
        %2882 = vst [vmem:[%s409 + $0x10] sm:$0xff] %v2874
        %2883 = vst [vmem:[%s409 + $0x18] sm:$0xff] %v2875
        %2884 = vst [vmem:[%s409 + $0x20] sm:$0xff] %v2876
        %2885 = vst [vmem:[%s409 + $0x28] sm:$0xff] %v2877
        %2886 = vst [vmem:[%s409 + $0x30] sm:$0xff] %v2878
        %2887 = vst [vmem:[%s409 + $0x38] sm:$0xff] %v2879
        %s2888 = sand.u32 %s275, 1
        %s2889 = scalar_lea.sflag [#allocation6], %s2888
        %s2890 = sand.u32 %s275, 1
        %s2891 = smul.addr %s2890, 64
        %s2892 = scalar_lea.vmem [#allocation7], %s2891
        // Predicated region
        $region69: #{tpu_custom_call.1} parent=63 // pred_check
          %p2893 = pneg %p285
        $region70: #{tpu_custom_call.1} parent=63 // pred_check_branch
          %2895 = sbr.rel (%p2893) target = $region72
        $region71: #{tpu_custom_call.1} parent=63 // pred_region
          %s2897 = ssub.s32 1024, 1024
          %2898 = vsyncadd %s2889, %s2897
          %s2899 = smul.addr %s26, 8
          %s2900 = smul.addr %s2899, 128
          %s2901 = scalar_lea.hbm %s11, %s2900
          %s2902 = sshll.u32 %s2892, 4
          %s2903 = int_to_ptr.vmem [resolvable:$true] %s2902
          %2908 = dma.vmem_to_hbm [thread:$0]  %s2903, 1024, %s2901, %s2889, 128, 128, 8
        $region72: #{tpu_custom_call.1} parent=63 // pred_fallthru
          _
      $region64: #{tpu_custom_call.1} parent=5 // pred_fallthru
        _
      %p2909 = scmp.le.s32.totalorder 2, %s21
      // Predicated region
      $region73: #{tpu_custom_call.1} parent=5 // pred_check
        %p2910 = pneg %p2909
      $region74: #{tpu_custom_call.1} parent=5 // pred_check_branch
        %2912 = sbr.rel (%p2910) target = $region76
      $region75: #{tpu_custom_call.1} parent=5 // pred_region
        %s2913 = ssub.s32 %s21, 2
        // Predicated region
        $region77: #{tpu_custom_call.1} parent=75 // pred_check
          %p2914 = pneg %p291
        $region78: #{tpu_custom_call.1} parent=75 // pred_check_branch
          %2916 = sbr.rel (%p2914) target = $region80
        $region79: #{tpu_custom_call.1} parent=75 // pred_region
          %s2917 = sand.u32 %s276, 1
          %s2918 = scalar_lea.sflag [#allocation6], %s2917
          %s2919 = sand.u32 %s276, 1
          %s2920 = smul.addr %s2919, 64
          %s2921 = scalar_lea.vmem [#allocation7], %s2920
          %2922 = dma.done %s2918, 1024
        $region80: #{tpu_custom_call.1} parent=75 // pred_fallthru
          _
      $region76: #{tpu_custom_call.1} parent=5 // pred_fallthru
        _
    $region6: #{tpu_custom_call.1} parent=1 // loop_footer
      %s25 = sadd.s32 1, %s21
    $region7: #{tpu_custom_call.1} parent=1 // loop_footer_branch
      %20 = sbr.rel target = $region3
    $region8: #{tpu_custom_call.1} parent=1 // loop_exit
      _
    %2923 = vsyncpa [#allocation5], 1
    %s2924 = scalar_lea.sflag [#allocation5], 1
    %2925 = vsyncpa %s2924, 1
    %2926 = vsyncpa [#allocation6], 1
    %s2927 = scalar_lea.sflag [#allocation6], 1
    %2928 = vsyncpa %s2927, 1

</llo_original>
